<compile_context>
chip_gen: v7x
topology: tpu7x:2x2x1
jax: 0.10.0
libtpu: 0.0.40
codegen_flags: <defaults>
</compile_context>

<pallas_src>
import jax
import jax.numpy as jnp
from jax.experimental import pallas as pl
from jax.experimental.pallas import tpu as pltpu


class Config:
    embed_size = 32
    hidden_size = 32
    dropout = 0.5
    lstm_layers = 2
    channel_in = 1
    channel_out = 8
    kernel_sizes = (2, 3, 4)


CPAD = 128  # lane-dense logits width (sliced to num_classes outside the kernel)


# ---------------------------------------------------------------------------
# Fused kernel: char-CNN -> feature concat -> stacked BiLSTM -> linear head
# ---------------------------------------------------------------------------

def _make_fused_kernel(T, B, H, CO, conv_positions, num_layers):
    """conv_positions: tuple of P_k (#valid conv positions) per kernel size."""
    H4, H8 = 4 * H, 8 * H

    def kernel(*refs):
        ce_ref, we_ref, pe_ref, wconv_ref, bconv_ref = refs[:5]
        layer_refs = refs[5:5 + 3 * num_layers]
        wlin_ref, blin_ref, o_ref, yf, yb = refs[5 + 3 * num_layers:]

        # ---- char-CNN: one block-Toeplitz matmul covers every kernel size ----
        conv_all = jnp.dot(ce_ref[...], wconv_ref[...],
                           preferred_element_type=jnp.float32)   # [N, sum_k P_k*CO]
        pools, off = [], 0
        for k, P in enumerate(conv_positions):
            acc = conv_all[:, off:off + CO]
            for p in range(1, P):                                # cheap VPU max over positions
                acc = jnp.maximum(acc, conv_all[:, off + p * CO:off + (p + 1) * CO])
            # max_pool1d(relu(conv + b)) == relu(max_p(conv) + b)  (b const over p)
            pools.append(jnp.maximum(acc + bconv_ref[:, k * CO:(k + 1) * CO], 0.0))
            off += P * CO
        char_pool = jnp.concatenate(pools, axis=-1)              # [N, K*CO]

        # ---- layer-0 features: [word | char-CNN | pos], built in-register ----
        # TODO(synk): nn.Dropout on the concat is eval-mode identity (omitted).
        x = jnp.concatenate([we_ref[...], char_pool, pe_ref[...]], axis=-1)  # [N, D0]

        def run_layer(x_in, wih_ref, b_ref, whh_ref):
            # Hoisted input projection: all timesteps, both directions, one matmul.
            proj = (jnp.dot(x_in.astype(jnp.bfloat16), wih_ref[...],
                            preferred_element_type=jnp.float32)
                    + b_ref[...])                                # [N, 8H]
            whh = whh_ref[...]                                   # [2H, 8H] block-diag
            h_cat = jnp.zeros((B, 2 * H), jnp.float32)           # [h_fwd | h_bwd]
            c_f = jnp.zeros((B, H), jnp.float32)
            c_b = jnp.zeros((B, H), jnp.float32)
            for s in range(T):                                   # static unrolled chain
                rs = T - 1 - s
                pre = jnp.concatenate(
                    [proj[s * B:(s + 1) * B, 0:H4],              # fwd gates, position s
                     proj[rs * B:(rs + 1) * B, H4:H8]],          # bwd gates, position rs
                    axis=-1)                                     # [B, 8H]
                gates = (jnp.dot(h_cat.astype(jnp.bfloat16), whh,
                                 preferred_element_type=jnp.float32) + pre)
                sg = jax.nn.sigmoid(gates)                       # one EUP pass, [B, 8H]
                th = jnp.tanh(gates)
                # gate order per direction: i, f, g, o
                c_f = sg[:, H:2 * H] * c_f + sg[:, 0:H] * th[:, 2 * H:3 * H]
                c_b = sg[:, 5 * H:6 * H] * c_b + sg[:, 4 * H:5 * H] * th[:, 6 * H:7 * H]
                o_cat = jnp.concatenate([sg[:, 3 * H:4 * H], sg[:, 7 * H:8 * H]], axis=-1)
                h_cat = o_cat * jnp.tanh(jnp.concatenate([c_f, c_b], axis=-1))
                # Layer output, position-major rows; written once, reloaded once.
                yf[s * B:(s + 1) * B, :] = h_cat[:, 0:H]
                yb[rs * B:(rs + 1) * B, :] = h_cat[:, H:2 * H]
            return jnp.concatenate([yf[...], yb[...]], axis=-1)  # [N, 2H]

        for l in range(num_layers):
            wih_ref, b_ref, whh_ref = layer_refs[3 * l:3 * l + 3]
            # TODO(synk): inter-layer LSTM dropout is eval-mode identity (omitted).
            x = run_layer(x, wih_ref, b_ref, whh_ref)

        # ---- fused linear head: one lane-dense [T*B, 2H] x [2H, CPAD] matmul ----
        o_ref[...] = (jnp.dot(x.astype(jnp.bfloat16), wlin_ref[...],
                              preferred_element_type=jnp.float32) + blin_ref[...])

    return kernel


def fused_forward(packed, cfg, num_classes, x, x_char, x_pos):
    """x: [B, T] int32, x_char: [B, T, Cc] int32, x_pos: [B, T] int32 -> [B, T, C]."""
    B, T = x.shape
    Cc = x_char.shape[2]
    E, H, CO = cfg.embed_size, cfg.hidden_size, cfg.channel_out
    N = T * B

    # Only the tiny integer id tensors are transposed; everything downstream is
    # built time-major, so there are no big activation transposes around the LSTM.
    # TODO(synk): the three embedding gathers could also be folded into the kernel
    # (one-hot bf16 matmuls) to make the whole forward a single fused op.
    ids_w = jnp.transpose(x).reshape(N)
    ids_p = jnp.transpose(x_pos).reshape(N)
    ids_c = jnp.transpose(x_char, (1, 0, 2)).reshape(N * Cc)
    we = jnp.take(packed["embed"], ids_w, axis=0)                       # [N, E]
    pe = jnp.take(packed["pos_embed"], ids_p, axis=0)                   # [N, E]
    ce = jnp.take(packed["char_embed"], ids_c, axis=0).reshape(N, Cc * E)
    ce = ce.astype(jnp.bfloat16)

    conv_positions = tuple(Cc - ks + 1 for ks in cfg.kernel_sizes)
    kernel = _make_fused_kernel(T=T, B=B, H=H, CO=CO,
                                conv_positions=conv_positions,
                                num_layers=cfg.lstm_layers)

    args = [ce, we, pe, packed["wconv"], packed["bconv"]]
    for l in range(cfg.lstm_layers):
        args += [packed["wih"][l], packed["bg"][l], packed["whh"][l]]
    args += [packed["wlin"], packed["blin"]]

    out = pl.pallas_call(
        kernel,
        out_shape=jax.ShapeDtypeStruct((N, CPAD), jnp.float32),
        grid=(1,),
        in_specs=[pl.BlockSpec(a.shape, lambda i, nd=a.ndim: (0,) * nd) for a in args],
        out_specs=pl.BlockSpec((N, CPAD), lambda i: (0, 0)),
        scratch_shapes=[pltpu.VMEM((N, H), jnp.float32),
                        pltpu.VMEM((N, H), jnp.float32)],
        compiler_params=pltpu.CompilerParams(dimension_semantics=("arbitrary",)),
    )(*args)

    logits = out[:, :num_classes].reshape(T, B, num_classes)
    return jnp.transpose(logits, (1, 0, 2))                             # [B, T, C]


# ---------------------------------------------------------------------------
# Parameter init (matches the PyTorch module layout) and one-time packing
# ---------------------------------------------------------------------------

def init_params(key, cfg, num_classes, vocab_size, char_vocab_size, pos_vocab_size):
    E, H, CO = cfg.embed_size, cfg.hidden_size, cfg.channel_out
    KS = cfg.kernel_sizes
    keys = iter(jax.random.split(key, 64))

    def rnd(shape, scale=0.1):
        return (scale * jax.random.normal(next(keys), shape)).astype(jnp.float32)

    params = {}
    # nn.Embedding(..., padding_idx=0): row 0 is zeros.
    params["embed"] = rnd((vocab_size, E)).at[0].set(0.0)
    params["pos_embed"] = rnd((pos_vocab_size, E)).at[0].set(0.0)
    params["char_embed"] = rnd((char_vocab_size, E)).at[0].set(0.0)
    # Conv2d(channel_in=1, channel_out, (ks, E)) weights + biases.
    params["convs"] = [(rnd((CO, cfg.channel_in, ks, E)), rnd((CO,))) for ks in KS]
    # Stacked bidirectional LSTM (word2vec is None path): Din0 = K*CO + 2E.
    D0 = CO * len(KS) + E + E
    lstm = []
    for layer in range(cfg.lstm_layers):
        Din = D0 if layer == 0 else 2 * H
        dirs = []
        for _ in range(2):  # forward, reverse
            dirs.append((rnd((4 * H, Din)), rnd((4 * H, H)),
                         rnd((4 * H,)), rnd((4 * H,))))
        lstm.append(dirs)
    params["lstm"] = lstm
    params["linear_w"] = rnd((num_classes, 2 * H))
    params["linear_b"] = rnd((num_classes,))
    return params


def pack_params(params, cfg, max_char_len, num_classes):
    """One-time (outside jit) packing into kernel-ready layouts."""
    E, H, CO = cfg.embed_size, cfg.hidden_size, cfg.channel_out
    KS = cfg.kernel_sizes
    Cc = max_char_len

    # Block-Toeplitz conv weights: window p of branch k maps rows p*E:(p+ks)*E to
    # output columns off_k + p*CO : off_k + (p+1)*CO.
    Ps = [Cc - ks + 1 for ks in KS]
    wconv = jnp.zeros((Cc * E, sum(Ps) * CO), jnp.float32)
    bcs, off = [], 0
    for (w, b), ks, P in zip(params["convs"], KS, Ps):
        wmat = jnp.transpose(w.reshape(CO, ks * E))            # [ks*E, CO]
        for p in range(P):
            wconv = wconv.at[p * E:(p + ks) * E,
                             off + p * CO:off + (p + 1) * CO].set(wmat)
        bcs.append(b.reshape(1, CO))
        off += P * CO
    bconv = jnp.concatenate(bcs, axis=-1)                      # [1, K*CO]

    # Per-layer LSTM: W_ih^T for both directions side-by-side [Din, 8H], combined
    # bias [1, 8H], block-diagonal W_hh^T [2H, 8H] (fwd rows 0:H -> cols 0:4H,
    # bwd rows H:2H -> cols 4H:8H).  No contraction zero-padding anywhere.
    wih_l, bg_l, whh_l = [], [], []
    for dirs in params["lstm"]:
        (wif, whf, bif, bhf), (wib, whb, bib, bhb) = dirs
        wih = jnp.concatenate([jnp.transpose(wif), jnp.transpose(wib)], axis=-1)
        bg = jnp.concatenate([bif + bhf, bib + bhb]).reshape(1, 8 * H)
        whh = jnp.zeros((2 * H, 8 * H), jnp.float32)
        whh = whh.at[0:H, 0:4 * H].set(jnp.transpose(whf))
        whh = whh.at[H:2 * H, 4 * H:8 * H].set(jnp.transpose(whb))
        wih_l.append(wih.astype(jnp.bfloat16))
        bg_l.append(bg)
        whh_l.append(whh.astype(jnp.bfloat16))

    wlin = jnp.zeros((2 * H, CPAD), jnp.float32)
    wlin = wlin.at[:, :num_classes].set(jnp.transpose(params["linear_w"]))
    blin = jnp.zeros((1, CPAD), jnp.float32).at[0, :num_classes].set(params["linear_b"])

    return {
        "embed": params["embed"], "pos_embed": params["pos_embed"],
        "char_embed": params["char_embed"],
        "wconv": wconv.astype(jnp.bfloat16), "bconv": bconv,
        "wih": wih_l, "bg": bg_l, "whh": whh_l,
        "wlin": wlin.astype(jnp.bfloat16), "blin": blin,
    }


# ---------------------------------------------------------------------------
# Pure-JAX fp32 reference (verification path; kernel uses bf16 matmuls)
# ---------------------------------------------------------------------------

def reference_forward(params, cfg, x, x_char, x_pos):
    E, H, CO = cfg.embed_size, cfg.hidden_size, cfg.channel_out
    KS = cfg.kernel_sizes
    B, T = x.shape
    Cc = x_char.shape[2]

    we = params["embed"][x]                                     # [B, T, E]
    pe = params["pos_embed"][x_pos]
    ce = params["char_embed"][x_char]                           # [B, T, Cc, E]
    pools = []
    for (w, b), ks in zip(params["convs"], KS):
        P = Cc - ks + 1
        wm = w.reshape(CO, ks * E)
        wins = jnp.stack([ce[:, :, p:p + ks, :].reshape(B, T, ks * E)
                          for p in range(P)], axis=2)           # [B, T, P, ks*E]
        conv = jnp.einsum("btpk,ck->btpc", wins, wm) + b
        pools.append(jnp.max(jax.nn.relu(conv), axis=2))        # [B, T, CO]
    feat = jnp.concatenate([we, jnp.concatenate(pools, axis=-1), pe], axis=-1)

    def lstm_dir(xs, w_ih, w_hh, b_ih, b_hh, reverse):
        if reverse:
            xs = xs[::-1]
        Hh = w_hh.shape[1]

        def step(carry, xt):
            h, c = carry
            g = xt @ w_ih.T + h @ w_hh.T + b_ih + b_hh
            i, f, gg, o = jnp.split(g, 4, axis=-1)
            i, f, o = jax.nn.sigmoid(i), jax.nn.sigmoid(f), jax.nn.sigmoid(o)
            c = f * c + i * jnp.tanh(gg)
            h = o * jnp.tanh(c)
            return (h, c), h

        init = (jnp.zeros((B, Hh)), jnp.zeros((B, Hh)))
        _, hs = jax.lax.scan(step, init, xs)
        return hs[::-1] if reverse else hs

    h = jnp.transpose(feat, (1, 0, 2))                          # [T, B, D0]
    for dirs in params["lstm"]:
        hf = lstm_dir(h, *dirs[0], reverse=False)
        hb = lstm_dir(h, *dirs[1], reverse=True)
        h = jnp.concatenate([hf, hb], axis=-1)
    out = h @ params["linear_w"].T + params["linear_b"]         # [T, B, C]
    return jnp.transpose(out, (1, 0, 2))                        # [B, T, C]


# ---------------------------------------------------------------------------

if __name__ == "__main__":
    cfg = Config()
    num_classes = 5
    vocab_size, char_vocab_size, pos_vocab_size = 50, 30, 12
    B, T, Cc = 2, 8, 12

    key = jax.random.PRNGKey(0)
    kp, kx, kc, kpos = jax.random.split(key, 4)
    params = init_params(kp, cfg, num_classes, vocab_size, char_vocab_size,
                         pos_vocab_size)
    packed = pack_params(params, cfg, max_char_len=Cc, num_classes=num_classes)

    x = jax.random.randint(kx, (B, T), 1, vocab_size, dtype=jnp.int32)
    x_char = jax.random.randint(kc, (B, T, Cc), 1, char_vocab_size, dtype=jnp.int32)
    x_pos = jax.random.randint(kpos, (B, T), 1, pos_vocab_size, dtype=jnp.int32)

    fwd = jax.jit(lambda p, a, b, c: fused_forward(p, cfg, num_classes, a, b, c))
    out = jax.block_until_ready(fwd(packed, x, x_char, x_pos))
    assert out.shape == (B, T, num_classes), out.shape
    assert bool(jnp.all(jnp.isfinite(out)))

    # fp32 reference check (kernel matmuls are bf16 -> loose tolerance).
    ref = reference_forward(params, cfg, x, x_char, x_pos)
    err = float(jnp.max(jnp.abs(out - ref)))
    assert err < 5e-2, f"max abs err {err}"
    print("KERNEL_OK")
</pallas_src>

<mosaic_0001>
module attributes {stable_mosaic.version = 11 : i64} {
  func.func @kernel(%arg0: i32, %arg1: memref<16x384xbf16, #tpu.memory_space<vmem>>, %arg2: memref<16x32xf32, #tpu.memory_space<vmem>>, %arg3: memref<16x32xf32, #tpu.memory_space<vmem>>, %arg4: memref<384x240xbf16, #tpu.memory_space<vmem>>, %arg5: memref<1x24xf32, #tpu.memory_space<vmem>>, %arg6: memref<88x256xbf16, #tpu.memory_space<vmem>>, %arg7: memref<1x256xf32, #tpu.memory_space<vmem>>, %arg8: memref<64x256xbf16, #tpu.memory_space<vmem>>, %arg9: memref<64x256xbf16, #tpu.memory_space<vmem>>, %arg10: memref<1x256xf32, #tpu.memory_space<vmem>>, %arg11: memref<64x256xbf16, #tpu.memory_space<vmem>>, %arg12: memref<64x128xbf16, #tpu.memory_space<vmem>>, %arg13: memref<1x128xf32, #tpu.memory_space<vmem>>, %arg14: memref<16x128xf32, #tpu.memory_space<vmem>>, %arg15: memref<16x32xf32, #tpu.memory_space<vmem>>, %arg16: memref<16x32xf32, #tpu.memory_space<vmem>>) attributes {dimension_semantics = [#tpu.dimension_semantics<arbitrary>], iteration_bounds = array<i64: 1>, scalar_prefetch = 0 : i64, scratch_operands = 2 : i64, tpu.core_type = #tpu.core_type<tc>, window_params = [{pipeline_mode = #tpu.pipeline_mode<synchronous>, transform_indices = @transform_0, window_bounds = array<i64: 16, 384>}, {pipeline_mode = #tpu.pipeline_mode<synchronous>, transform_indices = @transform_1, window_bounds = array<i64: 16, 32>}, {pipeline_mode = #tpu.pipeline_mode<synchronous>, transform_indices = @transform_2, window_bounds = array<i64: 16, 32>}, {pipeline_mode = #tpu.pipeline_mode<synchronous>, transform_indices = @transform_3, window_bounds = array<i64: 384, 240>}, {pipeline_mode = #tpu.pipeline_mode<synchronous>, transform_indices = @transform_4, window_bounds = array<i64: 1, 24>}, {pipeline_mode = #tpu.pipeline_mode<synchronous>, transform_indices = @transform_5, window_bounds = array<i64: 88, 256>}, {pipeline_mode = #tpu.pipeline_mode<synchronous>, transform_indices = @transform_6, window_bounds = array<i64: 1, 256>}, {pipeline_mode = #tpu.pipeline_mode<synchronous>, transform_indices = @transform_7, window_bounds = array<i64: 64, 256>}, {pipeline_mode = #tpu.pipeline_mode<synchronous>, transform_indices = @transform_8, window_bounds = array<i64: 64, 256>}, {pipeline_mode = #tpu.pipeline_mode<synchronous>, transform_indices = @transform_9, window_bounds = array<i64: 1, 256>}, {pipeline_mode = #tpu.pipeline_mode<synchronous>, transform_indices = @transform_10, window_bounds = array<i64: 64, 256>}, {pipeline_mode = #tpu.pipeline_mode<synchronous>, transform_indices = @transform_11, window_bounds = array<i64: 64, 128>}, {pipeline_mode = #tpu.pipeline_mode<synchronous>, transform_indices = @transform_12, window_bounds = array<i64: 1, 128>}, {pipeline_mode = #tpu.pipeline_mode<synchronous>, transform_indices = @transform_13, window_bounds = array<i64: 16, 128>}]} {
    %c0 = arith.constant 0 : index
    %c0_0 = arith.constant 0 : index
    %0 = vector.load %arg1[%c0, %c0_0] : memref<16x384xbf16, #tpu.memory_space<vmem>>, vector<16x384xbf16>
    %c0_1 = arith.constant 0 : index
    %c0_2 = arith.constant 0 : index
    %1 = vector.load %arg4[%c0_1, %c0_2] : memref<384x240xbf16, #tpu.memory_space<vmem>>, vector<384x240xbf16>
    %cst = arith.constant dense<0.000000e+00> : vector<16x240xf32>
    %2 = tpu.matmul %0, %1, %cst {dimension_numbers = #tpu.dot_dimension_numbers<[1], [0], [0], [1], [0, 0, 1, 1], [], []>} : vector<16x384xbf16>, vector<384x240xbf16>, vector<16x240xf32> -> vector<16x240xf32>
    %3 = vector.extract_strided_slice %2 {offsets = [0, 0], sizes = [16, 8], strides = [1, 1]} : vector<16x240xf32> to vector<16x8xf32>
    %4 = vector.extract_strided_slice %2 {offsets = [0, 8], sizes = [16, 8], strides = [1, 1]} : vector<16x240xf32> to vector<16x8xf32>
    %5 = arith.maximumf %3, %4 : vector<16x8xf32>
    %6 = vector.extract_strided_slice %2 {offsets = [0, 16], sizes = [16, 8], strides = [1, 1]} : vector<16x240xf32> to vector<16x8xf32>
    %7 = arith.maximumf %5, %6 : vector<16x8xf32>
    %8 = vector.extract_strided_slice %2 {offsets = [0, 24], sizes = [16, 8], strides = [1, 1]} : vector<16x240xf32> to vector<16x8xf32>
    %9 = arith.maximumf %7, %8 : vector<16x8xf32>
    %10 = vector.extract_strided_slice %2 {offsets = [0, 32], sizes = [16, 8], strides = [1, 1]} : vector<16x240xf32> to vector<16x8xf32>
    %11 = arith.maximumf %9, %10 : vector<16x8xf32>
    %12 = vector.extract_strided_slice %2 {offsets = [0, 40], sizes = [16, 8], strides = [1, 1]} : vector<16x240xf32> to vector<16x8xf32>
    %13 = arith.maximumf %11, %12 : vector<16x8xf32>
    %14 = vector.extract_strided_slice %2 {offsets = [0, 48], sizes = [16, 8], strides = [1, 1]} : vector<16x240xf32> to vector<16x8xf32>
    %15 = arith.maximumf %13, %14 : vector<16x8xf32>
    %16 = vector.extract_strided_slice %2 {offsets = [0, 56], sizes = [16, 8], strides = [1, 1]} : vector<16x240xf32> to vector<16x8xf32>
    %17 = arith.maximumf %15, %16 : vector<16x8xf32>
    %18 = vector.extract_strided_slice %2 {offsets = [0, 64], sizes = [16, 8], strides = [1, 1]} : vector<16x240xf32> to vector<16x8xf32>
    %19 = arith.maximumf %17, %18 : vector<16x8xf32>
    %20 = vector.extract_strided_slice %2 {offsets = [0, 72], sizes = [16, 8], strides = [1, 1]} : vector<16x240xf32> to vector<16x8xf32>
    %21 = arith.maximumf %19, %20 : vector<16x8xf32>
    %22 = vector.extract_strided_slice %2 {offsets = [0, 80], sizes = [16, 8], strides = [1, 1]} : vector<16x240xf32> to vector<16x8xf32>
    %23 = arith.maximumf %21, %22 : vector<16x8xf32>
    %c0_3 = arith.constant 0 : index
    %c0_4 = arith.constant 0 : index
    %24 = vector.load %arg5[%c0_3, %c0_4] : memref<1x24xf32, #tpu.memory_space<vmem>>, vector<1x8xf32>
    %25 = vector.broadcast %24 : vector<1x8xf32> to vector<16x8xf32>
    %26 = arith.addf %23, %25 : vector<16x8xf32>
    %cst_5 = arith.constant 0.000000e+00 : f32
    %27 = vector.broadcast %cst_5 : f32 to vector<16x8xf32>
    %28 = arith.maximumf %26, %27 : vector<16x8xf32>
    %29 = vector.extract_strided_slice %2 {offsets = [0, 88], sizes = [16, 8], strides = [1, 1]} : vector<16x240xf32> to vector<16x8xf32>
    %30 = vector.extract_strided_slice %2 {offsets = [0, 96], sizes = [16, 8], strides = [1, 1]} : vector<16x240xf32> to vector<16x8xf32>
    %31 = arith.maximumf %29, %30 : vector<16x8xf32>
    %32 = vector.extract_strided_slice %2 {offsets = [0, 104], sizes = [16, 8], strides = [1, 1]} : vector<16x240xf32> to vector<16x8xf32>
    %33 = arith.maximumf %31, %32 : vector<16x8xf32>
    %34 = vector.extract_strided_slice %2 {offsets = [0, 112], sizes = [16, 8], strides = [1, 1]} : vector<16x240xf32> to vector<16x8xf32>
    %35 = arith.maximumf %33, %34 : vector<16x8xf32>
    %36 = vector.extract_strided_slice %2 {offsets = [0, 120], sizes = [16, 8], strides = [1, 1]} : vector<16x240xf32> to vector<16x8xf32>
    %37 = arith.maximumf %35, %36 : vector<16x8xf32>
    %38 = vector.extract_strided_slice %2 {offsets = [0, 128], sizes = [16, 8], strides = [1, 1]} : vector<16x240xf32> to vector<16x8xf32>
    %39 = arith.maximumf %37, %38 : vector<16x8xf32>
    %40 = vector.extract_strided_slice %2 {offsets = [0, 136], sizes = [16, 8], strides = [1, 1]} : vector<16x240xf32> to vector<16x8xf32>
    %41 = arith.maximumf %39, %40 : vector<16x8xf32>
    %42 = vector.extract_strided_slice %2 {offsets = [0, 144], sizes = [16, 8], strides = [1, 1]} : vector<16x240xf32> to vector<16x8xf32>
    %43 = arith.maximumf %41, %42 : vector<16x8xf32>
    %44 = vector.extract_strided_slice %2 {offsets = [0, 152], sizes = [16, 8], strides = [1, 1]} : vector<16x240xf32> to vector<16x8xf32>
    %45 = arith.maximumf %43, %44 : vector<16x8xf32>
    %46 = vector.extract_strided_slice %2 {offsets = [0, 160], sizes = [16, 8], strides = [1, 1]} : vector<16x240xf32> to vector<16x8xf32>
    %47 = arith.maximumf %45, %46 : vector<16x8xf32>
    %c0_6 = arith.constant 0 : index
    %c8 = arith.constant 8 : index
    %48 = vector.load %arg5[%c0_6, %c8] : memref<1x24xf32, #tpu.memory_space<vmem>>, vector<1x8xf32>
    %49 = vector.broadcast %48 : vector<1x8xf32> to vector<16x8xf32>
    %50 = arith.addf %47, %49 : vector<16x8xf32>
    %cst_7 = arith.constant 0.000000e+00 : f32
    %51 = vector.broadcast %cst_7 : f32 to vector<16x8xf32>
    %52 = arith.maximumf %50, %51 : vector<16x8xf32>
    %53 = vector.extract_strided_slice %2 {offsets = [0, 168], sizes = [16, 8], strides = [1, 1]} : vector<16x240xf32> to vector<16x8xf32>
    %54 = vector.extract_strided_slice %2 {offsets = [0, 176], sizes = [16, 8], strides = [1, 1]} : vector<16x240xf32> to vector<16x8xf32>
    %55 = arith.maximumf %53, %54 : vector<16x8xf32>
    %56 = vector.extract_strided_slice %2 {offsets = [0, 184], sizes = [16, 8], strides = [1, 1]} : vector<16x240xf32> to vector<16x8xf32>
    %57 = arith.maximumf %55, %56 : vector<16x8xf32>
    %58 = vector.extract_strided_slice %2 {offsets = [0, 192], sizes = [16, 8], strides = [1, 1]} : vector<16x240xf32> to vector<16x8xf32>
    %59 = arith.maximumf %57, %58 : vector<16x8xf32>
    %60 = vector.extract_strided_slice %2 {offsets = [0, 200], sizes = [16, 8], strides = [1, 1]} : vector<16x240xf32> to vector<16x8xf32>
    %61 = arith.maximumf %59, %60 : vector<16x8xf32>
    %62 = vector.extract_strided_slice %2 {offsets = [0, 208], sizes = [16, 8], strides = [1, 1]} : vector<16x240xf32> to vector<16x8xf32>
    %63 = arith.maximumf %61, %62 : vector<16x8xf32>
    %64 = vector.extract_strided_slice %2 {offsets = [0, 216], sizes = [16, 8], strides = [1, 1]} : vector<16x240xf32> to vector<16x8xf32>
    %65 = arith.maximumf %63, %64 : vector<16x8xf32>
    %66 = vector.extract_strided_slice %2 {offsets = [0, 224], sizes = [16, 8], strides = [1, 1]} : vector<16x240xf32> to vector<16x8xf32>
    %67 = arith.maximumf %65, %66 : vector<16x8xf32>
    %68 = vector.extract_strided_slice %2 {offsets = [0, 232], sizes = [16, 8], strides = [1, 1]} : vector<16x240xf32> to vector<16x8xf32>
    %69 = arith.maximumf %67, %68 : vector<16x8xf32>
    %c0_8 = arith.constant 0 : index
    %c16 = arith.constant 16 : index
    %70 = vector.load %arg5[%c0_8, %c16] : memref<1x24xf32, #tpu.memory_space<vmem>>, vector<1x8xf32>
    %71 = vector.broadcast %70 : vector<1x8xf32> to vector<16x8xf32>
    %72 = arith.addf %69, %71 : vector<16x8xf32>
    %cst_9 = arith.constant 0.000000e+00 : f32
    %73 = vector.broadcast %cst_9 : f32 to vector<16x8xf32>
    %74 = arith.maximumf %72, %73 : vector<16x8xf32>
    %75 = tpu.concatenate %28, %52, %74 in 1 : vector<16x8xf32>, vector<16x8xf32>, vector<16x8xf32> -> vector<16x24xf32>
    %c0_10 = arith.constant 0 : index
    %c0_11 = arith.constant 0 : index
    %76 = vector.load %arg2[%c0_10, %c0_11] : memref<16x32xf32, #tpu.memory_space<vmem>>, vector<16x32xf32>
    %c0_12 = arith.constant 0 : index
    %c0_13 = arith.constant 0 : index
    %77 = vector.load %arg3[%c0_12, %c0_13] : memref<16x32xf32, #tpu.memory_space<vmem>>, vector<16x32xf32>
    %78 = tpu.concatenate %76, %75, %77 in 1 : vector<16x32xf32>, vector<16x24xf32>, vector<16x32xf32> -> vector<16x88xf32>
    %79 = arith.truncf %78 : vector<16x88xf32> to vector<16x88xbf16>
    %c0_14 = arith.constant 0 : index
    %c0_15 = arith.constant 0 : index
    %80 = vector.load %arg6[%c0_14, %c0_15] : memref<88x256xbf16, #tpu.memory_space<vmem>>, vector<88x256xbf16>
    %cst_16 = arith.constant dense<0.000000e+00> : vector<16x256xf32>
    %81 = tpu.matmul %79, %80, %cst_16 {dimension_numbers = #tpu.dot_dimension_numbers<[1], [0], [0], [1], [0, 0, 1, 1], [], []>} : vector<16x88xbf16>, vector<88x256xbf16>, vector<16x256xf32> -> vector<16x256xf32>
    %c0_17 = arith.constant 0 : index
    %c0_18 = arith.constant 0 : index
    %82 = vector.load %arg7[%c0_17, %c0_18] : memref<1x256xf32, #tpu.memory_space<vmem>>, vector<1x256xf32>
    %83 = vector.broadcast %82 : vector<1x256xf32> to vector<16x256xf32>
    %84 = arith.addf %81, %83 : vector<16x256xf32>
    %c0_19 = arith.constant 0 : index
    %c0_20 = arith.constant 0 : index
    %85 = vector.load %arg8[%c0_19, %c0_20] : memref<64x256xbf16, #tpu.memory_space<vmem>>, vector<64x256xbf16>
    %cst_21 = arith.constant 0.000000e+00 : f32
    %86 = vector.broadcast %cst_21 : f32 to vector<2x64xf32>
    %cst_22 = arith.constant 0.000000e+00 : f32
    %87 = vector.broadcast %cst_22 : f32 to vector<2x32xf32>
    %cst_23 = arith.constant 0.000000e+00 : f32
    %88 = vector.broadcast %cst_23 : f32 to vector<2x32xf32>
    %89 = vector.extract_strided_slice %84 {offsets = [0, 0], sizes = [2, 128], strides = [1, 1]} : vector<16x256xf32> to vector<2x128xf32>
    %90 = vector.extract_strided_slice %84 {offsets = [14, 128], sizes = [2, 128], strides = [1, 1]} : vector<16x256xf32> to vector<2x128xf32>
    %91 = tpu.concatenate %89, %90 in 1 : vector<2x128xf32>, vector<2x128xf32> -> vector<2x256xf32>
    %92 = arith.truncf %86 : vector<2x64xf32> to vector<2x64xbf16>
    %cst_24 = arith.constant dense<0.000000e+00> : vector<2x256xf32>
    %93 = tpu.matmul %92, %85, %cst_24 {dimension_numbers = #tpu.dot_dimension_numbers<[1], [0], [0], [1], [0, 0, 1, 1], [], []>} : vector<2x64xbf16>, vector<64x256xbf16>, vector<2x256xf32> -> vector<2x256xf32>
    %94 = arith.addf %93, %91 : vector<2x256xf32>
    %95 = arith.negf %94 : vector<2x256xf32>
    %96 = math.exp %95 : vector<2x256xf32>
    %cst_25 = arith.constant 1.000000e+00 : f32
    %97 = vector.broadcast %cst_25 : f32 to vector<2x256xf32>
    %98 = arith.addf %97, %96 : vector<2x256xf32>
    %99 = arith.divf %97, %98 : vector<2x256xf32>
    %100 = math.tanh %94 : vector<2x256xf32>
    %101 = vector.extract_strided_slice %99 {offsets = [0, 32], sizes = [2, 32], strides = [1, 1]} : vector<2x256xf32> to vector<2x32xf32>
    %102 = arith.mulf %101, %87 : vector<2x32xf32>
    %103 = vector.extract_strided_slice %99 {offsets = [0, 0], sizes = [2, 32], strides = [1, 1]} : vector<2x256xf32> to vector<2x32xf32>
    %104 = vector.extract_strided_slice %100 {offsets = [0, 64], sizes = [2, 32], strides = [1, 1]} : vector<2x256xf32> to vector<2x32xf32>
    %105 = arith.mulf %103, %104 : vector<2x32xf32>
    %106 = arith.addf %102, %105 : vector<2x32xf32>
    %107 = vector.extract_strided_slice %99 {offsets = [0, 160], sizes = [2, 32], strides = [1, 1]} : vector<2x256xf32> to vector<2x32xf32>
    %108 = arith.mulf %107, %88 : vector<2x32xf32>
    %109 = vector.extract_strided_slice %99 {offsets = [0, 128], sizes = [2, 32], strides = [1, 1]} : vector<2x256xf32> to vector<2x32xf32>
    %110 = vector.extract_strided_slice %100 {offsets = [0, 192], sizes = [2, 32], strides = [1, 1]} : vector<2x256xf32> to vector<2x32xf32>
    %111 = arith.mulf %109, %110 : vector<2x32xf32>
    %112 = arith.addf %108, %111 : vector<2x32xf32>
    %113 = vector.extract_strided_slice %99 {offsets = [0, 96], sizes = [2, 32], strides = [1, 1]} : vector<2x256xf32> to vector<2x32xf32>
    %114 = vector.extract_strided_slice %99 {offsets = [0, 224], sizes = [2, 32], strides = [1, 1]} : vector<2x256xf32> to vector<2x32xf32>
    %115 = tpu.concatenate %113, %114 in 1 : vector<2x32xf32>, vector<2x32xf32> -> vector<2x64xf32>
    %116 = tpu.concatenate %106, %112 in 1 : vector<2x32xf32>, vector<2x32xf32> -> vector<2x64xf32>
    %117 = math.tanh %116 : vector<2x64xf32>
    %118 = arith.mulf %115, %117 : vector<2x64xf32>
    %119 = vector.extract_strided_slice %118 {offsets = [0, 0], sizes = [2, 32], strides = [1, 1]} : vector<2x64xf32> to vector<2x32xf32>
    %c0_26 = arith.constant 0 : index
    %c0_27 = arith.constant 0 : index
    %120 = vector.load %arg15[%c0_26, %c0_27] : memref<16x32xf32, #tpu.memory_space<vmem>>, vector<2x32xf32>
    tpu.vector_store %arg15[%c0_26, %c0_27], %119 {strides = array<i32>} : memref<16x32xf32, #tpu.memory_space<vmem>>, vector<2x32xf32>,
    %121 = vector.extract_strided_slice %118 {offsets = [0, 32], sizes = [2, 32], strides = [1, 1]} : vector<2x64xf32> to vector<2x32xf32>
    %c14 = arith.constant 14 : index
    %c0_28 = arith.constant 0 : index
    %122 = vector.load %arg16[%c14, %c0_28] : memref<16x32xf32, #tpu.memory_space<vmem>>, vector<2x32xf32>
    tpu.vector_store %arg16[%c14, %c0_28], %121 {strides = array<i32>} : memref<16x32xf32, #tpu.memory_space<vmem>>, vector<2x32xf32>,
    %123 = vector.extract_strided_slice %84 {offsets = [2, 0], sizes = [2, 128], strides = [1, 1]} : vector<16x256xf32> to vector<2x128xf32>
    %124 = vector.extract_strided_slice %84 {offsets = [12, 128], sizes = [2, 128], strides = [1, 1]} : vector<16x256xf32> to vector<2x128xf32>
    %125 = tpu.concatenate %123, %124 in 1 : vector<2x128xf32>, vector<2x128xf32> -> vector<2x256xf32>
    %126 = arith.truncf %118 : vector<2x64xf32> to vector<2x64xbf16>
    %cst_29 = arith.constant dense<0.000000e+00> : vector<2x256xf32>
    %127 = tpu.matmul %126, %85, %cst_29 {dimension_numbers = #tpu.dot_dimension_numbers<[1], [0], [0], [1], [0, 0, 1, 1], [], []>} : vector<2x64xbf16>, vector<64x256xbf16>, vector<2x256xf32> -> vector<2x256xf32>
    %128 = arith.addf %127, %125 : vector<2x256xf32>
    %129 = arith.negf %128 : vector<2x256xf32>
    %130 = math.exp %129 : vector<2x256xf32>
    %cst_30 = arith.constant 1.000000e+00 : f32
    %131 = vector.broadcast %cst_30 : f32 to vector<2x256xf32>
    %132 = arith.addf %131, %130 : vector<2x256xf32>
    %133 = arith.divf %131, %132 : vector<2x256xf32>
    %134 = math.tanh %128 : vector<2x256xf32>
    %135 = vector.extract_strided_slice %133 {offsets = [0, 32], sizes = [2, 32], strides = [1, 1]} : vector<2x256xf32> to vector<2x32xf32>
    %136 = arith.mulf %135, %106 : vector<2x32xf32>
    %137 = vector.extract_strided_slice %133 {offsets = [0, 0], sizes = [2, 32], strides = [1, 1]} : vector<2x256xf32> to vector<2x32xf32>
    %138 = vector.extract_strided_slice %134 {offsets = [0, 64], sizes = [2, 32], strides = [1, 1]} : vector<2x256xf32> to vector<2x32xf32>
    %139 = arith.mulf %137, %138 : vector<2x32xf32>
    %140 = arith.addf %136, %139 : vector<2x32xf32>
    %141 = vector.extract_strided_slice %133 {offsets = [0, 160], sizes = [2, 32], strides = [1, 1]} : vector<2x256xf32> to vector<2x32xf32>
    %142 = arith.mulf %141, %112 : vector<2x32xf32>
    %143 = vector.extract_strided_slice %133 {offsets = [0, 128], sizes = [2, 32], strides = [1, 1]} : vector<2x256xf32> to vector<2x32xf32>
    %144 = vector.extract_strided_slice %134 {offsets = [0, 192], sizes = [2, 32], strides = [1, 1]} : vector<2x256xf32> to vector<2x32xf32>
    %145 = arith.mulf %143, %144 : vector<2x32xf32>
    %146 = arith.addf %142, %145 : vector<2x32xf32>
    %147 = vector.extract_strided_slice %133 {offsets = [0, 96], sizes = [2, 32], strides = [1, 1]} : vector<2x256xf32> to vector<2x32xf32>
    %148 = vector.extract_strided_slice %133 {offsets = [0, 224], sizes = [2, 32], strides = [1, 1]} : vector<2x256xf32> to vector<2x32xf32>
    %149 = tpu.concatenate %147, %148 in 1 : vector<2x32xf32>, vector<2x32xf32> -> vector<2x64xf32>
    %150 = tpu.concatenate %140, %146 in 1 : vector<2x32xf32>, vector<2x32xf32> -> vector<2x64xf32>
    %151 = math.tanh %150 : vector<2x64xf32>
    %152 = arith.mulf %149, %151 : vector<2x64xf32>
    %153 = vector.extract_strided_slice %152 {offsets = [0, 0], sizes = [2, 32], strides = [1, 1]} : vector<2x64xf32> to vector<2x32xf32>
    %c2 = arith.constant 2 : index
    %c0_31 = arith.constant 0 : index
    %154 = vector.load %arg15[%c2, %c0_31] : memref<16x32xf32, #tpu.memory_space<vmem>>, vector<2x32xf32>
    tpu.vector_store %arg15[%c2, %c0_31], %153 {strides = array<i32>} : memref<16x32xf32, #tpu.memory_space<vmem>>, vector<2x32xf32>,
    %155 = vector.extract_strided_slice %152 {offsets = [0, 32], sizes = [2, 32], strides = [1, 1]} : vector<2x64xf32> to vector<2x32xf32>
    %c12 = arith.constant 12 : index
    %c0_32 = arith.constant 0 : index
    %156 = vector.load %arg16[%c12, %c0_32] : memref<16x32xf32, #tpu.memory_space<vmem>>, vector<2x32xf32>
    tpu.vector_store %arg16[%c12, %c0_32], %155 {strides = array<i32>} : memref<16x32xf32, #tpu.memory_space<vmem>>, vector<2x32xf32>,
    %157 = vector.extract_strided_slice %84 {offsets = [4, 0], sizes = [2, 128], strides = [1, 1]} : vector<16x256xf32> to vector<2x128xf32>
    %158 = vector.extract_strided_slice %84 {offsets = [10, 128], sizes = [2, 128], strides = [1, 1]} : vector<16x256xf32> to vector<2x128xf32>
    %159 = tpu.concatenate %157, %158 in 1 : vector<2x128xf32>, vector<2x128xf32> -> vector<2x256xf32>
    %160 = arith.truncf %152 : vector<2x64xf32> to vector<2x64xbf16>
    %cst_33 = arith.constant dense<0.000000e+00> : vector<2x256xf32>
    %161 = tpu.matmul %160, %85, %cst_33 {dimension_numbers = #tpu.dot_dimension_numbers<[1], [0], [0], [1], [0, 0, 1, 1], [], []>} : vector<2x64xbf16>, vector<64x256xbf16>, vector<2x256xf32> -> vector<2x256xf32>
    %162 = arith.addf %161, %159 : vector<2x256xf32>
    %163 = arith.negf %162 : vector<2x256xf32>
    %164 = math.exp %163 : vector<2x256xf32>
    %cst_34 = arith.constant 1.000000e+00 : f32
    %165 = vector.broadcast %cst_34 : f32 to vector<2x256xf32>
    %166 = arith.addf %165, %164 : vector<2x256xf32>
    %167 = arith.divf %165, %166 : vector<2x256xf32>
    %168 = math.tanh %162 : vector<2x256xf32>
    %169 = vector.extract_strided_slice %167 {offsets = [0, 32], sizes = [2, 32], strides = [1, 1]} : vector<2x256xf32> to vector<2x32xf32>
    %170 = arith.mulf %169, %140 : vector<2x32xf32>
    %171 = vector.extract_strided_slice %167 {offsets = [0, 0], sizes = [2, 32], strides = [1, 1]} : vector<2x256xf32> to vector<2x32xf32>
    %172 = vector.extract_strided_slice %168 {offsets = [0, 64], sizes = [2, 32], strides = [1, 1]} : vector<2x256xf32> to vector<2x32xf32>
    %173 = arith.mulf %171, %172 : vector<2x32xf32>
    %174 = arith.addf %170, %173 : vector<2x32xf32>
    %175 = vector.extract_strided_slice %167 {offsets = [0, 160], sizes = [2, 32], strides = [1, 1]} : vector<2x256xf32> to vector<2x32xf32>
    %176 = arith.mulf %175, %146 : vector<2x32xf32>
    %177 = vector.extract_strided_slice %167 {offsets = [0, 128], sizes = [2, 32], strides = [1, 1]} : vector<2x256xf32> to vector<2x32xf32>
    %178 = vector.extract_strided_slice %168 {offsets = [0, 192], sizes = [2, 32], strides = [1, 1]} : vector<2x256xf32> to vector<2x32xf32>
    %179 = arith.mulf %177, %178 : vector<2x32xf32>
    %180 = arith.addf %176, %179 : vector<2x32xf32>
    %181 = vector.extract_strided_slice %167 {offsets = [0, 96], sizes = [2, 32], strides = [1, 1]} : vector<2x256xf32> to vector<2x32xf32>
    %182 = vector.extract_strided_slice %167 {offsets = [0, 224], sizes = [2, 32], strides = [1, 1]} : vector<2x256xf32> to vector<2x32xf32>
    %183 = tpu.concatenate %181, %182 in 1 : vector<2x32xf32>, vector<2x32xf32> -> vector<2x64xf32>
    %184 = tpu.concatenate %174, %180 in 1 : vector<2x32xf32>, vector<2x32xf32> -> vector<2x64xf32>
    %185 = math.tanh %184 : vector<2x64xf32>
    %186 = arith.mulf %183, %185 : vector<2x64xf32>
    %187 = vector.extract_strided_slice %186 {offsets = [0, 0], sizes = [2, 32], strides = [1, 1]} : vector<2x64xf32> to vector<2x32xf32>
    %c4 = arith.constant 4 : index
    %c0_35 = arith.constant 0 : index
    %188 = vector.load %arg15[%c4, %c0_35] : memref<16x32xf32, #tpu.memory_space<vmem>>, vector<2x32xf32>
    tpu.vector_store %arg15[%c4, %c0_35], %187 {strides = array<i32>} : memref<16x32xf32, #tpu.memory_space<vmem>>, vector<2x32xf32>,
    %189 = vector.extract_strided_slice %186 {offsets = [0, 32], sizes = [2, 32], strides = [1, 1]} : vector<2x64xf32> to vector<2x32xf32>
    %c10 = arith.constant 10 : index
    %c0_36 = arith.constant 0 : index
    %190 = vector.load %arg16[%c10, %c0_36] : memref<16x32xf32, #tpu.memory_space<vmem>>, vector<2x32xf32>
    tpu.vector_store %arg16[%c10, %c0_36], %189 {strides = array<i32>} : memref<16x32xf32, #tpu.memory_space<vmem>>, vector<2x32xf32>,
    %191 = vector.extract_strided_slice %84 {offsets = [6, 0], sizes = [2, 128], strides = [1, 1]} : vector<16x256xf32> to vector<2x128xf32>
    %192 = vector.extract_strided_slice %84 {offsets = [8, 128], sizes = [2, 128], strides = [1, 1]} : vector<16x256xf32> to vector<2x128xf32>
    %193 = tpu.concatenate %191, %192 in 1 : vector<2x128xf32>, vector<2x128xf32> -> vector<2x256xf32>
    %194 = arith.truncf %186 : vector<2x64xf32> to vector<2x64xbf16>
    %cst_37 = arith.constant dense<0.000000e+00> : vector<2x256xf32>
    %195 = tpu.matmul %194, %85, %cst_37 {dimension_numbers = #tpu.dot_dimension_numbers<[1], [0], [0], [1], [0, 0, 1, 1], [], []>} : vector<2x64xbf16>, vector<64x256xbf16>, vector<2x256xf32> -> vector<2x256xf32>
    %196 = arith.addf %195, %193 : vector<2x256xf32>
    %197 = arith.negf %196 : vector<2x256xf32>
    %198 = math.exp %197 : vector<2x256xf32>
    %cst_38 = arith.constant 1.000000e+00 : f32
    %199 = vector.broadcast %cst_38 : f32 to vector<2x256xf32>
    %200 = arith.addf %199, %198 : vector<2x256xf32>
    %201 = arith.divf %199, %200 : vector<2x256xf32>
    %202 = math.tanh %196 : vector<2x256xf32>
    %203 = vector.extract_strided_slice %201 {offsets = [0, 32], sizes = [2, 32], strides = [1, 1]} : vector<2x256xf32> to vector<2x32xf32>
    %204 = arith.mulf %203, %174 : vector<2x32xf32>
    %205 = vector.extract_strided_slice %201 {offsets = [0, 0], sizes = [2, 32], strides = [1, 1]} : vector<2x256xf32> to vector<2x32xf32>
    %206 = vector.extract_strided_slice %202 {offsets = [0, 64], sizes = [2, 32], strides = [1, 1]} : vector<2x256xf32> to vector<2x32xf32>
    %207 = arith.mulf %205, %206 : vector<2x32xf32>
    %208 = arith.addf %204, %207 : vector<2x32xf32>
    %209 = vector.extract_strided_slice %201 {offsets = [0, 160], sizes = [2, 32], strides = [1, 1]} : vector<2x256xf32> to vector<2x32xf32>
    %210 = arith.mulf %209, %180 : vector<2x32xf32>
    %211 = vector.extract_strided_slice %201 {offsets = [0, 128], sizes = [2, 32], strides = [1, 1]} : vector<2x256xf32> to vector<2x32xf32>
    %212 = vector.extract_strided_slice %202 {offsets = [0, 192], sizes = [2, 32], strides = [1, 1]} : vector<2x256xf32> to vector<2x32xf32>
    %213 = arith.mulf %211, %212 : vector<2x32xf32>
    %214 = arith.addf %210, %213 : vector<2x32xf32>
    %215 = vector.extract_strided_slice %201 {offsets = [0, 96], sizes = [2, 32], strides = [1, 1]} : vector<2x256xf32> to vector<2x32xf32>
    %216 = vector.extract_strided_slice %201 {offsets = [0, 224], sizes = [2, 32], strides = [1, 1]} : vector<2x256xf32> to vector<2x32xf32>
    %217 = tpu.concatenate %215, %216 in 1 : vector<2x32xf32>, vector<2x32xf32> -> vector<2x64xf32>
    %218 = tpu.concatenate %208, %214 in 1 : vector<2x32xf32>, vector<2x32xf32> -> vector<2x64xf32>
    %219 = math.tanh %218 : vector<2x64xf32>
    %220 = arith.mulf %217, %219 : vector<2x64xf32>
    %221 = vector.extract_strided_slice %220 {offsets = [0, 0], sizes = [2, 32], strides = [1, 1]} : vector<2x64xf32> to vector<2x32xf32>
    %c6 = arith.constant 6 : index
    %c0_39 = arith.constant 0 : index
    %222 = vector.load %arg15[%c6, %c0_39] : memref<16x32xf32, #tpu.memory_space<vmem>>, vector<2x32xf32>
    tpu.vector_store %arg15[%c6, %c0_39], %221 {strides = array<i32>} : memref<16x32xf32, #tpu.memory_space<vmem>>, vector<2x32xf32>,
    %223 = vector.extract_strided_slice %220 {offsets = [0, 32], sizes = [2, 32], strides = [1, 1]} : vector<2x64xf32> to vector<2x32xf32>
    %c8_40 = arith.constant 8 : index
    %c0_41 = arith.constant 0 : index
    %224 = vector.load %arg16[%c8_40, %c0_41] : memref<16x32xf32, #tpu.memory_space<vmem>>, vector<2x32xf32>
    tpu.vector_store %arg16[%c8_40, %c0_41], %223 {strides = array<i32>} : memref<16x32xf32, #tpu.memory_space<vmem>>, vector<2x32xf32>,
    %225 = vector.extract_strided_slice %84 {offsets = [8, 0], sizes = [2, 128], strides = [1, 1]} : vector<16x256xf32> to vector<2x128xf32>
    %226 = vector.extract_strided_slice %84 {offsets = [6, 128], sizes = [2, 128], strides = [1, 1]} : vector<16x256xf32> to vector<2x128xf32>
    %227 = tpu.concatenate %225, %226 in 1 : vector<2x128xf32>, vector<2x128xf32> -> vector<2x256xf32>
    %228 = arith.truncf %220 : vector<2x64xf32> to vector<2x64xbf16>
    %cst_42 = arith.constant dense<0.000000e+00> : vector<2x256xf32>
    %229 = tpu.matmul %228, %85, %cst_42 {dimension_numbers = #tpu.dot_dimension_numbers<[1], [0], [0], [1], [0, 0, 1, 1], [], []>} : vector<2x64xbf16>, vector<64x256xbf16>, vector<2x256xf32> -> vector<2x256xf32>
    %230 = arith.addf %229, %227 : vector<2x256xf32>
    %231 = arith.negf %230 : vector<2x256xf32>
    %232 = math.exp %231 : vector<2x256xf32>
    %cst_43 = arith.constant 1.000000e+00 : f32
    %233 = vector.broadcast %cst_43 : f32 to vector<2x256xf32>
    %234 = arith.addf %233, %232 : vector<2x256xf32>
    %235 = arith.divf %233, %234 : vector<2x256xf32>
    %236 = math.tanh %230 : vector<2x256xf32>
    %237 = vector.extract_strided_slice %235 {offsets = [0, 32], sizes = [2, 32], strides = [1, 1]} : vector<2x256xf32> to vector<2x32xf32>
    %238 = arith.mulf %237, %208 : vector<2x32xf32>
    %239 = vector.extract_strided_slice %235 {offsets = [0, 0], sizes = [2, 32], strides = [1, 1]} : vector<2x256xf32> to vector<2x32xf32>
    %240 = vector.extract_strided_slice %236 {offsets = [0, 64], sizes = [2, 32], strides = [1, 1]} : vector<2x256xf32> to vector<2x32xf32>
    %241 = arith.mulf %239, %240 : vector<2x32xf32>
    %242 = arith.addf %238, %241 : vector<2x32xf32>
    %243 = vector.extract_strided_slice %235 {offsets = [0, 160], sizes = [2, 32], strides = [1, 1]} : vector<2x256xf32> to vector<2x32xf32>
    %244 = arith.mulf %243, %214 : vector<2x32xf32>
    %245 = vector.extract_strided_slice %235 {offsets = [0, 128], sizes = [2, 32], strides = [1, 1]} : vector<2x256xf32> to vector<2x32xf32>
    %246 = vector.extract_strided_slice %236 {offsets = [0, 192], sizes = [2, 32], strides = [1, 1]} : vector<2x256xf32> to vector<2x32xf32>
    %247 = arith.mulf %245, %246 : vector<2x32xf32>
    %248 = arith.addf %244, %247 : vector<2x32xf32>
    %249 = vector.extract_strided_slice %235 {offsets = [0, 96], sizes = [2, 32], strides = [1, 1]} : vector<2x256xf32> to vector<2x32xf32>
    %250 = vector.extract_strided_slice %235 {offsets = [0, 224], sizes = [2, 32], strides = [1, 1]} : vector<2x256xf32> to vector<2x32xf32>
    %251 = tpu.concatenate %249, %250 in 1 : vector<2x32xf32>, vector<2x32xf32> -> vector<2x64xf32>
    %252 = tpu.concatenate %242, %248 in 1 : vector<2x32xf32>, vector<2x32xf32> -> vector<2x64xf32>
    %253 = math.tanh %252 : vector<2x64xf32>
    %254 = arith.mulf %251, %253 : vector<2x64xf32>
    %255 = vector.extract_strided_slice %254 {offsets = [0, 0], sizes = [2, 32], strides = [1, 1]} : vector<2x64xf32> to vector<2x32xf32>
    %c8_44 = arith.constant 8 : index
    %c0_45 = arith.constant 0 : index
    %256 = vector.load %arg15[%c8_44, %c0_45] : memref<16x32xf32, #tpu.memory_space<vmem>>, vector<2x32xf32>
    tpu.vector_store %arg15[%c8_44, %c0_45], %255 {strides = array<i32>} : memref<16x32xf32, #tpu.memory_space<vmem>>, vector<2x32xf32>,
    %257 = vector.extract_strided_slice %254 {offsets = [0, 32], sizes = [2, 32], strides = [1, 1]} : vector<2x64xf32> to vector<2x32xf32>
    %c6_46 = arith.constant 6 : index
    %c0_47 = arith.constant 0 : index
    %258 = vector.load %arg16[%c6_46, %c0_47] : memref<16x32xf32, #tpu.memory_space<vmem>>, vector<2x32xf32>
    tpu.vector_store %arg16[%c6_46, %c0_47], %257 {strides = array<i32>} : memref<16x32xf32, #tpu.memory_space<vmem>>, vector<2x32xf32>,
    %259 = vector.extract_strided_slice %84 {offsets = [10, 0], sizes = [2, 128], strides = [1, 1]} : vector<16x256xf32> to vector<2x128xf32>
    %260 = vector.extract_strided_slice %84 {offsets = [4, 128], sizes = [2, 128], strides = [1, 1]} : vector<16x256xf32> to vector<2x128xf32>
    %261 = tpu.concatenate %259, %260 in 1 : vector<2x128xf32>, vector<2x128xf32> -> vector<2x256xf32>
    %262 = arith.truncf %254 : vector<2x64xf32> to vector<2x64xbf16>
    %cst_48 = arith.constant dense<0.000000e+00> : vector<2x256xf32>
    %263 = tpu.matmul %262, %85, %cst_48 {dimension_numbers = #tpu.dot_dimension_numbers<[1], [0], [0], [1], [0, 0, 1, 1], [], []>} : vector<2x64xbf16>, vector<64x256xbf16>, vector<2x256xf32> -> vector<2x256xf32>
    %264 = arith.addf %263, %261 : vector<2x256xf32>
    %265 = arith.negf %264 : vector<2x256xf32>
    %266 = math.exp %265 : vector<2x256xf32>
    %cst_49 = arith.constant 1.000000e+00 : f32
    %267 = vector.broadcast %cst_49 : f32 to vector<2x256xf32>
    %268 = arith.addf %267, %266 : vector<2x256xf32>
    %269 = arith.divf %267, %268 : vector<2x256xf32>
    %270 = math.tanh %264 : vector<2x256xf32>
    %271 = vector.extract_strided_slice %269 {offsets = [0, 32], sizes = [2, 32], strides = [1, 1]} : vector<2x256xf32> to vector<2x32xf32>
    %272 = arith.mulf %271, %242 : vector<2x32xf32>
    %273 = vector.extract_strided_slice %269 {offsets = [0, 0], sizes = [2, 32], strides = [1, 1]} : vector<2x256xf32> to vector<2x32xf32>
    %274 = vector.extract_strided_slice %270 {offsets = [0, 64], sizes = [2, 32], strides = [1, 1]} : vector<2x256xf32> to vector<2x32xf32>
    %275 = arith.mulf %273, %274 : vector<2x32xf32>
    %276 = arith.addf %272, %275 : vector<2x32xf32>
    %277 = vector.extract_strided_slice %269 {offsets = [0, 160], sizes = [2, 32], strides = [1, 1]} : vector<2x256xf32> to vector<2x32xf32>
    %278 = arith.mulf %277, %248 : vector<2x32xf32>
    %279 = vector.extract_strided_slice %269 {offsets = [0, 128], sizes = [2, 32], strides = [1, 1]} : vector<2x256xf32> to vector<2x32xf32>
    %280 = vector.extract_strided_slice %270 {offsets = [0, 192], sizes = [2, 32], strides = [1, 1]} : vector<2x256xf32> to vector<2x32xf32>
    %281 = arith.mulf %279, %280 : vector<2x32xf32>
    %282 = arith.addf %278, %281 : vector<2x32xf32>
    %283 = vector.extract_strided_slice %269 {offsets = [0, 96], sizes = [2, 32], strides = [1, 1]} : vector<2x256xf32> to vector<2x32xf32>
    %284 = vector.extract_strided_slice %269 {offsets = [0, 224], sizes = [2, 32], strides = [1, 1]} : vector<2x256xf32> to vector<2x32xf32>
    %285 = tpu.concatenate %283, %284 in 1 : vector<2x32xf32>, vector<2x32xf32> -> vector<2x64xf32>
    %286 = tpu.concatenate %276, %282 in 1 : vector<2x32xf32>, vector<2x32xf32> -> vector<2x64xf32>
    %287 = math.tanh %286 : vector<2x64xf32>
    %288 = arith.mulf %285, %287 : vector<2x64xf32>
    %289 = vector.extract_strided_slice %288 {offsets = [0, 0], sizes = [2, 32], strides = [1, 1]} : vector<2x64xf32> to vector<2x32xf32>
    %c10_50 = arith.constant 10 : index
    %c0_51 = arith.constant 0 : index
    %290 = vector.load %arg15[%c10_50, %c0_51] : memref<16x32xf32, #tpu.memory_space<vmem>>, vector<2x32xf32>
    tpu.vector_store %arg15[%c10_50, %c0_51], %289 {strides = array<i32>} : memref<16x32xf32, #tpu.memory_space<vmem>>, vector<2x32xf32>,
    %291 = vector.extract_strided_slice %288 {offsets = [0, 32], sizes = [2, 32], strides = [1, 1]} : vector<2x64xf32> to vector<2x32xf32>
    %c4_52 = arith.constant 4 : index
    %c0_53 = arith.constant 0 : index
    %292 = vector.load %arg16[%c4_52, %c0_53] : memref<16x32xf32, #tpu.memory_space<vmem>>, vector<2x32xf32>
    tpu.vector_store %arg16[%c4_52, %c0_53], %291 {strides = array<i32>} : memref<16x32xf32, #tpu.memory_space<vmem>>, vector<2x32xf32>,
    %293 = vector.extract_strided_slice %84 {offsets = [12, 0], sizes = [2, 128], strides = [1, 1]} : vector<16x256xf32> to vector<2x128xf32>
    %294 = vector.extract_strided_slice %84 {offsets = [2, 128], sizes = [2, 128], strides = [1, 1]} : vector<16x256xf32> to vector<2x128xf32>
    %295 = tpu.concatenate %293, %294 in 1 : vector<2x128xf32>, vector<2x128xf32> -> vector<2x256xf32>
    %296 = arith.truncf %288 : vector<2x64xf32> to vector<2x64xbf16>
    %cst_54 = arith.constant dense<0.000000e+00> : vector<2x256xf32>
    %297 = tpu.matmul %296, %85, %cst_54 {dimension_numbers = #tpu.dot_dimension_numbers<[1], [0], [0], [1], [0, 0, 1, 1], [], []>} : vector<2x64xbf16>, vector<64x256xbf16>, vector<2x256xf32> -> vector<2x256xf32>
    %298 = arith.addf %297, %295 : vector<2x256xf32>
    %299 = arith.negf %298 : vector<2x256xf32>
    %300 = math.exp %299 : vector<2x256xf32>
    %cst_55 = arith.constant 1.000000e+00 : f32
    %301 = vector.broadcast %cst_55 : f32 to vector<2x256xf32>
    %302 = arith.addf %301, %300 : vector<2x256xf32>
    %303 = arith.divf %301, %302 : vector<2x256xf32>
    %304 = math.tanh %298 : vector<2x256xf32>
    %305 = vector.extract_strided_slice %303 {offsets = [0, 32], sizes = [2, 32], strides = [1, 1]} : vector<2x256xf32> to vector<2x32xf32>
    %306 = arith.mulf %305, %276 : vector<2x32xf32>
    %307 = vector.extract_strided_slice %303 {offsets = [0, 0], sizes = [2, 32], strides = [1, 1]} : vector<2x256xf32> to vector<2x32xf32>
    %308 = vector.extract_strided_slice %304 {offsets = [0, 64], sizes = [2, 32], strides = [1, 1]} : vector<2x256xf32> to vector<2x32xf32>
    %309 = arith.mulf %307, %308 : vector<2x32xf32>
    %310 = arith.addf %306, %309 : vector<2x32xf32>
    %311 = vector.extract_strided_slice %303 {offsets = [0, 160], sizes = [2, 32], strides = [1, 1]} : vector<2x256xf32> to vector<2x32xf32>
    %312 = arith.mulf %311, %282 : vector<2x32xf32>
    %313 = vector.extract_strided_slice %303 {offsets = [0, 128], sizes = [2, 32], strides = [1, 1]} : vector<2x256xf32> to vector<2x32xf32>
    %314 = vector.extract_strided_slice %304 {offsets = [0, 192], sizes = [2, 32], strides = [1, 1]} : vector<2x256xf32> to vector<2x32xf32>
    %315 = arith.mulf %313, %314 : vector<2x32xf32>
    %316 = arith.addf %312, %315 : vector<2x32xf32>
    %317 = vector.extract_strided_slice %303 {offsets = [0, 96], sizes = [2, 32], strides = [1, 1]} : vector<2x256xf32> to vector<2x32xf32>
    %318 = vector.extract_strided_slice %303 {offsets = [0, 224], sizes = [2, 32], strides = [1, 1]} : vector<2x256xf32> to vector<2x32xf32>
    %319 = tpu.concatenate %317, %318 in 1 : vector<2x32xf32>, vector<2x32xf32> -> vector<2x64xf32>
    %320 = tpu.concatenate %310, %316 in 1 : vector<2x32xf32>, vector<2x32xf32> -> vector<2x64xf32>
    %321 = math.tanh %320 : vector<2x64xf32>
    %322 = arith.mulf %319, %321 : vector<2x64xf32>
    %323 = vector.extract_strided_slice %322 {offsets = [0, 0], sizes = [2, 32], strides = [1, 1]} : vector<2x64xf32> to vector<2x32xf32>
    %c12_56 = arith.constant 12 : index
    %c0_57 = arith.constant 0 : index
    %324 = vector.load %arg15[%c12_56, %c0_57] : memref<16x32xf32, #tpu.memory_space<vmem>>, vector<2x32xf32>
    tpu.vector_store %arg15[%c12_56, %c0_57], %323 {strides = array<i32>} : memref<16x32xf32, #tpu.memory_space<vmem>>, vector<2x32xf32>,
    %325 = vector.extract_strided_slice %322 {offsets = [0, 32], sizes = [2, 32], strides = [1, 1]} : vector<2x64xf32> to vector<2x32xf32>
    %c2_58 = arith.constant 2 : index
    %c0_59 = arith.constant 0 : index
    %326 = vector.load %arg16[%c2_58, %c0_59] : memref<16x32xf32, #tpu.memory_space<vmem>>, vector<2x32xf32>
    tpu.vector_store %arg16[%c2_58, %c0_59], %325 {strides = array<i32>} : memref<16x32xf32, #tpu.memory_space<vmem>>, vector<2x32xf32>,
    %327 = vector.extract_strided_slice %84 {offsets = [14, 0], sizes = [2, 128], strides = [1, 1]} : vector<16x256xf32> to vector<2x128xf32>
    %328 = vector.extract_strided_slice %84 {offsets = [0, 128], sizes = [2, 128], strides = [1, 1]} : vector<16x256xf32> to vector<2x128xf32>
    %329 = tpu.concatenate %327, %328 in 1 : vector<2x128xf32>, vector<2x128xf32> -> vector<2x256xf32>
    %330 = arith.truncf %322 : vector<2x64xf32> to vector<2x64xbf16>
    %cst_60 = arith.constant dense<0.000000e+00> : vector<2x256xf32>
    %331 = tpu.matmul %330, %85, %cst_60 {dimension_numbers = #tpu.dot_dimension_numbers<[1], [0], [0], [1], [0, 0, 1, 1], [], []>} : vector<2x64xbf16>, vector<64x256xbf16>, vector<2x256xf32> -> vector<2x256xf32>
    %332 = arith.addf %331, %329 : vector<2x256xf32>
    %333 = arith.negf %332 : vector<2x256xf32>
    %334 = math.exp %333 : vector<2x256xf32>
    %cst_61 = arith.constant 1.000000e+00 : f32
    %335 = vector.broadcast %cst_61 : f32 to vector<2x256xf32>
    %336 = arith.addf %335, %334 : vector<2x256xf32>
    %337 = arith.divf %335, %336 : vector<2x256xf32>
    %338 = math.tanh %332 : vector<2x256xf32>
    %339 = vector.extract_strided_slice %337 {offsets = [0, 32], sizes = [2, 32], strides = [1, 1]} : vector<2x256xf32> to vector<2x32xf32>
    %340 = arith.mulf %339, %310 : vector<2x32xf32>
    %341 = vector.extract_strided_slice %337 {offsets = [0, 0], sizes = [2, 32], strides = [1, 1]} : vector<2x256xf32> to vector<2x32xf32>
    %342 = vector.extract_strided_slice %338 {offsets = [0, 64], sizes = [2, 32], strides = [1, 1]} : vector<2x256xf32> to vector<2x32xf32>
    %343 = arith.mulf %341, %342 : vector<2x32xf32>
    %344 = arith.addf %340, %343 : vector<2x32xf32>
    %345 = vector.extract_strided_slice %337 {offsets = [0, 160], sizes = [2, 32], strides = [1, 1]} : vector<2x256xf32> to vector<2x32xf32>
    %346 = arith.mulf %345, %316 : vector<2x32xf32>
    %347 = vector.extract_strided_slice %337 {offsets = [0, 128], sizes = [2, 32], strides = [1, 1]} : vector<2x256xf32> to vector<2x32xf32>
    %348 = vector.extract_strided_slice %338 {offsets = [0, 192], sizes = [2, 32], strides = [1, 1]} : vector<2x256xf32> to vector<2x32xf32>
    %349 = arith.mulf %347, %348 : vector<2x32xf32>
    %350 = arith.addf %346, %349 : vector<2x32xf32>
    %351 = vector.extract_strided_slice %337 {offsets = [0, 96], sizes = [2, 32], strides = [1, 1]} : vector<2x256xf32> to vector<2x32xf32>
    %352 = vector.extract_strided_slice %337 {offsets = [0, 224], sizes = [2, 32], strides = [1, 1]} : vector<2x256xf32> to vector<2x32xf32>
    %353 = tpu.concatenate %351, %352 in 1 : vector<2x32xf32>, vector<2x32xf32> -> vector<2x64xf32>
    %354 = tpu.concatenate %344, %350 in 1 : vector<2x32xf32>, vector<2x32xf32> -> vector<2x64xf32>
    %355 = math.tanh %354 : vector<2x64xf32>
    %356 = arith.mulf %353, %355 : vector<2x64xf32>
    %357 = vector.extract_strided_slice %356 {offsets = [0, 0], sizes = [2, 32], strides = [1, 1]} : vector<2x64xf32> to vector<2x32xf32>
    %c14_62 = arith.constant 14 : index
    %c0_63 = arith.constant 0 : index
    %358 = vector.load %arg15[%c14_62, %c0_63] : memref<16x32xf32, #tpu.memory_space<vmem>>, vector<2x32xf32>
    tpu.vector_store %arg15[%c14_62, %c0_63], %357 {strides = array<i32>} : memref<16x32xf32, #tpu.memory_space<vmem>>, vector<2x32xf32>,
    %359 = vector.extract_strided_slice %356 {offsets = [0, 32], sizes = [2, 32], strides = [1, 1]} : vector<2x64xf32> to vector<2x32xf32>
    %c0_64 = arith.constant 0 : index
    %c0_65 = arith.constant 0 : index
    %360 = vector.load %arg16[%c0_64, %c0_65] : memref<16x32xf32, #tpu.memory_space<vmem>>, vector<2x32xf32>
    tpu.vector_store %arg16[%c0_64, %c0_65], %359 {strides = array<i32>} : memref<16x32xf32, #tpu.memory_space<vmem>>, vector<2x32xf32>,
    %c0_66 = arith.constant 0 : index
    %c0_67 = arith.constant 0 : index
    %361 = vector.load %arg15[%c0_66, %c0_67] : memref<16x32xf32, #tpu.memory_space<vmem>>, vector<16x32xf32>
    %c0_68 = arith.constant 0 : index
    %c0_69 = arith.constant 0 : index
    %362 = vector.load %arg16[%c0_68, %c0_69] : memref<16x32xf32, #tpu.memory_space<vmem>>, vector<16x32xf32>
    %363 = tpu.concatenate %361, %362 in 1 : vector<16x32xf32>, vector<16x32xf32> -> vector<16x64xf32>
    %364 = arith.truncf %363 : vector<16x64xf32> to vector<16x64xbf16>
    %c0_70 = arith.constant 0 : index
    %c0_71 = arith.constant 0 : index
    %365 = vector.load %arg9[%c0_70, %c0_71] : memref<64x256xbf16, #tpu.memory_space<vmem>>, vector<64x256xbf16>
    %cst_72 = arith.constant dense<0.000000e+00> : vector<16x256xf32>
    %366 = tpu.matmul %364, %365, %cst_72 {dimension_numbers = #tpu.dot_dimension_numbers<[1], [0], [0], [1], [0, 0, 1, 1], [], []>} : vector<16x64xbf16>, vector<64x256xbf16>, vector<16x256xf32> -> vector<16x256xf32>
    %c0_73 = arith.constant 0 : index
    %c0_74 = arith.constant 0 : index
    %367 = vector.load %arg10[%c0_73, %c0_74] : memref<1x256xf32, #tpu.memory_space<vmem>>, vector<1x256xf32>
    %368 = vector.broadcast %367 : vector<1x256xf32> to vector<16x256xf32>
    %369 = arith.addf %366, %368 : vector<16x256xf32>
    %c0_75 = arith.constant 0 : index
    %c0_76 = arith.constant 0 : index
    %370 = vector.load %arg11[%c0_75, %c0_76] : memref<64x256xbf16, #tpu.memory_space<vmem>>, vector<64x256xbf16>
    %cst_77 = arith.constant 0.000000e+00 : f32
    %371 = vector.broadcast %cst_77 : f32 to vector<2x64xf32>
    %cst_78 = arith.constant 0.000000e+00 : f32
    %372 = vector.broadcast %cst_78 : f32 to vector<2x32xf32>
    %cst_79 = arith.constant 0.000000e+00 : f32
    %373 = vector.broadcast %cst_79 : f32 to vector<2x32xf32>
    %374 = vector.extract_strided_slice %369 {offsets = [0, 0], sizes = [2, 128], strides = [1, 1]} : vector<16x256xf32> to vector<2x128xf32>
    %375 = vector.extract_strided_slice %369 {offsets = [14, 128], sizes = [2, 128], strides = [1, 1]} : vector<16x256xf32> to vector<2x128xf32>
    %376 = tpu.concatenate %374, %375 in 1 : vector<2x128xf32>, vector<2x128xf32> -> vector<2x256xf32>
    %377 = arith.truncf %371 : vector<2x64xf32> to vector<2x64xbf16>
    %cst_80 = arith.constant dense<0.000000e+00> : vector<2x256xf32>
    %378 = tpu.matmul %377, %370, %cst_80 {dimension_numbers = #tpu.dot_dimension_numbers<[1], [0], [0], [1], [0, 0, 1, 1], [], []>} : vector<2x64xbf16>, vector<64x256xbf16>, vector<2x256xf32> -> vector<2x256xf32>
    %379 = arith.addf %378, %376 : vector<2x256xf32>
    %380 = arith.negf %379 : vector<2x256xf32>
    %381 = math.exp %380 : vector<2x256xf32>
    %cst_81 = arith.constant 1.000000e+00 : f32
    %382 = vector.broadcast %cst_81 : f32 to vector<2x256xf32>
    %383 = arith.addf %382, %381 : vector<2x256xf32>
    %384 = arith.divf %382, %383 : vector<2x256xf32>
    %385 = math.tanh %379 : vector<2x256xf32>
    %386 = vector.extract_strided_slice %384 {offsets = [0, 32], sizes = [2, 32], strides = [1, 1]} : vector<2x256xf32> to vector<2x32xf32>
    %387 = arith.mulf %386, %372 : vector<2x32xf32>
    %388 = vector.extract_strided_slice %384 {offsets = [0, 0], sizes = [2, 32], strides = [1, 1]} : vector<2x256xf32> to vector<2x32xf32>
    %389 = vector.extract_strided_slice %385 {offsets = [0, 64], sizes = [2, 32], strides = [1, 1]} : vector<2x256xf32> to vector<2x32xf32>
    %390 = arith.mulf %388, %389 : vector<2x32xf32>
    %391 = arith.addf %387, %390 : vector<2x32xf32>
    %392 = vector.extract_strided_slice %384 {offsets = [0, 160], sizes = [2, 32], strides = [1, 1]} : vector<2x256xf32> to vector<2x32xf32>
    %393 = arith.mulf %392, %373 : vector<2x32xf32>
    %394 = vector.extract_strided_slice %384 {offsets = [0, 128], sizes = [2, 32], strides = [1, 1]} : vector<2x256xf32> to vector<2x32xf32>
    %395 = vector.extract_strided_slice %385 {offsets = [0, 192], sizes = [2, 32], strides = [1, 1]} : vector<2x256xf32> to vector<2x32xf32>
    %396 = arith.mulf %394, %395 : vector<2x32xf32>
    %397 = arith.addf %393, %396 : vector<2x32xf32>
    %398 = vector.extract_strided_slice %384 {offsets = [0, 96], sizes = [2, 32], strides = [1, 1]} : vector<2x256xf32> to vector<2x32xf32>
    %399 = vector.extract_strided_slice %384 {offsets = [0, 224], sizes = [2, 32], strides = [1, 1]} : vector<2x256xf32> to vector<2x32xf32>
    %400 = tpu.concatenate %398, %399 in 1 : vector<2x32xf32>, vector<2x32xf32> -> vector<2x64xf32>
    %401 = tpu.concatenate %391, %397 in 1 : vector<2x32xf32>, vector<2x32xf32> -> vector<2x64xf32>
    %402 = math.tanh %401 : vector<2x64xf32>
    %403 = arith.mulf %400, %402 : vector<2x64xf32>
    %404 = vector.extract_strided_slice %403 {offsets = [0, 0], sizes = [2, 32], strides = [1, 1]} : vector<2x64xf32> to vector<2x32xf32>
    %c0_82 = arith.constant 0 : index
    %c0_83 = arith.constant 0 : index
    %405 = vector.load %arg15[%c0_82, %c0_83] : memref<16x32xf32, #tpu.memory_space<vmem>>, vector<2x32xf32>
    tpu.vector_store %arg15[%c0_82, %c0_83], %404 {strides = array<i32>} : memref<16x32xf32, #tpu.memory_space<vmem>>, vector<2x32xf32>,
    %406 = vector.extract_strided_slice %403 {offsets = [0, 32], sizes = [2, 32], strides = [1, 1]} : vector<2x64xf32> to vector<2x32xf32>
    %c14_84 = arith.constant 14 : index
    %c0_85 = arith.constant 0 : index
    %407 = vector.load %arg16[%c14_84, %c0_85] : memref<16x32xf32, #tpu.memory_space<vmem>>, vector<2x32xf32>
    tpu.vector_store %arg16[%c14_84, %c0_85], %406 {strides = array<i32>} : memref<16x32xf32, #tpu.memory_space<vmem>>, vector<2x32xf32>,
    %408 = vector.extract_strided_slice %369 {offsets = [2, 0], sizes = [2, 128], strides = [1, 1]} : vector<16x256xf32> to vector<2x128xf32>
    %409 = vector.extract_strided_slice %369 {offsets = [12, 128], sizes = [2, 128], strides = [1, 1]} : vector<16x256xf32> to vector<2x128xf32>
    %410 = tpu.concatenate %408, %409 in 1 : vector<2x128xf32>, vector<2x128xf32> -> vector<2x256xf32>
    %411 = arith.truncf %403 : vector<2x64xf32> to vector<2x64xbf16>
    %cst_86 = arith.constant dense<0.000000e+00> : vector<2x256xf32>
    %412 = tpu.matmul %411, %370, %cst_86 {dimension_numbers = #tpu.dot_dimension_numbers<[1], [0], [0], [1], [0, 0, 1, 1], [], []>} : vector<2x64xbf16>, vector<64x256xbf16>, vector<2x256xf32> -> vector<2x256xf32>
    %413 = arith.addf %412, %410 : vector<2x256xf32>
    %414 = arith.negf %413 : vector<2x256xf32>
    %415 = math.exp %414 : vector<2x256xf32>
    %cst_87 = arith.constant 1.000000e+00 : f32
    %416 = vector.broadcast %cst_87 : f32 to vector<2x256xf32>
    %417 = arith.addf %416, %415 : vector<2x256xf32>
    %418 = arith.divf %416, %417 : vector<2x256xf32>
    %419 = math.tanh %413 : vector<2x256xf32>
    %420 = vector.extract_strided_slice %418 {offsets = [0, 32], sizes = [2, 32], strides = [1, 1]} : vector<2x256xf32> to vector<2x32xf32>
    %421 = arith.mulf %420, %391 : vector<2x32xf32>
    %422 = vector.extract_strided_slice %418 {offsets = [0, 0], sizes = [2, 32], strides = [1, 1]} : vector<2x256xf32> to vector<2x32xf32>
    %423 = vector.extract_strided_slice %419 {offsets = [0, 64], sizes = [2, 32], strides = [1, 1]} : vector<2x256xf32> to vector<2x32xf32>
    %424 = arith.mulf %422, %423 : vector<2x32xf32>
    %425 = arith.addf %421, %424 : vector<2x32xf32>
    %426 = vector.extract_strided_slice %418 {offsets = [0, 160], sizes = [2, 32], strides = [1, 1]} : vector<2x256xf32> to vector<2x32xf32>
    %427 = arith.mulf %426, %397 : vector<2x32xf32>
    %428 = vector.extract_strided_slice %418 {offsets = [0, 128], sizes = [2, 32], strides = [1, 1]} : vector<2x256xf32> to vector<2x32xf32>
    %429 = vector.extract_strided_slice %419 {offsets = [0, 192], sizes = [2, 32], strides = [1, 1]} : vector<2x256xf32> to vector<2x32xf32>
    %430 = arith.mulf %428, %429 : vector<2x32xf32>
    %431 = arith.addf %427, %430 : vector<2x32xf32>
    %432 = vector.extract_strided_slice %418 {offsets = [0, 96], sizes = [2, 32], strides = [1, 1]} : vector<2x256xf32> to vector<2x32xf32>
    %433 = vector.extract_strided_slice %418 {offsets = [0, 224], sizes = [2, 32], strides = [1, 1]} : vector<2x256xf32> to vector<2x32xf32>
    %434 = tpu.concatenate %432, %433 in 1 : vector<2x32xf32>, vector<2x32xf32> -> vector<2x64xf32>
    %435 = tpu.concatenate %425, %431 in 1 : vector<2x32xf32>, vector<2x32xf32> -> vector<2x64xf32>
    %436 = math.tanh %435 : vector<2x64xf32>
    %437 = arith.mulf %434, %436 : vector<2x64xf32>
    %438 = vector.extract_strided_slice %437 {offsets = [0, 0], sizes = [2, 32], strides = [1, 1]} : vector<2x64xf32> to vector<2x32xf32>
    %c2_88 = arith.constant 2 : index
    %c0_89 = arith.constant 0 : index
    %439 = vector.load %arg15[%c2_88, %c0_89] : memref<16x32xf32, #tpu.memory_space<vmem>>, vector<2x32xf32>
    tpu.vector_store %arg15[%c2_88, %c0_89], %438 {strides = array<i32>} : memref<16x32xf32, #tpu.memory_space<vmem>>, vector<2x32xf32>,
    %440 = vector.extract_strided_slice %437 {offsets = [0, 32], sizes = [2, 32], strides = [1, 1]} : vector<2x64xf32> to vector<2x32xf32>
    %c12_90 = arith.constant 12 : index
    %c0_91 = arith.constant 0 : index
    %441 = vector.load %arg16[%c12_90, %c0_91] : memref<16x32xf32, #tpu.memory_space<vmem>>, vector<2x32xf32>
    tpu.vector_store %arg16[%c12_90, %c0_91], %440 {strides = array<i32>} : memref<16x32xf32, #tpu.memory_space<vmem>>, vector<2x32xf32>,
    %442 = vector.extract_strided_slice %369 {offsets = [4, 0], sizes = [2, 128], strides = [1, 1]} : vector<16x256xf32> to vector<2x128xf32>
    %443 = vector.extract_strided_slice %369 {offsets = [10, 128], sizes = [2, 128], strides = [1, 1]} : vector<16x256xf32> to vector<2x128xf32>
    %444 = tpu.concatenate %442, %443 in 1 : vector<2x128xf32>, vector<2x128xf32> -> vector<2x256xf32>
    %445 = arith.truncf %437 : vector<2x64xf32> to vector<2x64xbf16>
    %cst_92 = arith.constant dense<0.000000e+00> : vector<2x256xf32>
    %446 = tpu.matmul %445, %370, %cst_92 {dimension_numbers = #tpu.dot_dimension_numbers<[1], [0], [0], [1], [0, 0, 1, 1], [], []>} : vector<2x64xbf16>, vector<64x256xbf16>, vector<2x256xf32> -> vector<2x256xf32>
    %447 = arith.addf %446, %444 : vector<2x256xf32>
    %448 = arith.negf %447 : vector<2x256xf32>
    %449 = math.exp %448 : vector<2x256xf32>
    %cst_93 = arith.constant 1.000000e+00 : f32
    %450 = vector.broadcast %cst_93 : f32 to vector<2x256xf32>
    %451 = arith.addf %450, %449 : vector<2x256xf32>
    %452 = arith.divf %450, %451 : vector<2x256xf32>
    %453 = math.tanh %447 : vector<2x256xf32>
    %454 = vector.extract_strided_slice %452 {offsets = [0, 32], sizes = [2, 32], strides = [1, 1]} : vector<2x256xf32> to vector<2x32xf32>
    %455 = arith.mulf %454, %425 : vector<2x32xf32>
    %456 = vector.extract_strided_slice %452 {offsets = [0, 0], sizes = [2, 32], strides = [1, 1]} : vector<2x256xf32> to vector<2x32xf32>
    %457 = vector.extract_strided_slice %453 {offsets = [0, 64], sizes = [2, 32], strides = [1, 1]} : vector<2x256xf32> to vector<2x32xf32>
    %458 = arith.mulf %456, %457 : vector<2x32xf32>
    %459 = arith.addf %455, %458 : vector<2x32xf32>
    %460 = vector.extract_strided_slice %452 {offsets = [0, 160], sizes = [2, 32], strides = [1, 1]} : vector<2x256xf32> to vector<2x32xf32>
    %461 = arith.mulf %460, %431 : vector<2x32xf32>
    %462 = vector.extract_strided_slice %452 {offsets = [0, 128], sizes = [2, 32], strides = [1, 1]} : vector<2x256xf32> to vector<2x32xf32>
    %463 = vector.extract_strided_slice %453 {offsets = [0, 192], sizes = [2, 32], strides = [1, 1]} : vector<2x256xf32> to vector<2x32xf32>
    %464 = arith.mulf %462, %463 : vector<2x32xf32>
    %465 = arith.addf %461, %464 : vector<2x32xf32>
    %466 = vector.extract_strided_slice %452 {offsets = [0, 96], sizes = [2, 32], strides = [1, 1]} : vector<2x256xf32> to vector<2x32xf32>
    %467 = vector.extract_strided_slice %452 {offsets = [0, 224], sizes = [2, 32], strides = [1, 1]} : vector<2x256xf32> to vector<2x32xf32>
    %468 = tpu.concatenate %466, %467 in 1 : vector<2x32xf32>, vector<2x32xf32> -> vector<2x64xf32>
    %469 = tpu.concatenate %459, %465 in 1 : vector<2x32xf32>, vector<2x32xf32> -> vector<2x64xf32>
    %470 = math.tanh %469 : vector<2x64xf32>
    %471 = arith.mulf %468, %470 : vector<2x64xf32>
    %472 = vector.extract_strided_slice %471 {offsets = [0, 0], sizes = [2, 32], strides = [1, 1]} : vector<2x64xf32> to vector<2x32xf32>
    %c4_94 = arith.constant 4 : index
    %c0_95 = arith.constant 0 : index
    %473 = vector.load %arg15[%c4_94, %c0_95] : memref<16x32xf32, #tpu.memory_space<vmem>>, vector<2x32xf32>
    tpu.vector_store %arg15[%c4_94, %c0_95], %472 {strides = array<i32>} : memref<16x32xf32, #tpu.memory_space<vmem>>, vector<2x32xf32>,
    %474 = vector.extract_strided_slice %471 {offsets = [0, 32], sizes = [2, 32], strides = [1, 1]} : vector<2x64xf32> to vector<2x32xf32>
    %c10_96 = arith.constant 10 : index
    %c0_97 = arith.constant 0 : index
    %475 = vector.load %arg16[%c10_96, %c0_97] : memref<16x32xf32, #tpu.memory_space<vmem>>, vector<2x32xf32>
    tpu.vector_store %arg16[%c10_96, %c0_97], %474 {strides = array<i32>} : memref<16x32xf32, #tpu.memory_space<vmem>>, vector<2x32xf32>,
    %476 = vector.extract_strided_slice %369 {offsets = [6, 0], sizes = [2, 128], strides = [1, 1]} : vector<16x256xf32> to vector<2x128xf32>
    %477 = vector.extract_strided_slice %369 {offsets = [8, 128], sizes = [2, 128], strides = [1, 1]} : vector<16x256xf32> to vector<2x128xf32>
    %478 = tpu.concatenate %476, %477 in 1 : vector<2x128xf32>, vector<2x128xf32> -> vector<2x256xf32>
    %479 = arith.truncf %471 : vector<2x64xf32> to vector<2x64xbf16>
    %cst_98 = arith.constant dense<0.000000e+00> : vector<2x256xf32>
    %480 = tpu.matmul %479, %370, %cst_98 {dimension_numbers = #tpu.dot_dimension_numbers<[1], [0], [0], [1], [0, 0, 1, 1], [], []>} : vector<2x64xbf16>, vector<64x256xbf16>, vector<2x256xf32> -> vector<2x256xf32>
    %481 = arith.addf %480, %478 : vector<2x256xf32>
    %482 = arith.negf %481 : vector<2x256xf32>
    %483 = math.exp %482 : vector<2x256xf32>
    %cst_99 = arith.constant 1.000000e+00 : f32
    %484 = vector.broadcast %cst_99 : f32 to vector<2x256xf32>
    %485 = arith.addf %484, %483 : vector<2x256xf32>
    %486 = arith.divf %484, %485 : vector<2x256xf32>
    %487 = math.tanh %481 : vector<2x256xf32>
    %488 = vector.extract_strided_slice %486 {offsets = [0, 32], sizes = [2, 32], strides = [1, 1]} : vector<2x256xf32> to vector<2x32xf32>
    %489 = arith.mulf %488, %459 : vector<2x32xf32>
    %490 = vector.extract_strided_slice %486 {offsets = [0, 0], sizes = [2, 32], strides = [1, 1]} : vector<2x256xf32> to vector<2x32xf32>
    %491 = vector.extract_strided_slice %487 {offsets = [0, 64], sizes = [2, 32], strides = [1, 1]} : vector<2x256xf32> to vector<2x32xf32>
    %492 = arith.mulf %490, %491 : vector<2x32xf32>
    %493 = arith.addf %489, %492 : vector<2x32xf32>
    %494 = vector.extract_strided_slice %486 {offsets = [0, 160], sizes = [2, 32], strides = [1, 1]} : vector<2x256xf32> to vector<2x32xf32>
    %495 = arith.mulf %494, %465 : vector<2x32xf32>
    %496 = vector.extract_strided_slice %486 {offsets = [0, 128], sizes = [2, 32], strides = [1, 1]} : vector<2x256xf32> to vector<2x32xf32>
    %497 = vector.extract_strided_slice %487 {offsets = [0, 192], sizes = [2, 32], strides = [1, 1]} : vector<2x256xf32> to vector<2x32xf32>
    %498 = arith.mulf %496, %497 : vector<2x32xf32>
    %499 = arith.addf %495, %498 : vector<2x32xf32>
    %500 = vector.extract_strided_slice %486 {offsets = [0, 96], sizes = [2, 32], strides = [1, 1]} : vector<2x256xf32> to vector<2x32xf32>
    %501 = vector.extract_strided_slice %486 {offsets = [0, 224], sizes = [2, 32], strides = [1, 1]} : vector<2x256xf32> to vector<2x32xf32>
    %502 = tpu.concatenate %500, %501 in 1 : vector<2x32xf32>, vector<2x32xf32> -> vector<2x64xf32>
    %503 = tpu.concatenate %493, %499 in 1 : vector<2x32xf32>, vector<2x32xf32> -> vector<2x64xf32>
    %504 = math.tanh %503 : vector<2x64xf32>
    %505 = arith.mulf %502, %504 : vector<2x64xf32>
    %506 = vector.extract_strided_slice %505 {offsets = [0, 0], sizes = [2, 32], strides = [1, 1]} : vector<2x64xf32> to vector<2x32xf32>
    %c6_100 = arith.constant 6 : index
    %c0_101 = arith.constant 0 : index
    %507 = vector.load %arg15[%c6_100, %c0_101] : memref<16x32xf32, #tpu.memory_space<vmem>>, vector<2x32xf32>
    tpu.vector_store %arg15[%c6_100, %c0_101], %506 {strides = array<i32>} : memref<16x32xf32, #tpu.memory_space<vmem>>, vector<2x32xf32>,
    %508 = vector.extract_strided_slice %505 {offsets = [0, 32], sizes = [2, 32], strides = [1, 1]} : vector<2x64xf32> to vector<2x32xf32>
    %c8_102 = arith.constant 8 : index
    %c0_103 = arith.constant 0 : index
    %509 = vector.load %arg16[%c8_102, %c0_103] : memref<16x32xf32, #tpu.memory_space<vmem>>, vector<2x32xf32>
    tpu.vector_store %arg16[%c8_102, %c0_103], %508 {strides = array<i32>} : memref<16x32xf32, #tpu.memory_space<vmem>>, vector<2x32xf32>,
    %510 = vector.extract_strided_slice %369 {offsets = [8, 0], sizes = [2, 128], strides = [1, 1]} : vector<16x256xf32> to vector<2x128xf32>
    %511 = vector.extract_strided_slice %369 {offsets = [6, 128], sizes = [2, 128], strides = [1, 1]} : vector<16x256xf32> to vector<2x128xf32>
    %512 = tpu.concatenate %510, %511 in 1 : vector<2x128xf32>, vector<2x128xf32> -> vector<2x256xf32>
    %513 = arith.truncf %505 : vector<2x64xf32> to vector<2x64xbf16>
    %cst_104 = arith.constant dense<0.000000e+00> : vector<2x256xf32>
    %514 = tpu.matmul %513, %370, %cst_104 {dimension_numbers = #tpu.dot_dimension_numbers<[1], [0], [0], [1], [0, 0, 1, 1], [], []>} : vector<2x64xbf16>, vector<64x256xbf16>, vector<2x256xf32> -> vector<2x256xf32>
    %515 = arith.addf %514, %512 : vector<2x256xf32>
    %516 = arith.negf %515 : vector<2x256xf32>
    %517 = math.exp %516 : vector<2x256xf32>
    %cst_105 = arith.constant 1.000000e+00 : f32
    %518 = vector.broadcast %cst_105 : f32 to vector<2x256xf32>
    %519 = arith.addf %518, %517 : vector<2x256xf32>
    %520 = arith.divf %518, %519 : vector<2x256xf32>
    %521 = math.tanh %515 : vector<2x256xf32>
    %522 = vector.extract_strided_slice %520 {offsets = [0, 32], sizes = [2, 32], strides = [1, 1]} : vector<2x256xf32> to vector<2x32xf32>
    %523 = arith.mulf %522, %493 : vector<2x32xf32>
    %524 = vector.extract_strided_slice %520 {offsets = [0, 0], sizes = [2, 32], strides = [1, 1]} : vector<2x256xf32> to vector<2x32xf32>
    %525 = vector.extract_strided_slice %521 {offsets = [0, 64], sizes = [2, 32], strides = [1, 1]} : vector<2x256xf32> to vector<2x32xf32>
    %526 = arith.mulf %524, %525 : vector<2x32xf32>
    %527 = arith.addf %523, %526 : vector<2x32xf32>
    %528 = vector.extract_strided_slice %520 {offsets = [0, 160], sizes = [2, 32], strides = [1, 1]} : vector<2x256xf32> to vector<2x32xf32>
    %529 = arith.mulf %528, %499 : vector<2x32xf32>
    %530 = vector.extract_strided_slice %520 {offsets = [0, 128], sizes = [2, 32], strides = [1, 1]} : vector<2x256xf32> to vector<2x32xf32>
    %531 = vector.extract_strided_slice %521 {offsets = [0, 192], sizes = [2, 32], strides = [1, 1]} : vector<2x256xf32> to vector<2x32xf32>
    %532 = arith.mulf %530, %531 : vector<2x32xf32>
    %533 = arith.addf %529, %532 : vector<2x32xf32>
    %534 = vector.extract_strided_slice %520 {offsets = [0, 96], sizes = [2, 32], strides = [1, 1]} : vector<2x256xf32> to vector<2x32xf32>
    %535 = vector.extract_strided_slice %520 {offsets = [0, 224], sizes = [2, 32], strides = [1, 1]} : vector<2x256xf32> to vector<2x32xf32>
    %536 = tpu.concatenate %534, %535 in 1 : vector<2x32xf32>, vector<2x32xf32> -> vector<2x64xf32>
    %537 = tpu.concatenate %527, %533 in 1 : vector<2x32xf32>, vector<2x32xf32> -> vector<2x64xf32>
    %538 = math.tanh %537 : vector<2x64xf32>
    %539 = arith.mulf %536, %538 : vector<2x64xf32>
    %540 = vector.extract_strided_slice %539 {offsets = [0, 0], sizes = [2, 32], strides = [1, 1]} : vector<2x64xf32> to vector<2x32xf32>
    %c8_106 = arith.constant 8 : index
    %c0_107 = arith.constant 0 : index
    %541 = vector.load %arg15[%c8_106, %c0_107] : memref<16x32xf32, #tpu.memory_space<vmem>>, vector<2x32xf32>
    tpu.vector_store %arg15[%c8_106, %c0_107], %540 {strides = array<i32>} : memref<16x32xf32, #tpu.memory_space<vmem>>, vector<2x32xf32>,
    %542 = vector.extract_strided_slice %539 {offsets = [0, 32], sizes = [2, 32], strides = [1, 1]} : vector<2x64xf32> to vector<2x32xf32>
    %c6_108 = arith.constant 6 : index
    %c0_109 = arith.constant 0 : index
    %543 = vector.load %arg16[%c6_108, %c0_109] : memref<16x32xf32, #tpu.memory_space<vmem>>, vector<2x32xf32>
    tpu.vector_store %arg16[%c6_108, %c0_109], %542 {strides = array<i32>} : memref<16x32xf32, #tpu.memory_space<vmem>>, vector<2x32xf32>,
    %544 = vector.extract_strided_slice %369 {offsets = [10, 0], sizes = [2, 128], strides = [1, 1]} : vector<16x256xf32> to vector<2x128xf32>
    %545 = vector.extract_strided_slice %369 {offsets = [4, 128], sizes = [2, 128], strides = [1, 1]} : vector<16x256xf32> to vector<2x128xf32>
    %546 = tpu.concatenate %544, %545 in 1 : vector<2x128xf32>, vector<2x128xf32> -> vector<2x256xf32>
    %547 = arith.truncf %539 : vector<2x64xf32> to vector<2x64xbf16>
    %cst_110 = arith.constant dense<0.000000e+00> : vector<2x256xf32>
    %548 = tpu.matmul %547, %370, %cst_110 {dimension_numbers = #tpu.dot_dimension_numbers<[1], [0], [0], [1], [0, 0, 1, 1], [], []>} : vector<2x64xbf16>, vector<64x256xbf16>, vector<2x256xf32> -> vector<2x256xf32>
    %549 = arith.addf %548, %546 : vector<2x256xf32>
    %550 = arith.negf %549 : vector<2x256xf32>
    %551 = math.exp %550 : vector<2x256xf32>
    %cst_111 = arith.constant 1.000000e+00 : f32
    %552 = vector.broadcast %cst_111 : f32 to vector<2x256xf32>
    %553 = arith.addf %552, %551 : vector<2x256xf32>
    %554 = arith.divf %552, %553 : vector<2x256xf32>
    %555 = math.tanh %549 : vector<2x256xf32>
    %556 = vector.extract_strided_slice %554 {offsets = [0, 32], sizes = [2, 32], strides = [1, 1]} : vector<2x256xf32> to vector<2x32xf32>
    %557 = arith.mulf %556, %527 : vector<2x32xf32>
    %558 = vector.extract_strided_slice %554 {offsets = [0, 0], sizes = [2, 32], strides = [1, 1]} : vector<2x256xf32> to vector<2x32xf32>
    %559 = vector.extract_strided_slice %555 {offsets = [0, 64], sizes = [2, 32], strides = [1, 1]} : vector<2x256xf32> to vector<2x32xf32>
    %560 = arith.mulf %558, %559 : vector<2x32xf32>
    %561 = arith.addf %557, %560 : vector<2x32xf32>
    %562 = vector.extract_strided_slice %554 {offsets = [0, 160], sizes = [2, 32], strides = [1, 1]} : vector<2x256xf32> to vector<2x32xf32>
    %563 = arith.mulf %562, %533 : vector<2x32xf32>
    %564 = vector.extract_strided_slice %554 {offsets = [0, 128], sizes = [2, 32], strides = [1, 1]} : vector<2x256xf32> to vector<2x32xf32>
    %565 = vector.extract_strided_slice %555 {offsets = [0, 192], sizes = [2, 32], strides = [1, 1]} : vector<2x256xf32> to vector<2x32xf32>
    %566 = arith.mulf %564, %565 : vector<2x32xf32>
    %567 = arith.addf %563, %566 : vector<2x32xf32>
    %568 = vector.extract_strided_slice %554 {offsets = [0, 96], sizes = [2, 32], strides = [1, 1]} : vector<2x256xf32> to vector<2x32xf32>
    %569 = vector.extract_strided_slice %554 {offsets = [0, 224], sizes = [2, 32], strides = [1, 1]} : vector<2x256xf32> to vector<2x32xf32>
    %570 = tpu.concatenate %568, %569 in 1 : vector<2x32xf32>, vector<2x32xf32> -> vector<2x64xf32>
    %571 = tpu.concatenate %561, %567 in 1 : vector<2x32xf32>, vector<2x32xf32> -> vector<2x64xf32>
    %572 = math.tanh %571 : vector<2x64xf32>
    %573 = arith.mulf %570, %572 : vector<2x64xf32>
    %574 = vector.extract_strided_slice %573 {offsets = [0, 0], sizes = [2, 32], strides = [1, 1]} : vector<2x64xf32> to vector<2x32xf32>
    %c10_112 = arith.constant 10 : index
    %c0_113 = arith.constant 0 : index
    %575 = vector.load %arg15[%c10_112, %c0_113] : memref<16x32xf32, #tpu.memory_space<vmem>>, vector<2x32xf32>
    tpu.vector_store %arg15[%c10_112, %c0_113], %574 {strides = array<i32>} : memref<16x32xf32, #tpu.memory_space<vmem>>, vector<2x32xf32>,
    %576 = vector.extract_strided_slice %573 {offsets = [0, 32], sizes = [2, 32], strides = [1, 1]} : vector<2x64xf32> to vector<2x32xf32>
    %c4_114 = arith.constant 4 : index
    %c0_115 = arith.constant 0 : index
    %577 = vector.load %arg16[%c4_114, %c0_115] : memref<16x32xf32, #tpu.memory_space<vmem>>, vector<2x32xf32>
    tpu.vector_store %arg16[%c4_114, %c0_115], %576 {strides = array<i32>} : memref<16x32xf32, #tpu.memory_space<vmem>>, vector<2x32xf32>,
    %578 = vector.extract_strided_slice %369 {offsets = [12, 0], sizes = [2, 128], strides = [1, 1]} : vector<16x256xf32> to vector<2x128xf32>
    %579 = vector.extract_strided_slice %369 {offsets = [2, 128], sizes = [2, 128], strides = [1, 1]} : vector<16x256xf32> to vector<2x128xf32>
    %580 = tpu.concatenate %578, %579 in 1 : vector<2x128xf32>, vector<2x128xf32> -> vector<2x256xf32>
    %581 = arith.truncf %573 : vector<2x64xf32> to vector<2x64xbf16>
    %cst_116 = arith.constant dense<0.000000e+00> : vector<2x256xf32>
    %582 = tpu.matmul %581, %370, %cst_116 {dimension_numbers = #tpu.dot_dimension_numbers<[1], [0], [0], [1], [0, 0, 1, 1], [], []>} : vector<2x64xbf16>, vector<64x256xbf16>, vector<2x256xf32> -> vector<2x256xf32>
    %583 = arith.addf %582, %580 : vector<2x256xf32>
    %584 = arith.negf %583 : vector<2x256xf32>
    %585 = math.exp %584 : vector<2x256xf32>
    %cst_117 = arith.constant 1.000000e+00 : f32
    %586 = vector.broadcast %cst_117 : f32 to vector<2x256xf32>
    %587 = arith.addf %586, %585 : vector<2x256xf32>
    %588 = arith.divf %586, %587 : vector<2x256xf32>
    %589 = math.tanh %583 : vector<2x256xf32>
    %590 = vector.extract_strided_slice %588 {offsets = [0, 32], sizes = [2, 32], strides = [1, 1]} : vector<2x256xf32> to vector<2x32xf32>
    %591 = arith.mulf %590, %561 : vector<2x32xf32>
    %592 = vector.extract_strided_slice %588 {offsets = [0, 0], sizes = [2, 32], strides = [1, 1]} : vector<2x256xf32> to vector<2x32xf32>
    %593 = vector.extract_strided_slice %589 {offsets = [0, 64], sizes = [2, 32], strides = [1, 1]} : vector<2x256xf32> to vector<2x32xf32>
    %594 = arith.mulf %592, %593 : vector<2x32xf32>
    %595 = arith.addf %591, %594 : vector<2x32xf32>
    %596 = vector.extract_strided_slice %588 {offsets = [0, 160], sizes = [2, 32], strides = [1, 1]} : vector<2x256xf32> to vector<2x32xf32>
    %597 = arith.mulf %596, %567 : vector<2x32xf32>
    %598 = vector.extract_strided_slice %588 {offsets = [0, 128], sizes = [2, 32], strides = [1, 1]} : vector<2x256xf32> to vector<2x32xf32>
    %599 = vector.extract_strided_slice %589 {offsets = [0, 192], sizes = [2, 32], strides = [1, 1]} : vector<2x256xf32> to vector<2x32xf32>
    %600 = arith.mulf %598, %599 : vector<2x32xf32>
    %601 = arith.addf %597, %600 : vector<2x32xf32>
    %602 = vector.extract_strided_slice %588 {offsets = [0, 96], sizes = [2, 32], strides = [1, 1]} : vector<2x256xf32> to vector<2x32xf32>
    %603 = vector.extract_strided_slice %588 {offsets = [0, 224], sizes = [2, 32], strides = [1, 1]} : vector<2x256xf32> to vector<2x32xf32>
    %604 = tpu.concatenate %602, %603 in 1 : vector<2x32xf32>, vector<2x32xf32> -> vector<2x64xf32>
    %605 = tpu.concatenate %595, %601 in 1 : vector<2x32xf32>, vector<2x32xf32> -> vector<2x64xf32>
    %606 = math.tanh %605 : vector<2x64xf32>
    %607 = arith.mulf %604, %606 : vector<2x64xf32>
    %608 = vector.extract_strided_slice %607 {offsets = [0, 0], sizes = [2, 32], strides = [1, 1]} : vector<2x64xf32> to vector<2x32xf32>
    %c12_118 = arith.constant 12 : index
    %c0_119 = arith.constant 0 : index
    %609 = vector.load %arg15[%c12_118, %c0_119] : memref<16x32xf32, #tpu.memory_space<vmem>>, vector<2x32xf32>
    tpu.vector_store %arg15[%c12_118, %c0_119], %608 {strides = array<i32>} : memref<16x32xf32, #tpu.memory_space<vmem>>, vector<2x32xf32>,
    %610 = vector.extract_strided_slice %607 {offsets = [0, 32], sizes = [2, 32], strides = [1, 1]} : vector<2x64xf32> to vector<2x32xf32>
    %c2_120 = arith.constant 2 : index
    %c0_121 = arith.constant 0 : index
    %611 = vector.load %arg16[%c2_120, %c0_121] : memref<16x32xf32, #tpu.memory_space<vmem>>, vector<2x32xf32>
    tpu.vector_store %arg16[%c2_120, %c0_121], %610 {strides = array<i32>} : memref<16x32xf32, #tpu.memory_space<vmem>>, vector<2x32xf32>,
    %612 = vector.extract_strided_slice %369 {offsets = [14, 0], sizes = [2, 128], strides = [1, 1]} : vector<16x256xf32> to vector<2x128xf32>
    %613 = vector.extract_strided_slice %369 {offsets = [0, 128], sizes = [2, 128], strides = [1, 1]} : vector<16x256xf32> to vector<2x128xf32>
    %614 = tpu.concatenate %612, %613 in 1 : vector<2x128xf32>, vector<2x128xf32> -> vector<2x256xf32>
    %615 = arith.truncf %607 : vector<2x64xf32> to vector<2x64xbf16>
    %cst_122 = arith.constant dense<0.000000e+00> : vector<2x256xf32>
    %616 = tpu.matmul %615, %370, %cst_122 {dimension_numbers = #tpu.dot_dimension_numbers<[1], [0], [0], [1], [0, 0, 1, 1], [], []>} : vector<2x64xbf16>, vector<64x256xbf16>, vector<2x256xf32> -> vector<2x256xf32>
    %617 = arith.addf %616, %614 : vector<2x256xf32>
    %618 = arith.negf %617 : vector<2x256xf32>
    %619 = math.exp %618 : vector<2x256xf32>
    %cst_123 = arith.constant 1.000000e+00 : f32
    %620 = vector.broadcast %cst_123 : f32 to vector<2x256xf32>
    %621 = arith.addf %620, %619 : vector<2x256xf32>
    %622 = arith.divf %620, %621 : vector<2x256xf32>
    %623 = math.tanh %617 : vector<2x256xf32>
    %624 = vector.extract_strided_slice %622 {offsets = [0, 32], sizes = [2, 32], strides = [1, 1]} : vector<2x256xf32> to vector<2x32xf32>
    %625 = arith.mulf %624, %595 : vector<2x32xf32>
    %626 = vector.extract_strided_slice %622 {offsets = [0, 0], sizes = [2, 32], strides = [1, 1]} : vector<2x256xf32> to vector<2x32xf32>
    %627 = vector.extract_strided_slice %623 {offsets = [0, 64], sizes = [2, 32], strides = [1, 1]} : vector<2x256xf32> to vector<2x32xf32>
    %628 = arith.mulf %626, %627 : vector<2x32xf32>
    %629 = arith.addf %625, %628 : vector<2x32xf32>
    %630 = vector.extract_strided_slice %622 {offsets = [0, 160], sizes = [2, 32], strides = [1, 1]} : vector<2x256xf32> to vector<2x32xf32>
    %631 = arith.mulf %630, %601 : vector<2x32xf32>
    %632 = vector.extract_strided_slice %622 {offsets = [0, 128], sizes = [2, 32], strides = [1, 1]} : vector<2x256xf32> to vector<2x32xf32>
    %633 = vector.extract_strided_slice %623 {offsets = [0, 192], sizes = [2, 32], strides = [1, 1]} : vector<2x256xf32> to vector<2x32xf32>
    %634 = arith.mulf %632, %633 : vector<2x32xf32>
    %635 = arith.addf %631, %634 : vector<2x32xf32>
    %636 = vector.extract_strided_slice %622 {offsets = [0, 96], sizes = [2, 32], strides = [1, 1]} : vector<2x256xf32> to vector<2x32xf32>
    %637 = vector.extract_strided_slice %622 {offsets = [0, 224], sizes = [2, 32], strides = [1, 1]} : vector<2x256xf32> to vector<2x32xf32>
    %638 = tpu.concatenate %636, %637 in 1 : vector<2x32xf32>, vector<2x32xf32> -> vector<2x64xf32>
    %639 = tpu.concatenate %629, %635 in 1 : vector<2x32xf32>, vector<2x32xf32> -> vector<2x64xf32>
    %640 = math.tanh %639 : vector<2x64xf32>
    %641 = arith.mulf %638, %640 : vector<2x64xf32>
    %642 = vector.extract_strided_slice %641 {offsets = [0, 0], sizes = [2, 32], strides = [1, 1]} : vector<2x64xf32> to vector<2x32xf32>
    %c14_124 = arith.constant 14 : index
    %c0_125 = arith.constant 0 : index
    %643 = vector.load %arg15[%c14_124, %c0_125] : memref<16x32xf32, #tpu.memory_space<vmem>>, vector<2x32xf32>
    tpu.vector_store %arg15[%c14_124, %c0_125], %642 {strides = array<i32>} : memref<16x32xf32, #tpu.memory_space<vmem>>, vector<2x32xf32>,
    %644 = vector.extract_strided_slice %641 {offsets = [0, 32], sizes = [2, 32], strides = [1, 1]} : vector<2x64xf32> to vector<2x32xf32>
    %c0_126 = arith.constant 0 : index
    %c0_127 = arith.constant 0 : index
    %645 = vector.load %arg16[%c0_126, %c0_127] : memref<16x32xf32, #tpu.memory_space<vmem>>, vector<2x32xf32>
    tpu.vector_store %arg16[%c0_126, %c0_127], %644 {strides = array<i32>} : memref<16x32xf32, #tpu.memory_space<vmem>>, vector<2x32xf32>,
    %c0_128 = arith.constant 0 : index
    %c0_129 = arith.constant 0 : index
    %646 = vector.load %arg15[%c0_128, %c0_129] : memref<16x32xf32, #tpu.memory_space<vmem>>, vector<16x32xf32>
    %c0_130 = arith.constant 0 : index
    %c0_131 = arith.constant 0 : index
    %647 = vector.load %arg16[%c0_130, %c0_131] : memref<16x32xf32, #tpu.memory_space<vmem>>, vector<16x32xf32>
    %648 = tpu.concatenate %646, %647 in 1 : vector<16x32xf32>, vector<16x32xf32> -> vector<16x64xf32>
    %649 = arith.truncf %648 : vector<16x64xf32> to vector<16x64xbf16>
    %c0_132 = arith.constant 0 : index
    %c0_133 = arith.constant 0 : index
    %650 = vector.load %arg12[%c0_132, %c0_133] : memref<64x128xbf16, #tpu.memory_space<vmem>>, vector<64x128xbf16>
    %cst_134 = arith.constant dense<0.000000e+00> : vector<16x128xf32>
    %651 = tpu.matmul %649, %650, %cst_134 {dimension_numbers = #tpu.dot_dimension_numbers<[1], [0], [0], [1], [0, 0, 1, 1], [], []>} : vector<16x64xbf16>, vector<64x128xbf16>, vector<16x128xf32> -> vector<16x128xf32>
    %c0_135 = arith.constant 0 : index
    %c0_136 = arith.constant 0 : index
    %652 = vector.load %arg13[%c0_135, %c0_136] : memref<1x128xf32, #tpu.memory_space<vmem>>, vector<1x128xf32>
    %653 = vector.broadcast %652 : vector<1x128xf32> to vector<16x128xf32>
    %654 = arith.addf %651, %653 : vector<16x128xf32>
    %c0_137 = arith.constant 0 : index
    %c0_138 = arith.constant 0 : index
    %655 = vector.load %arg14[%c0_137, %c0_138] : memref<16x128xf32, #tpu.memory_space<vmem>>, vector<16x128xf32>
    tpu.vector_store %arg14[%c0_137, %c0_138], %654 {strides = array<i32>} : memref<16x128xf32, #tpu.memory_space<vmem>>, vector<16x128xf32>,
    return
  }
  func.func @transform_0(%arg0: i32) -> (i32, i32) {
    %c0_i32 = arith.constant 0 : i32
    %c0_i32_0 = arith.constant 0 : i32
    %c0_i32_1 = arith.constant 0 : i32
    return %c0_i32, %c0_i32_0 : i32, i32
  }
  func.func @transform_1(%arg0: i32) -> (i32, i32) {
    %c0_i32 = arith.constant 0 : i32
    %c0_i32_0 = arith.constant 0 : i32
    %c0_i32_1 = arith.constant 0 : i32
    return %c0_i32, %c0_i32_0 : i32, i32
  }
  func.func @transform_2(%arg0: i32) -> (i32, i32) {
    %c0_i32 = arith.constant 0 : i32
    %c0_i32_0 = arith.constant 0 : i32
    %c0_i32_1 = arith.constant 0 : i32
    return %c0_i32, %c0_i32_0 : i32, i32
  }
  func.func @transform_3(%arg0: i32) -> (i32, i32) {
    %c0_i32 = arith.constant 0 : i32
    %c0_i32_0 = arith.constant 0 : i32
    %c0_i32_1 = arith.constant 0 : i32
    return %c0_i32, %c0_i32_0 : i32, i32
  }
  func.func @transform_4(%arg0: i32) -> (i32, i32) {
    %c0_i32 = arith.constant 0 : i32
    %c0_i32_0 = arith.constant 0 : i32
    %c0_i32_1 = arith.constant 0 : i32
    return %c0_i32, %c0_i32_0 : i32, i32
  }
  func.func @transform_5(%arg0: i32) -> (i32, i32) {
    %c0_i32 = arith.constant 0 : i32
    %c0_i32_0 = arith.constant 0 : i32
    %c0_i32_1 = arith.constant 0 : i32
    return %c0_i32, %c0_i32_0 : i32, i32
  }
  func.func @transform_6(%arg0: i32) -> (i32, i32) {
    %c0_i32 = arith.constant 0 : i32
    %c0_i32_0 = arith.constant 0 : i32
    %c0_i32_1 = arith.constant 0 : i32
    return %c0_i32, %c0_i32_0 : i32, i32
  }
  func.func @transform_7(%arg0: i32) -> (i32, i32) {
    %c0_i32 = arith.constant 0 : i32
    %c0_i32_0 = arith.constant 0 : i32
    %c0_i32_1 = arith.constant 0 : i32
    return %c0_i32, %c0_i32_0 : i32, i32
  }
  func.func @transform_8(%arg0: i32) -> (i32, i32) {
    %c0_i32 = arith.constant 0 : i32
    %c0_i32_0 = arith.constant 0 : i32
    %c0_i32_1 = arith.constant 0 : i32
    return %c0_i32, %c0_i32_0 : i32, i32
  }
  func.func @transform_9(%arg0: i32) -> (i32, i32) {
    %c0_i32 = arith.constant 0 : i32
    %c0_i32_0 = arith.constant 0 : i32
    %c0_i32_1 = arith.constant 0 : i32
    return %c0_i32, %c0_i32_0 : i32, i32
  }
  func.func @transform_10(%arg0: i32) -> (i32, i32) {
    %c0_i32 = arith.constant 0 : i32
    %c0_i32_0 = arith.constant 0 : i32
    %c0_i32_1 = arith.constant 0 : i32
    return %c0_i32, %c0_i32_0 : i32, i32
  }
  func.func @transform_11(%arg0: i32) -> (i32, i32) {
    %c0_i32 = arith.constant 0 : i32
    %c0_i32_0 = arith.constant 0 : i32
    %c0_i32_1 = arith.constant 0 : i32
    return %c0_i32, %c0_i32_0 : i32, i32
  }
  func.func @transform_12(%arg0: i32) -> (i32, i32) {
    %c0_i32 = arith.constant 0 : i32
    %c0_i32_0 = arith.constant 0 : i32
    %c0_i32_1 = arith.constant 0 : i32
    return %c0_i32, %c0_i32_0 : i32, i32
  }
  func.func @transform_13(%arg0: i32) -> (i32, i32) {
    %c0_i32 = arith.constant 0 : i32
    %c0_i32_0 = arith.constant 0 : i32
    %c0_i32_1 = arith.constant 0 : i32
    return %c0_i32, %c0_i32_0 : i32, i32
  }
}

</mosaic_0001>

<llo_original>
// kernel: _lambda_.1
$region0: #{_lambda_.1}
  #allocation0 [shape = 'u32[]', space=smem, size = 0x4, offset = 0x4, fixed_abs, tag = 'smem constant byte address 0x4 - core index']
  #allocation1 [shape = 'u32[144,128]{1,0:T(1,128)}', space=vmem, size = 0x12000, scoped, tag = 'internal scratch']
  #allocation2 [shape = 'f32[16,32]{1,0:T(8,128)}', space=vmem, size = 0x2000, scoped, tag = 'scratch operand']
  #allocation3 [shape = 'f32[16,32]{1,0:T(8,128)}', space=vmem, size = 0x2000, scoped, tag = 'scratch operand']
  %s0 = inlined_call_operand.vmem [shape: bf16[16,384], index: 0, kind: input, shape index: {}]
  %s1 = inlined_call_operand.vmem [shape: f32[16,32], index: 1, kind: input, shape index: {}]
  %s2 = inlined_call_operand.vmem [shape: f32[16,32], index: 2, kind: input, shape index: {}]
  %s3 = inlined_call_operand.vmem [shape: bf16[384,240], index: 3, kind: input, shape index: {}]
  %s4 = inlined_call_operand.vmem [shape: f32[1,24], index: 4, kind: input, shape index: {}]
  %s5 = inlined_call_operand.vmem [shape: bf16[88,256], index: 5, kind: input, shape index: {}]
  %s6 = inlined_call_operand.vmem [shape: f32[1,256], index: 6, kind: input, shape index: {}]
  %s7 = inlined_call_operand.vmem [shape: bf16[64,256], index: 7, kind: input, shape index: {}]
  %s8 = inlined_call_operand.vmem [shape: bf16[64,256], index: 8, kind: input, shape index: {}]
  %s9 = inlined_call_operand.vmem [shape: f32[1,256], index: 9, kind: input, shape index: {}]
  %s10 = inlined_call_operand.vmem [shape: bf16[64,256], index: 10, kind: input, shape index: {}]
  %s11 = inlined_call_operand.vmem [shape: bf16[64,128], index: 11, kind: input, shape index: {}]
  %s12 = inlined_call_operand.vmem [shape: f32[1,128], index: 12, kind: input, shape index: {}]
  %s13 = inlined_call_operand.vmem [shape: f32[16,128], index: 13, kind: output, shape index: {}]
  %s14 = sld [smem:[#allocation0]]
  $region62: #{_lambda_.1} parent=0
    _
  %s16 = ssub.s32 1, %s14
  %s17 = scalar_select 0, %s16, %s14
  // Predicated region
  $region2: #{_lambda_.1} parent=0 // pred_check
    _
  $region3: #{_lambda_.1} parent=0 // pred_check_branch
    %19 = sbr.rel (0) target = $region5
  $region4: #{_lambda_.1} parent=0 // pred_region
    _
  $region5: #{_lambda_.1} parent=0 // pred_fallthru
    _
  // Predicated region
  $region6: #{_lambda_.1} parent=0 // pred_check
    _
  $region7: #{_lambda_.1} parent=0 // pred_check_branch
    %21 = sbr.rel (0) target = $region9
  $region8: #{_lambda_.1} parent=0 // pred_region
    _
  $region9: #{_lambda_.1} parent=0 // pred_fallthru
    _
  // Predicated region
  $region10: #{_lambda_.1} parent=0 // pred_check
    _
  $region11: #{_lambda_.1} parent=0 // pred_check_branch
    %23 = sbr.rel (0) target = $region13
  $region12: #{_lambda_.1} parent=0 // pred_region
    _
  $region13: #{_lambda_.1} parent=0 // pred_fallthru
    _
  // Predicated region
  $region14: #{_lambda_.1} parent=0 // pred_check
    _
  $region15: #{_lambda_.1} parent=0 // pred_check_branch
    %25 = sbr.rel (0) target = $region17
  $region16: #{_lambda_.1} parent=0 // pred_region
    _
  $region17: #{_lambda_.1} parent=0 // pred_fallthru
    _
  // Predicated region
  $region18: #{_lambda_.1} parent=0 // pred_check
    _
  $region19: #{_lambda_.1} parent=0 // pred_check_branch
    %27 = sbr.rel (0) target = $region21
  $region20: #{_lambda_.1} parent=0 // pred_region
    _
  $region21: #{_lambda_.1} parent=0 // pred_fallthru
    _
  // Predicated region
  $region22: #{_lambda_.1} parent=0 // pred_check
    _
  $region23: #{_lambda_.1} parent=0 // pred_check_branch
    %29 = sbr.rel (0) target = $region25
  $region24: #{_lambda_.1} parent=0 // pred_region
    _
  $region25: #{_lambda_.1} parent=0 // pred_fallthru
    _
  // Predicated region
  $region26: #{_lambda_.1} parent=0 // pred_check
    _
  $region27: #{_lambda_.1} parent=0 // pred_check_branch
    %31 = sbr.rel (0) target = $region29
  $region28: #{_lambda_.1} parent=0 // pred_region
    _
  $region29: #{_lambda_.1} parent=0 // pred_fallthru
    _
  // Predicated region
  $region30: #{_lambda_.1} parent=0 // pred_check
    _
  $region31: #{_lambda_.1} parent=0 // pred_check_branch
    %33 = sbr.rel (0) target = $region33
  $region32: #{_lambda_.1} parent=0 // pred_region
    _
  $region33: #{_lambda_.1} parent=0 // pred_fallthru
    _
  // Predicated region
  $region34: #{_lambda_.1} parent=0 // pred_check
    _
  $region35: #{_lambda_.1} parent=0 // pred_check_branch
    %35 = sbr.rel (0) target = $region37
  $region36: #{_lambda_.1} parent=0 // pred_region
    _
  $region37: #{_lambda_.1} parent=0 // pred_fallthru
    _
  // Predicated region
  $region38: #{_lambda_.1} parent=0 // pred_check
    _
  $region39: #{_lambda_.1} parent=0 // pred_check_branch
    %37 = sbr.rel (0) target = $region41
  $region40: #{_lambda_.1} parent=0 // pred_region
    _
  $region41: #{_lambda_.1} parent=0 // pred_fallthru
    _
  // Predicated region
  $region42: #{_lambda_.1} parent=0 // pred_check
    _
  $region43: #{_lambda_.1} parent=0 // pred_check_branch
    %39 = sbr.rel (0) target = $region45
  $region44: #{_lambda_.1} parent=0 // pred_region
    _
  $region45: #{_lambda_.1} parent=0 // pred_fallthru
    _
  // Predicated region
  $region46: #{_lambda_.1} parent=0 // pred_check
    _
  $region47: #{_lambda_.1} parent=0 // pred_check_branch
    %41 = sbr.rel (0) target = $region49
  $region48: #{_lambda_.1} parent=0 // pred_region
    _
  $region49: #{_lambda_.1} parent=0 // pred_fallthru
    _
  // Predicated region
  $region50: #{_lambda_.1} parent=0 // pred_check
    _
  $region51: #{_lambda_.1} parent=0 // pred_check_branch
    %43 = sbr.rel (0) target = $region53
  $region52: #{_lambda_.1} parent=0 // pred_region
    _
  $region53: #{_lambda_.1} parent=0 // pred_fallthru
    _
  %v45 = vld [vmem:[%s0] sm:$0xff]
  %v46 = vld [vmem:[%s0 + $0x8] sm:$0xf]
  %v47 = vld [vmem:[%s0 + $0xc] sm:$0xff]
  %v48 = vld [vmem:[%s0 + $0x14] sm:$0xf]
  %v49 = vld [vmem:[%s3] sm:$0xff]
  %v50 = vld [vmem:[%s3 + $0x8] sm:$0xff]
  %v51 = vld [vmem:[%s3 + $0x10] sm:$0xff]
  %v52 = vld [vmem:[%s3 + $0x18] sm:$0xff]
  %v53 = vld [vmem:[%s3 + $0x20] sm:$0xff]
  %v54 = vld [vmem:[%s3 + $0x28] sm:$0xff]
  %v55 = vld [vmem:[%s3 + $0x30] sm:$0xff]
  %v56 = vld [vmem:[%s3 + $0x38] sm:$0xff]
  %v57 = vld [vmem:[%s3 + $0x40] sm:$0xff]
  %v58 = vld [vmem:[%s3 + $0x48] sm:$0xff]
  %v59 = vld [vmem:[%s3 + $0x50] sm:$0xff]
  %v60 = vld [vmem:[%s3 + $0x58] sm:$0xff]
  %v61 = vld [vmem:[%s3 + $0x60] sm:$0xff]
  %v62 = vld [vmem:[%s3 + $0x68] sm:$0xff]
  %v63 = vld [vmem:[%s3 + $0x70] sm:$0xff]
  %v64 = vld [vmem:[%s3 + $0x78] sm:$0xff]
  %v65 = vld [vmem:[%s3 + $0x80] sm:$0xff]
  %v66 = vld [vmem:[%s3 + $0x88] sm:$0xff]
  %v67 = vld [vmem:[%s3 + $0x90] sm:$0xff]
  %v68 = vld [vmem:[%s3 + $0x98] sm:$0xff]
  %v69 = vld [vmem:[%s3 + $0xa0] sm:$0xff]
  %v70 = vld [vmem:[%s3 + $0xa8] sm:$0xff]
  %v71 = vld [vmem:[%s3 + $0xb0] sm:$0xff]
  %v72 = vld [vmem:[%s3 + $0xb8] sm:$0xff]
  %v73 = vld [vmem:[%s3 + $0xc0] sm:$0xff]
  %v74 = vld [vmem:[%s3 + $0xc8] sm:$0xff]
  %v75 = vld [vmem:[%s3 + $0xd0] sm:$0xff]
  %v76 = vld [vmem:[%s3 + $0xd8] sm:$0xff]
  %v77 = vld [vmem:[%s3 + $0xe0] sm:$0xff]
  %v78 = vld [vmem:[%s3 + $0xe8] sm:$0xff]
  %v79 = vld [vmem:[%s3 + $0xf0] sm:$0xff]
  %v80 = vld [vmem:[%s3 + $0xf8] sm:$0xff]
  %v81 = vld [vmem:[%s3 + $0x100] sm:$0xff]
  %v82 = vld [vmem:[%s3 + $0x108] sm:$0xff]
  %v83 = vld [vmem:[%s3 + $0x110] sm:$0xff]
  %v84 = vld [vmem:[%s3 + $0x118] sm:$0xff]
  %v85 = vld [vmem:[%s3 + $0x120] sm:$0xff]
  %v86 = vld [vmem:[%s3 + $0x128] sm:$0xff]
  %v87 = vld [vmem:[%s3 + $0x130] sm:$0xff]
  %v88 = vld [vmem:[%s3 + $0x138] sm:$0xff]
  %v89 = vld [vmem:[%s3 + $0x140] sm:$0xff]
  %v90 = vld [vmem:[%s3 + $0x148] sm:$0xff]
  %v91 = vld [vmem:[%s3 + $0x150] sm:$0xff]
  %v92 = vld [vmem:[%s3 + $0x158] sm:$0xff]
  %v93 = vld [vmem:[%s3 + $0x160] sm:$0xff]
  %v94 = vld [vmem:[%s3 + $0x168] sm:$0xff]
  %v95 = vld [vmem:[%s3 + $0x170] sm:$0xff]
  %v96 = vld [vmem:[%s3 + $0x178] sm:$0xff]
  %v101 = vunpack.c.l.b16 %v45
  %v102 = vunpack.c.h.b16 %v45
  %v103 = vunpack.c.l.b16 %v46
  %v104 = vunpack.c.l.b16 %v47
  %v105 = vunpack.c.h.b16 %v47
  %v106 = vunpack.c.l.b16 %v48
  %v107 = vpack.c.b16 %v104, %v101
  %v108 = vpack.c.b16 %v105, %v102
  %v109 = vpack.c.b16 %v106, %v103
  %v161 = vunpack.c.l.b16 %v49
  %v162 = vunpack.c.h.b16 %v49
  %v163 = vunpack.c.l.b16 %v50
  %v164 = vunpack.c.h.b16 %v50
  %v165 = vunpack.c.l.b16 %v51
  %v166 = vunpack.c.h.b16 %v51
  %v167 = vunpack.c.l.b16 %v52
  %v168 = vunpack.c.h.b16 %v52
  %v169 = vunpack.c.l.b16 %v53
  %v170 = vunpack.c.h.b16 %v53
  %v171 = vunpack.c.l.b16 %v54
  %v172 = vunpack.c.h.b16 %v54
  %v173 = vunpack.c.l.b16 %v55
  %v174 = vunpack.c.h.b16 %v55
  %v175 = vunpack.c.l.b16 %v56
  %v176 = vunpack.c.h.b16 %v56
  %v177 = vunpack.c.l.b16 %v57
  %v178 = vunpack.c.h.b16 %v57
  %v179 = vunpack.c.l.b16 %v58
  %v180 = vunpack.c.h.b16 %v58
  %v181 = vunpack.c.l.b16 %v59
  %v182 = vunpack.c.h.b16 %v59
  %v183 = vunpack.c.l.b16 %v60
  %v184 = vunpack.c.h.b16 %v60
  %v185 = vunpack.c.l.b16 %v61
  %v186 = vunpack.c.h.b16 %v61
  %v187 = vunpack.c.l.b16 %v62
  %v188 = vunpack.c.h.b16 %v62
  %v189 = vunpack.c.l.b16 %v63
  %v190 = vunpack.c.h.b16 %v63
  %v191 = vunpack.c.l.b16 %v64
  %v192 = vunpack.c.h.b16 %v64
  %v193 = vunpack.c.l.b16 %v65
  %v194 = vunpack.c.h.b16 %v65
  %v195 = vunpack.c.l.b16 %v66
  %v196 = vunpack.c.h.b16 %v66
  %v197 = vunpack.c.l.b16 %v67
  %v198 = vunpack.c.h.b16 %v67
  %v199 = vunpack.c.l.b16 %v68
  %v200 = vunpack.c.h.b16 %v68
  %v201 = vunpack.c.l.b16 %v69
  %v202 = vunpack.c.h.b16 %v69
  %v203 = vunpack.c.l.b16 %v70
  %v204 = vunpack.c.h.b16 %v70
  %v205 = vunpack.c.l.b16 %v71
  %v206 = vunpack.c.h.b16 %v71
  %v207 = vunpack.c.l.b16 %v72
  %v208 = vunpack.c.h.b16 %v72
  %v209 = vunpack.c.l.b16 %v73
  %v210 = vunpack.c.h.b16 %v73
  %v211 = vunpack.c.l.b16 %v74
  %v212 = vunpack.c.h.b16 %v74
  %v213 = vunpack.c.l.b16 %v75
  %v214 = vunpack.c.h.b16 %v75
  %v215 = vunpack.c.l.b16 %v76
  %v216 = vunpack.c.h.b16 %v76
  %v217 = vunpack.c.l.b16 %v77
  %v218 = vunpack.c.h.b16 %v77
  %v219 = vunpack.c.l.b16 %v78
  %v220 = vunpack.c.h.b16 %v78
  %v221 = vunpack.c.l.b16 %v79
  %v222 = vunpack.c.h.b16 %v79
  %v223 = vunpack.c.l.b16 %v80
  %v224 = vunpack.c.h.b16 %v80
  %v225 = vunpack.c.l.b16 %v81
  %v226 = vunpack.c.h.b16 %v81
  %v227 = vunpack.c.l.b16 %v82
  %v228 = vunpack.c.h.b16 %v82
  %v229 = vunpack.c.l.b16 %v83
  %v230 = vunpack.c.h.b16 %v83
  %v231 = vunpack.c.l.b16 %v84
  %v232 = vunpack.c.h.b16 %v84
  %v233 = vunpack.c.l.b16 %v85
  %v234 = vunpack.c.h.b16 %v85
  %v235 = vunpack.c.l.b16 %v86
  %v236 = vunpack.c.h.b16 %v86
  %v237 = vunpack.c.l.b16 %v87
  %v238 = vunpack.c.h.b16 %v87
  %v239 = vunpack.c.l.b16 %v88
  %v240 = vunpack.c.h.b16 %v88
  %v241 = vunpack.c.l.b16 %v89
  %v242 = vunpack.c.h.b16 %v89
  %v243 = vunpack.c.l.b16 %v90
  %v244 = vunpack.c.h.b16 %v90
  %v245 = vunpack.c.l.b16 %v91
  %v246 = vunpack.c.h.b16 %v91
  %v247 = vunpack.c.l.b16 %v92
  %v248 = vunpack.c.h.b16 %v92
  %v249 = vunpack.c.l.b16 %v93
  %v250 = vunpack.c.h.b16 %v93
  %v251 = vunpack.c.l.b16 %v94
  %v252 = vunpack.c.h.b16 %v94
  %v253 = vunpack.c.l.b16 %v95
  %v254 = vunpack.c.h.b16 %v95
  %v255 = vunpack.c.l.b16 %v96
  %v256 = vunpack.c.h.b16 %v96
  %v257 = vpack.c.b16 %v163, %v161
  %v258 = vpack.c.b16 %v164, %v162
  %v259 = vpack.c.b16 %v167, %v165
  %v260 = vpack.c.b16 %v168, %v166
  %v261 = vpack.c.b16 %v171, %v169
  %v262 = vpack.c.b16 %v172, %v170
  %v263 = vpack.c.b16 %v175, %v173
  %v264 = vpack.c.b16 %v176, %v174
  %v265 = vpack.c.b16 %v179, %v177
  %v266 = vpack.c.b16 %v180, %v178
  %v267 = vpack.c.b16 %v183, %v181
  %v268 = vpack.c.b16 %v184, %v182
  %v269 = vpack.c.b16 %v187, %v185
  %v270 = vpack.c.b16 %v188, %v186
  %v271 = vpack.c.b16 %v191, %v189
  %v272 = vpack.c.b16 %v192, %v190
  %v273 = vpack.c.b16 %v195, %v193
  %v274 = vpack.c.b16 %v196, %v194
  %v275 = vpack.c.b16 %v199, %v197
  %v276 = vpack.c.b16 %v200, %v198
  %v277 = vpack.c.b16 %v203, %v201
  %v278 = vpack.c.b16 %v204, %v202
  %v279 = vpack.c.b16 %v207, %v205
  %v280 = vpack.c.b16 %v208, %v206
  %v281 = vpack.c.b16 %v211, %v209
  %v282 = vpack.c.b16 %v212, %v210
  %v283 = vpack.c.b16 %v215, %v213
  %v284 = vpack.c.b16 %v216, %v214
  %v285 = vpack.c.b16 %v219, %v217
  %v286 = vpack.c.b16 %v220, %v218
  %v287 = vpack.c.b16 %v223, %v221
  %v288 = vpack.c.b16 %v224, %v222
  %v289 = vpack.c.b16 %v227, %v225
  %v290 = vpack.c.b16 %v228, %v226
  %v291 = vpack.c.b16 %v231, %v229
  %v292 = vpack.c.b16 %v232, %v230
  %v293 = vpack.c.b16 %v235, %v233
  %v294 = vpack.c.b16 %v236, %v234
  %v295 = vpack.c.b16 %v239, %v237
  %v296 = vpack.c.b16 %v240, %v238
  %v297 = vpack.c.b16 %v243, %v241
  %v298 = vpack.c.b16 %v244, %v242
  %v299 = vpack.c.b16 %v247, %v245
  %v300 = vpack.c.b16 %v248, %v246
  %v301 = vpack.c.b16 %v251, %v249
  %v302 = vpack.c.b16 %v252, %v250
  %v303 = vpack.c.b16 %v255, %v253
  %v304 = vpack.c.b16 %v256, %v254
  %353 = vmatprep.subr.bf16.mxu0 %v258
  %354 = vmatpush1.bf16.msra.mxu0 %v257
  %355 = vmatprep.subr.bf16.mxu0 %v260
  %356 = vmatpush1.bf16.msra.mxu0 %v259
  %357 = vmatprep.subr.bf16.mxu0 %v262
  %358 = vmatpush1.bf16.msra.mxu0 %v261
  %359 = vmatprep.subr.bf16.mxu0 %v264
  %360 = vmatpush1.bf16.msra.mxu0 %v263
  %361 = vmatprep.subr.bf16.mxu0 %v266
  %362 = vmatpush1.bf16.msra.mxu0 %v265
  %363 = vmatprep.subr.bf16.mxu0 %v268
  %364 = vmatpush1.bf16.msra.mxu0 %v267
  %365 = vmatprep.subr.bf16.mxu0 %v270
  %366 = vmatpush1.bf16.msra.mxu0 %v269
  %367 = vmatprep.subr.bf16.mxu0 %v272
  %368 = vmatpush1.bf16.msra.mxu0 %v271
  %369 = vmatprep.subr.bf16.mxu0 %v274
  %370 = vmatpush1.bf16.msra.mxu0 %v273
  %371 = vmatprep.subr.bf16.mxu0 %v276
  %372 = vmatpush1.bf16.msra.mxu0 %v275
  %373 = vmatprep.subr.bf16.mxu0 %v278
  %374 = vmatpush1.bf16.msra.mxu0 %v277
  %375 = vmatprep.subr.bf16.mxu0 %v280
  %376 = vmatpush1.bf16.msra.mxu0 %v279
  %377 = vmatprep.subr.bf16.mxu0 %v282
  %378 = vmatpush1.bf16.msra.mxu0 %v281
  %379 = vmatprep.subr.bf16.mxu0 %v284
  %380 = vmatpush1.bf16.msra.mxu0 %v283
  %381 = vmatprep.subr.bf16.mxu0 %v286
  %382 = vmatpush1.bf16.msra.mxu0 %v285
  %383 = vmatprep.subr.bf16.mxu0 %v288
  %384 = vmatpush1.bf16.msra.mxu0 %v287
  %385 = vmatprep.mubr.bf16.mxu0 %v108
  %386 = vmatmul.mubr.bf16.gmra.mrb[0].mxu0 %v107
  %v387 = vpop.f32.mrb[0].mxu0
  %v388 = vadd.f32 0.0, %v387
  %v389 = vpop.f32.mrb[0].mxu0
  %v390 = vadd.f32 0.0, %v389
  %v391 = vpop.f32.mrb[0].mxu0
  %v392 = vadd.f32 0.0, %v391
  %v393 = vpop.f32.mrb[0].mxu0
  %v394 = vadd.f32 0.0, %v393
  %395 = vdwg.mxu0
  %396 = vmatprep.subr.bf16.mxu0 %v290
  %397 = vmatpush1.bf16.msra.mxu0 %v289
  %398 = vmatprep.subr.bf16.mxu0 %v292
  %399 = vmatpush1.bf16.msra.mxu0 %v291
  %400 = vmatprep.subr.bf16.mxu0 %v294
  %401 = vmatpush1.bf16.msra.mxu0 %v293
  %402 = vmatprep.subr.bf16.mxu0 %v296
  %403 = vmatpush1.bf16.msra.mxu0 %v295
  %404 = vmatprep.subr.bf16.mxu0 %v298
  %405 = vmatpush1.bf16.msra.mxu0 %v297
  %406 = vmatprep.subr.bf16.mxu0 %v300
  %407 = vmatpush1.bf16.msra.mxu0 %v299
  %408 = vmatprep.subr.bf16.mxu0 %v302
  %409 = vmatpush1.bf16.msra.mxu0 %v301
  %410 = vmatprep.subr.bf16.mxu0 %v304
  %411 = vmatpush1.bf16.msra.mxu0 %v303
  %412 = vmatprep.subr.bf16.mxu0 0
  %413 = vmatpush1.bf16.msra.mxu0 0
  %414 = vmatprep.subr.bf16.mxu0 0
  %415 = vmatpush1.bf16.msra.mxu0 0
  %416 = vmatprep.subr.bf16.mxu0 0
  %417 = vmatpush1.bf16.msra.mxu0 0
  %418 = vmatprep.subr.bf16.mxu0 0
  %419 = vmatpush1.bf16.msra.mxu0 0
  %420 = vmatprep.subr.bf16.mxu0 0
  %421 = vmatpush1.bf16.msra.mxu0 0
  %422 = vmatprep.subr.bf16.mxu0 0
  %423 = vmatpush1.bf16.msra.mxu0 0
  %424 = vmatprep.subr.bf16.mxu0 0
  %425 = vmatpush1.bf16.msra.mxu0 0
  %426 = vmatprep.subr.bf16.mxu0 0
  %427 = vmatpush1.bf16.msra.mxu0 0
  %428 = vmatprep.mubr.bf16.mxu0 0
  %429 = vmatmul.mubr.bf16.gmra.mrb[0].mxu0 %v109
  %v430 = vpop.f32.mrb[0].mxu0
  %v431 = vadd.f32 %v388, %v430
  %v432 = vpop.f32.mrb[0].mxu0
  %v433 = vadd.f32 %v390, %v432
  %v434 = vpop.f32.mrb[0].mxu0
  %v435 = vadd.f32 %v392, %v434
  %v436 = vpop.f32.mrb[0].mxu0
  %v437 = vadd.f32 %v394, %v436
  %438 = vdwg.mxu0
  %441 = vrot.lane.b32.xlu0 %v431, 120
  %v442 = vpop.permute.xlu0 %441
  %443 = vrot.lane.b32.xlu0 %v435, 120
  %v444 = vpop.permute.xlu0 %443
  %v447 = vmax.f32 %v431, %v442
  %v448 = vmax.f32 %v435, %v444
  %449 = vrot.lane.b32.xlu0 %v431, 112
  %v450 = vpop.permute.xlu0 %449
  %451 = vrot.lane.b32.xlu0 %v435, 112
  %v452 = vpop.permute.xlu0 %451
  %v455 = vmax.f32 %v447, %v450
  %v456 = vmax.f32 %v448, %v452
  %457 = vrot.lane.b32.xlu0 %v431, 104
  %v458 = vpop.permute.xlu0 %457
  %459 = vrot.lane.b32.xlu0 %v435, 104
  %v460 = vpop.permute.xlu0 %459
  %v463 = vmax.f32 %v455, %v458
  %v464 = vmax.f32 %v456, %v460
  %465 = vrot.lane.b32.xlu0 %v431, 96
  %v466 = vpop.permute.xlu0 %465
  %467 = vrot.lane.b32.xlu0 %v435, 96
  %v468 = vpop.permute.xlu0 %467
  %v471 = vmax.f32 %v463, %v466
  %v472 = vmax.f32 %v464, %v468
  %473 = vrot.lane.b32.xlu0 %v431, 88
  %v474 = vpop.permute.xlu0 %473
  %475 = vrot.lane.b32.xlu0 %v435, 88
  %v476 = vpop.permute.xlu0 %475
  %v479 = vmax.f32 %v471, %v474
  %v480 = vmax.f32 %v472, %v476
  %481 = vrot.lane.b32.xlu0 %v431, 80
  %v482 = vpop.permute.xlu0 %481
  %483 = vrot.lane.b32.xlu0 %v435, 80
  %v484 = vpop.permute.xlu0 %483
  %v487 = vmax.f32 %v479, %v482
  %v488 = vmax.f32 %v480, %v484
  %489 = vrot.lane.b32.xlu0 %v431, 72
  %v490 = vpop.permute.xlu0 %489
  %491 = vrot.lane.b32.xlu0 %v435, 72
  %v492 = vpop.permute.xlu0 %491
  %v495 = vmax.f32 %v487, %v490
  %v496 = vmax.f32 %v488, %v492
  %497 = vrot.lane.b32.xlu0 %v431, 64
  %v498 = vpop.permute.xlu0 %497
  %499 = vrot.lane.b32.xlu0 %v435, 64
  %v500 = vpop.permute.xlu0 %499
  %v503 = vmax.f32 %v495, %v498
  %v504 = vmax.f32 %v496, %v500
  %505 = vrot.lane.b32.xlu0 %v431, 56
  %v506 = vpop.permute.xlu0 %505
  %507 = vrot.lane.b32.xlu0 %v435, 56
  %v508 = vpop.permute.xlu0 %507
  %v511 = vmax.f32 %v503, %v506
  %v512 = vmax.f32 %v504, %v508
  %513 = vrot.lane.b32.xlu0 %v431, 48
  %v514 = vpop.permute.xlu0 %513
  %515 = vrot.lane.b32.xlu0 %v435, 48
  %v516 = vpop.permute.xlu0 %515
  %v519 = vmax.f32 %v511, %v514
  %v520 = vmax.f32 %v512, %v516
  %v521 = vld [vmem:[%s4] sm:$0x1]
  %v523 = vlaneseq
  %v524 = vshrl.u32 %v523, 7
  %v525 = vsub.s32 0, %v524
  %v526 = vrot.slane %v521, %v525
  %v528 = vadd.f32 %v519, %v526
  %v529 = vadd.f32 %v520, %v526
  %v530 = vmax.f32 %v528, 0.0
  %v531 = vmax.f32 %v529, 0.0
  %534 = vrot.lane.b32.xlu0 %v433, 88
  %v535 = vpop.permute.xlu0 %534
  %536 = vrot.lane.b32.xlu0 %v437, 88
  %v537 = vpop.permute.xlu0 %536
  %v540 = vmax.f32 %v471, %v535
  %v541 = vmax.f32 %v472, %v537
  %542 = vrot.lane.b32.xlu0 %v433, 80
  %v543 = vpop.permute.xlu0 %542
  %544 = vrot.lane.b32.xlu0 %v437, 80
  %v545 = vpop.permute.xlu0 %544
  %v548 = vmax.f32 %v540, %v543
  %v549 = vmax.f32 %v541, %v545
  %550 = vrot.lane.b32.xlu0 %v433, 72
  %v551 = vpop.permute.xlu0 %550
  %552 = vrot.lane.b32.xlu0 %v437, 72
  %v553 = vpop.permute.xlu0 %552
  %v556 = vmax.f32 %v548, %v551
  %v557 = vmax.f32 %v549, %v553
  %558 = vrot.lane.b32.xlu0 %v433, 64
  %v559 = vpop.permute.xlu0 %558
  %560 = vrot.lane.b32.xlu0 %v437, 64
  %v561 = vpop.permute.xlu0 %560
  %v564 = vmax.f32 %v556, %v559
  %v565 = vmax.f32 %v557, %v561
  %566 = vrot.lane.b32.xlu0 %v433, 56
  %v567 = vpop.permute.xlu0 %566
  %568 = vrot.lane.b32.xlu0 %v437, 56
  %v569 = vpop.permute.xlu0 %568
  %v572 = vmax.f32 %v564, %v567
  %v573 = vmax.f32 %v565, %v569
  %574 = vrot.lane.b32.xlu0 %v526, 80
  %v575 = vpop.permute.xlu0 %574
  %v577 = vadd.f32 %v572, %v575
  %v578 = vadd.f32 %v573, %v575
  %v579 = vmax.f32 %v577, 0.0
  %v580 = vmax.f32 %v578, 0.0
  %581 = vrot.lane.b32.xlu0 %v433, 120
  %v582 = vpop.permute.xlu0 %581
  %583 = vrot.lane.b32.xlu0 %v437, 120
  %v584 = vpop.permute.xlu0 %583
  %v587 = vmax.f32 %v433, %v582
  %v588 = vmax.f32 %v437, %v584
  %589 = vrot.lane.b32.xlu0 %v433, 112
  %v590 = vpop.permute.xlu0 %589
  %591 = vrot.lane.b32.xlu0 %v437, 112
  %v592 = vpop.permute.xlu0 %591
  %v595 = vmax.f32 %v587, %v590
  %v596 = vmax.f32 %v588, %v592
  %597 = vrot.lane.b32.xlu0 %v433, 104
  %v598 = vpop.permute.xlu0 %597
  %599 = vrot.lane.b32.xlu0 %v437, 104
  %v600 = vpop.permute.xlu0 %599
  %v603 = vmax.f32 %v595, %v598
  %v604 = vmax.f32 %v596, %v600
  %605 = vrot.lane.b32.xlu0 %v433, 96
  %v606 = vpop.permute.xlu0 %605
  %607 = vrot.lane.b32.xlu0 %v437, 96
  %v608 = vpop.permute.xlu0 %607
  %v611 = vmax.f32 %v603, %v606
  %v612 = vmax.f32 %v604, %v608
  %v613 = vmax.f32 %v611, %v535
  %v614 = vmax.f32 %v612, %v537
  %v615 = vmax.f32 %v613, %v543
  %v616 = vmax.f32 %v614, %v545
  %v617 = vmax.f32 %v615, %v551
  %v618 = vmax.f32 %v616, %v553
  %v619 = vmax.f32 %v617, %v559
  %v620 = vmax.f32 %v618, %v561
  %621 = vrot.lane.b32.xlu0 %v526, 24
  %v622 = vpop.permute.xlu0 %621
  %v624 = vadd.f32 %v619, %v622
  %v625 = vadd.f32 %v620, %v622
  %v626 = vmax.f32 %v624, 0.0
  %v627 = vmax.f32 %v625, 0.0
  %630 = vrot.lane.b32.xlu0 %v579, 48
  %v631 = vpop.permute.xlu0 %630
  %632 = vrot.lane.b32.xlu0 %v580, 48
  %v633 = vpop.permute.xlu0 %632
  %638 = vrot.lane.b32.xlu0 %v626, 104
  %v639 = vpop.permute.xlu0 %638
  %640 = vrot.lane.b32.xlu0 %v627, 104
  %v641 = vpop.permute.xlu0 %640
  %vm644 = vcmask 64512
  %v645 = vsel %vm644, %v530, %v631
  %v646 = vsel %vm644, %v531, %v633
  %vm647 = vcmask 130048
  %v648 = vsel %vm647, %v645, %v639
  %v649 = vsel %vm647, %v646, %v641
  %v650 = vld [vmem:[%s1] sm:$0xff]
  %v651 = vld [vmem:[%s1 + $0x8] sm:$0xff]
  %v652 = vld [vmem:[%s2] sm:$0xff]
  %v653 = vld [vmem:[%s2 + $0x8] sm:$0xff]
  %656 = vrot.lane.b32.xlu0 %v648, 32
  %v657 = vpop.permute.xlu0 %656
  %658 = vrot.lane.b32.xlu0 %v649, 32
  %v659 = vpop.permute.xlu0 %658
  %664 = vrot.lane.b32.xlu0 %v652, 56
  %v665 = vpop.permute.xlu0 %664
  %666 = vrot.lane.b32.xlu0 %v653, 56
  %v667 = vpop.permute.xlu0 %666
  %vm670 = vcmask 261120
  %v671 = vsel %vm670, %v650, %v657
  %v672 = vsel %vm670, %v651, %v659
  %vm673 = vcmask 457728
  %v674 = vsel %vm673, %v671, %v665
  %v675 = vsel %vm673, %v672, %v667
  %v676 = vpack.c.bf16 %v675, %v674
  %v677 = vld [vmem:[%s5] sm:$0xff]
  %v678 = vld [vmem:[%s5 + $0x8] sm:$0xff]
  %v679 = vld [vmem:[%s5 + $0x10] sm:$0xff]
  %v680 = vld [vmem:[%s5 + $0x18] sm:$0xff]
  %v681 = vld [vmem:[%s5 + $0x20] sm:$0xff]
  %v682 = vld [vmem:[%s5 + $0x28] sm:$0xff]
  %v683 = vld [vmem:[%s5 + $0x30] sm:$0xff]
  %v684 = vld [vmem:[%s5 + $0x38] sm:$0xff]
  %v685 = vld [vmem:[%s5 + $0x40] sm:$0xff]
  %v686 = vld [vmem:[%s5 + $0x48] sm:$0xff]
  %v687 = vld [vmem:[%s5 + $0x50] sm:$0xff]
  %v688 = vld [vmem:[%s6] sm:$0x3]
  %v690 = vlaneseq
  %v691 = vshrl.u32 %v690, 7
  %v692 = vsub.s32 0, %v691
  %v693 = vrot.slane %v688, %v692
  %v694 = vlaneseq
  %v695 = vshrl.u32 %v694, 7
  %v696 = vsub.s32 1, %v695
  %v697 = vrot.slane %v688, %v696
  %v711 = vunpack.c.l.b16 %v677
  %v712 = vunpack.c.h.b16 %v677
  %v713 = vunpack.c.l.b16 %v678
  %v714 = vunpack.c.h.b16 %v678
  %v715 = vunpack.c.l.b16 %v679
  %v716 = vunpack.c.h.b16 %v679
  %v717 = vunpack.c.l.b16 %v680
  %v718 = vunpack.c.h.b16 %v680
  %v719 = vunpack.c.l.b16 %v681
  %v720 = vunpack.c.h.b16 %v681
  %v721 = vunpack.c.l.b16 %v682
  %v722 = vunpack.c.h.b16 %v682
  %v723 = vunpack.c.l.b16 %v683
  %v724 = vunpack.c.h.b16 %v683
  %v725 = vunpack.c.l.b16 %v684
  %v726 = vunpack.c.h.b16 %v684
  %v727 = vunpack.c.l.b16 %v685
  %v728 = vunpack.c.h.b16 %v685
  %v729 = vunpack.c.l.b16 %v686
  %v730 = vunpack.c.h.b16 %v686
  %v731 = vunpack.c.l.b16 %v687
  %v732 = vunpack.c.h.b16 %v687
  %v733 = vpack.c.b16 %v713, %v711
  %v734 = vpack.c.b16 %v714, %v712
  %v735 = vpack.c.b16 %v717, %v715
  %v736 = vpack.c.b16 %v718, %v716
  %v737 = vpack.c.b16 %v721, %v719
  %v738 = vpack.c.b16 %v722, %v720
  %v739 = vpack.c.b16 %v725, %v723
  %v740 = vpack.c.b16 %v726, %v724
  %v741 = vpack.c.b16 %v729, %v727
  %v742 = vpack.c.b16 %v730, %v728
  %v743 = vpack.c.b16 %v731, %v731
  %v744 = vpack.c.b16 %v732, %v732
  %vm755 = vcmask 719872
  %v757 = vsel %vm755, %v676, 0
  %vm759 = vcmask 1043456
  %v761 = vsel %vm759, %v743, 0
  %v764 = vsel %vm759, %v744, 0
  %766 = vmatprep.subr.bf16.mxu0 %v734
  %767 = vmatpush1.bf16.msra.mxu0 %v733
  %768 = vmatprep.subr.bf16.mxu0 %v736
  %769 = vmatpush1.bf16.msra.mxu0 %v735
  %770 = vmatprep.subr.bf16.mxu0 %v738
  %771 = vmatpush1.bf16.msra.mxu0 %v737
  %772 = vmatprep.subr.bf16.mxu0 %v740
  %773 = vmatpush1.bf16.msra.mxu0 %v739
  %774 = vmatprep.subr.bf16.mxu0 %v742
  %775 = vmatpush1.bf16.msra.mxu0 %v741
  %776 = vmatprep.subr.bf16.mxu0 %v764
  %777 = vmatpush1.bf16.msra.mxu0 %v761
  %778 = vmatprep.subr.bf16.mxu0 0
  %779 = vmatpush1.bf16.msra.mxu0 0
  %780 = vmatprep.subr.bf16.mxu0 0
  %781 = vmatpush1.bf16.msra.mxu0 0
  %782 = vmatprep.subr.bf16.mxu0 0
  %783 = vmatpush1.bf16.msra.mxu0 0
  %784 = vmatprep.subr.bf16.mxu0 0
  %785 = vmatpush1.bf16.msra.mxu0 0
  %786 = vmatprep.subr.bf16.mxu0 0
  %787 = vmatpush1.bf16.msra.mxu0 0
  %788 = vmatprep.subr.bf16.mxu0 0
  %789 = vmatpush1.bf16.msra.mxu0 0
  %790 = vmatprep.subr.bf16.mxu0 0
  %791 = vmatpush1.bf16.msra.mxu0 0
  %792 = vmatprep.subr.bf16.mxu0 0
  %793 = vmatpush1.bf16.msra.mxu0 0
  %794 = vmatprep.subr.bf16.mxu0 0
  %795 = vmatpush1.bf16.msra.mxu0 0
  %796 = vmatprep.subr.bf16.mxu0 0
  %797 = vmatpush1.bf16.msra.mxu0 0
  %798 = vmatprep.mubr.bf16.mxu0 0
  %799 = vmatmul.mubr.bf16.gmra.mrb[0].mxu0 %v757
  %v800 = vpop.f32.mrb[0].mxu0
  %v801 = vadd.f32 %v693, %v800
  %v802 = vpop.f32.mrb[0].mxu0
  %v803 = vadd.f32 %v697, %v802
  %v804 = vpop.f32.mrb[0].mxu0
  %v805 = vadd.f32 %v693, %v804
  %v806 = vpop.f32.mrb[0].mxu0
  %v807 = vadd.f32 %v697, %v806
  %808 = vdwg.mxu0
  %v809 = vld [vmem:[%s7] sm:$0xff]
  %v810 = vld [vmem:[%s7 + $0x8] sm:$0xff]
  %v811 = vld [vmem:[%s7 + $0x10] sm:$0xff]
  %v812 = vld [vmem:[%s7 + $0x18] sm:$0xff]
  %v813 = vld [vmem:[%s7 + $0x20] sm:$0xff]
  %v814 = vld [vmem:[%s7 + $0x28] sm:$0xff]
  %v815 = vld [vmem:[%s7 + $0x30] sm:$0xff]
  %v816 = vld [vmem:[%s7 + $0x38] sm:$0xff]
  %v818 = vrot.slane %v807, 6
  %v828 = vunpack.c.l.b16 %v809
  %v829 = vunpack.c.h.b16 %v809
  %v830 = vunpack.c.l.b16 %v810
  %v831 = vunpack.c.h.b16 %v810
  %v832 = vunpack.c.l.b16 %v811
  %v833 = vunpack.c.h.b16 %v811
  %v834 = vunpack.c.l.b16 %v812
  %v835 = vunpack.c.h.b16 %v812
  %v836 = vunpack.c.l.b16 %v813
  %v837 = vunpack.c.h.b16 %v813
  %v838 = vunpack.c.l.b16 %v814
  %v839 = vunpack.c.h.b16 %v814
  %v840 = vunpack.c.l.b16 %v815
  %v841 = vunpack.c.h.b16 %v815
  %v842 = vunpack.c.l.b16 %v816
  %v843 = vunpack.c.h.b16 %v816
  %v844 = vpack.c.b16 %v830, %v828
  %v845 = vpack.c.b16 %v831, %v829
  %v846 = vpack.c.b16 %v834, %v832
  %v847 = vpack.c.b16 %v835, %v833
  %v848 = vpack.c.b16 %v838, %v836
  %v849 = vpack.c.b16 %v839, %v837
  %v850 = vpack.c.b16 %v842, %v840
  %v851 = vpack.c.b16 %v843, %v841
  %vm860 = vcmask 523264
  %v862 = vsel %vm860, 0, 0
  %864 = vmatprep.subr.bf16.mxu0 %v845
  %865 = vmatpush1.bf16.msra.mxu0 %v844
  %866 = vmatprep.subr.bf16.mxu0 %v847
  %867 = vmatpush1.bf16.msra.mxu0 %v846
  %868 = vmatprep.subr.bf16.mxu0 %v849
  %869 = vmatpush1.bf16.msra.mxu0 %v848
  %870 = vmatprep.subr.bf16.mxu0 %v851
  %871 = vmatpush1.bf16.msra.mxu0 %v850
  %872 = vmatprep.subr.bf16.mxu0 0
  %873 = vmatpush1.bf16.msra.mxu0 0
  %874 = vmatprep.subr.bf16.mxu0 0
  %875 = vmatpush1.bf16.msra.mxu0 0
  %876 = vmatprep.subr.bf16.mxu0 0
  %877 = vmatpush1.bf16.msra.mxu0 0
  %878 = vmatprep.subr.bf16.mxu0 0
  %879 = vmatpush1.bf16.msra.mxu0 0
  %880 = vmatprep.subr.bf16.mxu0 0
  %881 = vmatpush1.bf16.msra.mxu0 0
  %882 = vmatprep.subr.bf16.mxu0 0
  %883 = vmatpush1.bf16.msra.mxu0 0
  %884 = vmatprep.subr.bf16.mxu0 0
  %885 = vmatpush1.bf16.msra.mxu0 0
  %886 = vmatprep.subr.bf16.mxu0 0
  %887 = vmatpush1.bf16.msra.mxu0 0
  %888 = vmatprep.subr.bf16.mxu0 0
  %889 = vmatpush1.bf16.msra.mxu0 0
  %890 = vmatprep.subr.bf16.mxu0 0
  %891 = vmatpush1.bf16.msra.mxu0 0
  %892 = vmatprep.subr.bf16.mxu0 0
  %893 = vmatpush1.bf16.msra.mxu0 0
  %894 = vmatprep.subr.bf16.mxu0 0
  %895 = vmatpush1.bf16.msra.mxu0 0
  %896 = vmatprep.mubr.bf16.mxu0 0
  %897 = vmatmul.mubr.bf16.gmra.mrb[0].mxu0 %v862
  %v898 = vpop.f32.mrb[0].mxu0
  %v899 = vadd.f32 %v801, %v898
  %v900 = vpop.f32.mrb[0].mxu0
  %v901 = vadd.f32 %v818, %v900
  %v902 = vpop.f32.mrb[0].mxu0
  %v903 = vpop.f32.mrb[0].mxu0
  %904 = vdwg.mxu0
  %v905 = vxor.u32 %v899, 2147483648
  %v906 = vxor.u32 %v901, 2147483648
  %v907 = vmul.f32 %v905, 1.442695
  %v908 = vpow.pop %v907
  %v909 = vmul.f32 %v906, 1.442695
  %v910 = vpow.pop %v909
  %v911 = vadd.f32 %v908, 1.0
  %v912 = vadd.f32 %v910, 1.0
  %v913 = vrcp.pop %v911
  %v914 = vmul.f32 1.0, %v913
  %v915 = vrcp.pop %v912
  %v916 = vmul.f32 1.0, %v915
  %v917 = vtanh.pop %v899
  %v918 = vtanh.pop %v901
  %v919 = vmul.f32 %v914, 0.0
  %921 = vrot.lane.b32.xlu0 %v917, 64
  %v922 = vpop.permute.xlu0 %921
  %v924 = vmul.f32 %v914, %v922
  %926 = vrot.lane.b32.xlu0 %v924, 32
  %v927 = vpop.permute.xlu0 %926
  %v929 = vadd.f32 %v919, %v927
  %v930 = vmul.f32 %v916, 0.0
  %932 = vrot.lane.b32.xlu0 %v918, 64
  %v933 = vpop.permute.xlu0 %932
  %v935 = vmul.f32 %v916, %v933
  %937 = vrot.lane.b32.xlu0 %v935, 32
  %v938 = vpop.permute.xlu0 %937
  %v940 = vadd.f32 %v930, %v938
  %942 = vrot.lane.b32.xlu0 %v914, 32
  %v943 = vpop.permute.xlu0 %942
  %946 = vrot.lane.b32.xlu0 %v916, 64
  %v947 = vpop.permute.xlu0 %946
  %v949 = vsel %vm670, %v943, %v947
  %951 = vrot.lane.b32.xlu0 %v929, 96
  %v952 = vpop.permute.xlu0 %951
  %v954 = vsel %vm670, %v952, %v940
  %v955 = vtanh.pop %v954
  %v956 = vmul.f32 %v949, %v955
  %vm957 = vcmask 254976
  %958 = vst.msk [vmem:[#allocation2] sm:$0x3] %vm957, %v956
  %960 = vrot.lane.b32.xlu0 %v956, 96
  %v961 = vpop.permute.xlu0 %960
  %963 = vst.msk [vmem:[#allocation3 + $0xe] sm:$0x3] %vm957, %v961
  %v964 = vrot.slane %v807, 2
  %v965 = vpack.c.bf16 %v956, %v956
  %v967 = vrot.slane %v801, 2
  %v968 = vrot.slane %v964, 2
  %v972 = vsel %vm860, %v965, 0
  %974 = vmatprep.subr.bf16.mxu0 %v845
  %975 = vmatpush1.bf16.msra.mxu0 %v844
  %976 = vmatprep.subr.bf16.mxu0 %v847
  %977 = vmatpush1.bf16.msra.mxu0 %v846
  %978 = vmatprep.subr.bf16.mxu0 %v849
  %979 = vmatpush1.bf16.msra.mxu0 %v848
  %980 = vmatprep.subr.bf16.mxu0 %v851
  %981 = vmatpush1.bf16.msra.mxu0 %v850
  %982 = vmatprep.subr.bf16.mxu0 0
  %983 = vmatpush1.bf16.msra.mxu0 0
  %984 = vmatprep.subr.bf16.mxu0 0
  %985 = vmatpush1.bf16.msra.mxu0 0
  %986 = vmatprep.subr.bf16.mxu0 0
  %987 = vmatpush1.bf16.msra.mxu0 0
  %988 = vmatprep.subr.bf16.mxu0 0
  %989 = vmatpush1.bf16.msra.mxu0 0
  %990 = vmatprep.subr.bf16.mxu0 0
  %991 = vmatpush1.bf16.msra.mxu0 0
  %992 = vmatprep.subr.bf16.mxu0 0
  %993 = vmatpush1.bf16.msra.mxu0 0
  %994 = vmatprep.subr.bf16.mxu0 0
  %995 = vmatpush1.bf16.msra.mxu0 0
  %996 = vmatprep.subr.bf16.mxu0 0
  %997 = vmatpush1.bf16.msra.mxu0 0
  %998 = vmatprep.subr.bf16.mxu0 0
  %999 = vmatpush1.bf16.msra.mxu0 0
  %1000 = vmatprep.subr.bf16.mxu0 0
  %1001 = vmatpush1.bf16.msra.mxu0 0
  %1002 = vmatprep.subr.bf16.mxu0 0
  %1003 = vmatpush1.bf16.msra.mxu0 0
  %1004 = vmatprep.subr.bf16.mxu0 0
  %1005 = vmatpush1.bf16.msra.mxu0 0
  %1006 = vmatprep.mubr.bf16.mxu0 0
  %1007 = vmatmul.mubr.bf16.gmra.mrb[0].mxu0 %v972
  %v1008 = vpop.f32.mrb[0].mxu0
  %v1009 = vadd.f32 %v967, %v1008
  %v1010 = vpop.f32.mrb[0].mxu0
  %v1011 = vadd.f32 %v968, %v1010
  %v1012 = vpop.f32.mrb[0].mxu0
  %v1013 = vpop.f32.mrb[0].mxu0
  %1014 = vdwg.mxu0
  %v1015 = vxor.u32 %v1009, 2147483648
  %v1016 = vxor.u32 %v1011, 2147483648
  %v1017 = vmul.f32 %v1015, 1.442695
  %v1018 = vpow.pop %v1017
  %v1019 = vmul.f32 %v1016, 1.442695
  %v1020 = vpow.pop %v1019
  %v1021 = vadd.f32 %v1018, 1.0
  %v1022 = vadd.f32 %v1020, 1.0
  %v1023 = vrcp.pop %v1021
  %v1024 = vmul.f32 1.0, %v1023
  %v1025 = vrcp.pop %v1022
  %v1026 = vmul.f32 1.0, %v1025
  %v1027 = vtanh.pop %v1009
  %v1028 = vtanh.pop %v1011
  %v1029 = vmul.f32 %v1024, %v929
  %1031 = vrot.lane.b32.xlu0 %v1027, 64
  %v1032 = vpop.permute.xlu0 %1031
  %v1034 = vmul.f32 %v1024, %v1032
  %1036 = vrot.lane.b32.xlu0 %v1034, 32
  %v1037 = vpop.permute.xlu0 %1036
  %v1039 = vadd.f32 %v1029, %v1037
  %v1040 = vmul.f32 %v1026, %v940
  %1042 = vrot.lane.b32.xlu0 %v1028, 64
  %v1043 = vpop.permute.xlu0 %1042
  %v1045 = vmul.f32 %v1026, %v1043
  %1047 = vrot.lane.b32.xlu0 %v1045, 32
  %v1048 = vpop.permute.xlu0 %1047
  %v1050 = vadd.f32 %v1040, %v1048
  %1052 = vrot.lane.b32.xlu0 %v1024, 32
  %v1053 = vpop.permute.xlu0 %1052
  %1056 = vrot.lane.b32.xlu0 %v1026, 64
  %v1057 = vpop.permute.xlu0 %1056
  %v1059 = vsel %vm670, %v1053, %v1057
  %1061 = vrot.lane.b32.xlu0 %v1039, 96
  %v1062 = vpop.permute.xlu0 %1061
  %v1064 = vsel %vm670, %v1062, %v1050
  %v1065 = vtanh.pop %v1064
  %v1066 = vmul.f32 %v1059, %v1065
  %1067 = vst.msk [vmem:[#allocation2 + $0x2] sm:$0x3] %vm957, %v1066
  %1069 = vrot.lane.b32.xlu0 %v1066, 96
  %v1070 = vpop.permute.xlu0 %1069
  %1072 = vst.msk [vmem:[#allocation3 + $0xc] sm:$0x3] %vm957, %v1070
  %v1073 = vpack.c.bf16 %v1066, %v1066
  %v1074 = vrot.slane %v801, 4
  %v1075 = vrot.slane %v818, 4
  %v1079 = vsel %vm860, %v1073, 0
  %1081 = vmatprep.subr.bf16.mxu0 %v845
  %1082 = vmatpush1.bf16.msra.mxu0 %v844
  %1083 = vmatprep.subr.bf16.mxu0 %v847
  %1084 = vmatpush1.bf16.msra.mxu0 %v846
  %1085 = vmatprep.subr.bf16.mxu0 %v849
  %1086 = vmatpush1.bf16.msra.mxu0 %v848
  %1087 = vmatprep.subr.bf16.mxu0 %v851
  %1088 = vmatpush1.bf16.msra.mxu0 %v850
  %1089 = vmatprep.subr.bf16.mxu0 0
  %1090 = vmatpush1.bf16.msra.mxu0 0
  %1091 = vmatprep.subr.bf16.mxu0 0
  %1092 = vmatpush1.bf16.msra.mxu0 0
  %1093 = vmatprep.subr.bf16.mxu0 0
  %1094 = vmatpush1.bf16.msra.mxu0 0
  %1095 = vmatprep.subr.bf16.mxu0 0
  %1096 = vmatpush1.bf16.msra.mxu0 0
  %1097 = vmatprep.subr.bf16.mxu0 0
  %1098 = vmatpush1.bf16.msra.mxu0 0
  %1099 = vmatprep.subr.bf16.mxu0 0
  %1100 = vmatpush1.bf16.msra.mxu0 0
  %1101 = vmatprep.subr.bf16.mxu0 0
  %1102 = vmatpush1.bf16.msra.mxu0 0
  %1103 = vmatprep.subr.bf16.mxu0 0
  %1104 = vmatpush1.bf16.msra.mxu0 0
  %1105 = vmatprep.subr.bf16.mxu0 0
  %1106 = vmatpush1.bf16.msra.mxu0 0
  %1107 = vmatprep.subr.bf16.mxu0 0
  %1108 = vmatpush1.bf16.msra.mxu0 0
  %1109 = vmatprep.subr.bf16.mxu0 0
  %1110 = vmatpush1.bf16.msra.mxu0 0
  %1111 = vmatprep.subr.bf16.mxu0 0
  %1112 = vmatpush1.bf16.msra.mxu0 0
  %1113 = vmatprep.mubr.bf16.mxu0 0
  %1114 = vmatmul.mubr.bf16.gmra.mrb[0].mxu0 %v1079
  %v1115 = vpop.f32.mrb[0].mxu0
  %v1116 = vadd.f32 %v1074, %v1115
  %v1117 = vpop.f32.mrb[0].mxu0
  %v1118 = vadd.f32 %v1075, %v1117
  %v1119 = vpop.f32.mrb[0].mxu0
  %v1120 = vpop.f32.mrb[0].mxu0
  %1121 = vdwg.mxu0
  %v1122 = vxor.u32 %v1116, 2147483648
  %v1123 = vxor.u32 %v1118, 2147483648
  %v1124 = vmul.f32 %v1122, 1.442695
  %v1125 = vpow.pop %v1124
  %v1126 = vmul.f32 %v1123, 1.442695
  %v1127 = vpow.pop %v1126
  %v1128 = vadd.f32 %v1125, 1.0
  %v1129 = vadd.f32 %v1127, 1.0
  %v1130 = vrcp.pop %v1128
  %v1131 = vmul.f32 1.0, %v1130
  %v1132 = vrcp.pop %v1129
  %v1133 = vmul.f32 1.0, %v1132
  %v1134 = vtanh.pop %v1116
  %v1135 = vtanh.pop %v1118
  %v1136 = vmul.f32 %v1131, %v1039
  %1138 = vrot.lane.b32.xlu0 %v1134, 64
  %v1139 = vpop.permute.xlu0 %1138
  %v1141 = vmul.f32 %v1131, %v1139
  %1143 = vrot.lane.b32.xlu0 %v1141, 32
  %v1144 = vpop.permute.xlu0 %1143
  %v1146 = vadd.f32 %v1136, %v1144
  %v1147 = vmul.f32 %v1133, %v1050
  %1149 = vrot.lane.b32.xlu0 %v1135, 64
  %v1150 = vpop.permute.xlu0 %1149
  %v1152 = vmul.f32 %v1133, %v1150
  %1154 = vrot.lane.b32.xlu0 %v1152, 32
  %v1155 = vpop.permute.xlu0 %1154
  %v1157 = vadd.f32 %v1147, %v1155
  %1159 = vrot.lane.b32.xlu0 %v1131, 32
  %v1160 = vpop.permute.xlu0 %1159
  %1163 = vrot.lane.b32.xlu0 %v1133, 64
  %v1164 = vpop.permute.xlu0 %1163
  %v1166 = vsel %vm670, %v1160, %v1164
  %1168 = vrot.lane.b32.xlu0 %v1146, 96
  %v1169 = vpop.permute.xlu0 %1168
  %v1171 = vsel %vm670, %v1169, %v1157
  %v1172 = vtanh.pop %v1171
  %v1173 = vmul.f32 %v1166, %v1172
  %1174 = vst.msk [vmem:[#allocation2 + $0x4] sm:$0x3] %vm957, %v1173
  %1176 = vrot.lane.b32.xlu0 %v1173, 96
  %v1177 = vpop.permute.xlu0 %1176
  %1179 = vst.msk [vmem:[#allocation3 + $0xa] sm:$0x3] %vm957, %v1177
  %v1180 = vpack.c.bf16 %v1173, %v1173
  %v1181 = vrot.slane %v801, 6
  %v1182 = vrot.slane %v964, 6
  %v1186 = vsel %vm860, %v1180, 0
  %1188 = vmatprep.subr.bf16.mxu0 %v845
  %1189 = vmatpush1.bf16.msra.mxu0 %v844
  %1190 = vmatprep.subr.bf16.mxu0 %v847
  %1191 = vmatpush1.bf16.msra.mxu0 %v846
  %1192 = vmatprep.subr.bf16.mxu0 %v849
  %1193 = vmatpush1.bf16.msra.mxu0 %v848
  %1194 = vmatprep.subr.bf16.mxu0 %v851
  %1195 = vmatpush1.bf16.msra.mxu0 %v850
  %1196 = vmatprep.subr.bf16.mxu0 0
  %1197 = vmatpush1.bf16.msra.mxu0 0
  %1198 = vmatprep.subr.bf16.mxu0 0
  %1199 = vmatpush1.bf16.msra.mxu0 0
  %1200 = vmatprep.subr.bf16.mxu0 0
  %1201 = vmatpush1.bf16.msra.mxu0 0
  %1202 = vmatprep.subr.bf16.mxu0 0
  %1203 = vmatpush1.bf16.msra.mxu0 0
  %1204 = vmatprep.subr.bf16.mxu0 0
  %1205 = vmatpush1.bf16.msra.mxu0 0
  %1206 = vmatprep.subr.bf16.mxu0 0
  %1207 = vmatpush1.bf16.msra.mxu0 0
  %1208 = vmatprep.subr.bf16.mxu0 0
  %1209 = vmatpush1.bf16.msra.mxu0 0
  %1210 = vmatprep.subr.bf16.mxu0 0
  %1211 = vmatpush1.bf16.msra.mxu0 0
  %1212 = vmatprep.subr.bf16.mxu0 0
  %1213 = vmatpush1.bf16.msra.mxu0 0
  %1214 = vmatprep.subr.bf16.mxu0 0
  %1215 = vmatpush1.bf16.msra.mxu0 0
  %1216 = vmatprep.subr.bf16.mxu0 0
  %1217 = vmatpush1.bf16.msra.mxu0 0
  %1218 = vmatprep.subr.bf16.mxu0 0
  %1219 = vmatpush1.bf16.msra.mxu0 0
  %1220 = vmatprep.mubr.bf16.mxu0 0
  %1221 = vmatmul.mubr.bf16.gmra.mrb[0].mxu0 %v1186
  %v1222 = vpop.f32.mrb[0].mxu0
  %v1223 = vadd.f32 %v1181, %v1222
  %v1224 = vpop.f32.mrb[0].mxu0
  %v1225 = vadd.f32 %v1182, %v1224
  %v1226 = vpop.f32.mrb[0].mxu0
  %v1227 = vpop.f32.mrb[0].mxu0
  %1228 = vdwg.mxu0
  %v1229 = vxor.u32 %v1223, 2147483648
  %v1230 = vxor.u32 %v1225, 2147483648
  %v1231 = vmul.f32 %v1229, 1.442695
  %v1232 = vpow.pop %v1231
  %v1233 = vmul.f32 %v1230, 1.442695
  %v1234 = vpow.pop %v1233
  %v1235 = vadd.f32 %v1232, 1.0
  %v1236 = vadd.f32 %v1234, 1.0
  %v1237 = vrcp.pop %v1235
  %v1238 = vmul.f32 1.0, %v1237
  %v1239 = vrcp.pop %v1236
  %v1240 = vmul.f32 1.0, %v1239
  %v1241 = vtanh.pop %v1223
  %v1242 = vtanh.pop %v1225
  %v1243 = vmul.f32 %v1238, %v1146
  %1245 = vrot.lane.b32.xlu0 %v1241, 64
  %v1246 = vpop.permute.xlu0 %1245
  %v1248 = vmul.f32 %v1238, %v1246
  %1250 = vrot.lane.b32.xlu0 %v1248, 32
  %v1251 = vpop.permute.xlu0 %1250
  %v1253 = vadd.f32 %v1243, %v1251
  %v1254 = vmul.f32 %v1240, %v1157
  %1256 = vrot.lane.b32.xlu0 %v1242, 64
  %v1257 = vpop.permute.xlu0 %1256
  %v1259 = vmul.f32 %v1240, %v1257
  %1261 = vrot.lane.b32.xlu0 %v1259, 32
  %v1262 = vpop.permute.xlu0 %1261
  %v1264 = vadd.f32 %v1254, %v1262
  %1266 = vrot.lane.b32.xlu0 %v1238, 32
  %v1267 = vpop.permute.xlu0 %1266
  %1270 = vrot.lane.b32.xlu0 %v1240, 64
  %v1271 = vpop.permute.xlu0 %1270
  %v1273 = vsel %vm670, %v1267, %v1271
  %1275 = vrot.lane.b32.xlu0 %v1253, 96
  %v1276 = vpop.permute.xlu0 %1275
  %v1278 = vsel %vm670, %v1276, %v1264
  %v1279 = vtanh.pop %v1278
  %v1280 = vmul.f32 %v1273, %v1279
  %1281 = vst.msk [vmem:[#allocation2 + $0x6] sm:$0x3] %vm957, %v1280
  %1283 = vrot.lane.b32.xlu0 %v1280, 96
  %v1284 = vpop.permute.xlu0 %1283
  %1286 = vst.msk [vmem:[#allocation3 + $0x8] sm:$0x3] %vm957, %v1284
  %v1288 = vrot.slane %v803, 6
  %v1290 = vpack.c.bf16 %v1280, %v1280
  %v1292 = vsel %vm860, %v1290, 0
  %1294 = vmatprep.subr.bf16.mxu0 %v845
  %1295 = vmatpush1.bf16.msra.mxu0 %v844
  %1296 = vmatprep.subr.bf16.mxu0 %v847
  %1297 = vmatpush1.bf16.msra.mxu0 %v846
  %1298 = vmatprep.subr.bf16.mxu0 %v849
  %1299 = vmatpush1.bf16.msra.mxu0 %v848
  %1300 = vmatprep.subr.bf16.mxu0 %v851
  %1301 = vmatpush1.bf16.msra.mxu0 %v850
  %1302 = vmatprep.subr.bf16.mxu0 0
  %1303 = vmatpush1.bf16.msra.mxu0 0
  %1304 = vmatprep.subr.bf16.mxu0 0
  %1305 = vmatpush1.bf16.msra.mxu0 0
  %1306 = vmatprep.subr.bf16.mxu0 0
  %1307 = vmatpush1.bf16.msra.mxu0 0
  %1308 = vmatprep.subr.bf16.mxu0 0
  %1309 = vmatpush1.bf16.msra.mxu0 0
  %1310 = vmatprep.subr.bf16.mxu0 0
  %1311 = vmatpush1.bf16.msra.mxu0 0
  %1312 = vmatprep.subr.bf16.mxu0 0
  %1313 = vmatpush1.bf16.msra.mxu0 0
  %1314 = vmatprep.subr.bf16.mxu0 0
  %1315 = vmatpush1.bf16.msra.mxu0 0
  %1316 = vmatprep.subr.bf16.mxu0 0
  %1317 = vmatpush1.bf16.msra.mxu0 0
  %1318 = vmatprep.subr.bf16.mxu0 0
  %1319 = vmatpush1.bf16.msra.mxu0 0
  %1320 = vmatprep.subr.bf16.mxu0 0
  %1321 = vmatpush1.bf16.msra.mxu0 0
  %1322 = vmatprep.subr.bf16.mxu0 0
  %1323 = vmatpush1.bf16.msra.mxu0 0
  %1324 = vmatprep.subr.bf16.mxu0 0
  %1325 = vmatpush1.bf16.msra.mxu0 0
  %1326 = vmatprep.mubr.bf16.mxu0 0
  %1327 = vmatmul.mubr.bf16.gmra.mrb[0].mxu0 %v1292
  %v1328 = vpop.f32.mrb[0].mxu0
  %v1329 = vadd.f32 %v805, %v1328
  %v1330 = vpop.f32.mrb[0].mxu0
  %v1331 = vadd.f32 %v1288, %v1330
  %v1332 = vpop.f32.mrb[0].mxu0
  %v1333 = vpop.f32.mrb[0].mxu0
  %1334 = vdwg.mxu0
  %v1335 = vxor.u32 %v1329, 2147483648
  %v1336 = vxor.u32 %v1331, 2147483648
  %v1337 = vmul.f32 %v1335, 1.442695
  %v1338 = vpow.pop %v1337
  %v1339 = vmul.f32 %v1336, 1.442695
  %v1340 = vpow.pop %v1339
  %v1341 = vadd.f32 %v1338, 1.0
  %v1342 = vadd.f32 %v1340, 1.0
  %v1343 = vrcp.pop %v1341
  %v1344 = vmul.f32 1.0, %v1343
  %v1345 = vrcp.pop %v1342
  %v1346 = vmul.f32 1.0, %v1345
  %v1347 = vtanh.pop %v1329
  %v1348 = vtanh.pop %v1331
  %v1349 = vmul.f32 %v1344, %v1253
  %1351 = vrot.lane.b32.xlu0 %v1347, 64
  %v1352 = vpop.permute.xlu0 %1351
  %v1354 = vmul.f32 %v1344, %v1352
  %1356 = vrot.lane.b32.xlu0 %v1354, 32
  %v1357 = vpop.permute.xlu0 %1356
  %v1359 = vadd.f32 %v1349, %v1357
  %v1360 = vmul.f32 %v1346, %v1264
  %1362 = vrot.lane.b32.xlu0 %v1348, 64
  %v1363 = vpop.permute.xlu0 %1362
  %v1365 = vmul.f32 %v1346, %v1363
  %1367 = vrot.lane.b32.xlu0 %v1365, 32
  %v1368 = vpop.permute.xlu0 %1367
  %v1370 = vadd.f32 %v1360, %v1368
  %1372 = vrot.lane.b32.xlu0 %v1344, 32
  %v1373 = vpop.permute.xlu0 %1372
  %1376 = vrot.lane.b32.xlu0 %v1346, 64
  %v1377 = vpop.permute.xlu0 %1376
  %v1379 = vsel %vm670, %v1373, %v1377
  %1381 = vrot.lane.b32.xlu0 %v1359, 96
  %v1382 = vpop.permute.xlu0 %1381
  %v1384 = vsel %vm670, %v1382, %v1370
  %v1385 = vtanh.pop %v1384
  %v1386 = vmul.f32 %v1379, %v1385
  %1387 = vst.msk [vmem:[#allocation2 + $0x8] sm:$0x3] %vm957, %v1386
  %1389 = vrot.lane.b32.xlu0 %v1386, 96
  %v1390 = vpop.permute.xlu0 %1389
  %1392 = vst.msk [vmem:[#allocation3 + $0x6] sm:$0x3] %vm957, %v1390
  %v1393 = vrot.slane %v803, 2
  %v1394 = vpack.c.bf16 %v1386, %v1386
  %v1396 = vrot.slane %v805, 2
  %v1397 = vrot.slane %v1393, 2
  %v1401 = vsel %vm860, %v1394, 0
  %1403 = vmatprep.subr.bf16.mxu0 %v845
  %1404 = vmatpush1.bf16.msra.mxu0 %v844
  %1405 = vmatprep.subr.bf16.mxu0 %v847
  %1406 = vmatpush1.bf16.msra.mxu0 %v846
  %1407 = vmatprep.subr.bf16.mxu0 %v849
  %1408 = vmatpush1.bf16.msra.mxu0 %v848
  %1409 = vmatprep.subr.bf16.mxu0 %v851
  %1410 = vmatpush1.bf16.msra.mxu0 %v850
  %1411 = vmatprep.subr.bf16.mxu0 0
  %1412 = vmatpush1.bf16.msra.mxu0 0
  %1413 = vmatprep.subr.bf16.mxu0 0
  %1414 = vmatpush1.bf16.msra.mxu0 0
  %1415 = vmatprep.subr.bf16.mxu0 0
  %1416 = vmatpush1.bf16.msra.mxu0 0
  %1417 = vmatprep.subr.bf16.mxu0 0
  %1418 = vmatpush1.bf16.msra.mxu0 0
  %1419 = vmatprep.subr.bf16.mxu0 0
  %1420 = vmatpush1.bf16.msra.mxu0 0
  %1421 = vmatprep.subr.bf16.mxu0 0
  %1422 = vmatpush1.bf16.msra.mxu0 0
  %1423 = vmatprep.subr.bf16.mxu0 0
  %1424 = vmatpush1.bf16.msra.mxu0 0
  %1425 = vmatprep.subr.bf16.mxu0 0
  %1426 = vmatpush1.bf16.msra.mxu0 0
  %1427 = vmatprep.subr.bf16.mxu0 0
  %1428 = vmatpush1.bf16.msra.mxu0 0
  %1429 = vmatprep.subr.bf16.mxu0 0
  %1430 = vmatpush1.bf16.msra.mxu0 0
  %1431 = vmatprep.subr.bf16.mxu0 0
  %1432 = vmatpush1.bf16.msra.mxu0 0
  %1433 = vmatprep.subr.bf16.mxu0 0
  %1434 = vmatpush1.bf16.msra.mxu0 0
  %1435 = vmatprep.mubr.bf16.mxu0 0
  %1436 = vmatmul.mubr.bf16.gmra.mrb[0].mxu0 %v1401
  %v1437 = vpop.f32.mrb[0].mxu0
  %v1438 = vadd.f32 %v1396, %v1437
  %v1439 = vpop.f32.mrb[0].mxu0
  %v1440 = vadd.f32 %v1397, %v1439
  %v1441 = vpop.f32.mrb[0].mxu0
  %v1442 = vpop.f32.mrb[0].mxu0
  %1443 = vdwg.mxu0
  %v1444 = vxor.u32 %v1438, 2147483648
  %v1445 = vxor.u32 %v1440, 2147483648
  %v1446 = vmul.f32 %v1444, 1.442695
  %v1447 = vpow.pop %v1446
  %v1448 = vmul.f32 %v1445, 1.442695
  %v1449 = vpow.pop %v1448
  %v1450 = vadd.f32 %v1447, 1.0
  %v1451 = vadd.f32 %v1449, 1.0
  %v1452 = vrcp.pop %v1450
  %v1453 = vmul.f32 1.0, %v1452
  %v1454 = vrcp.pop %v1451
  %v1455 = vmul.f32 1.0, %v1454
  %v1456 = vtanh.pop %v1438
  %v1457 = vtanh.pop %v1440
  %v1458 = vmul.f32 %v1453, %v1359
  %1460 = vrot.lane.b32.xlu0 %v1456, 64
  %v1461 = vpop.permute.xlu0 %1460
  %v1463 = vmul.f32 %v1453, %v1461
  %1465 = vrot.lane.b32.xlu0 %v1463, 32
  %v1466 = vpop.permute.xlu0 %1465
  %v1468 = vadd.f32 %v1458, %v1466
  %v1469 = vmul.f32 %v1455, %v1370
  %1471 = vrot.lane.b32.xlu0 %v1457, 64
  %v1472 = vpop.permute.xlu0 %1471
  %v1474 = vmul.f32 %v1455, %v1472
  %1476 = vrot.lane.b32.xlu0 %v1474, 32
  %v1477 = vpop.permute.xlu0 %1476
  %v1479 = vadd.f32 %v1469, %v1477
  %1481 = vrot.lane.b32.xlu0 %v1453, 32
  %v1482 = vpop.permute.xlu0 %1481
  %1485 = vrot.lane.b32.xlu0 %v1455, 64
  %v1486 = vpop.permute.xlu0 %1485
  %v1488 = vsel %vm670, %v1482, %v1486
  %1490 = vrot.lane.b32.xlu0 %v1468, 96
  %v1491 = vpop.permute.xlu0 %1490
  %v1493 = vsel %vm670, %v1491, %v1479
  %v1494 = vtanh.pop %v1493
  %v1495 = vmul.f32 %v1488, %v1494
  %1496 = vst.msk [vmem:[#allocation2 + $0xa] sm:$0x3] %vm957, %v1495
  %1498 = vrot.lane.b32.xlu0 %v1495, 96
  %v1499 = vpop.permute.xlu0 %1498
  %1501 = vst.msk [vmem:[#allocation3 + $0x4] sm:$0x3] %vm957, %v1499
  %v1502 = vpack.c.bf16 %v1495, %v1495
  %v1503 = vrot.slane %v805, 4
  %v1504 = vrot.slane %v1288, 4
  %v1508 = vsel %vm860, %v1502, 0
  %1510 = vmatprep.subr.bf16.mxu0 %v845
  %1511 = vmatpush1.bf16.msra.mxu0 %v844
  %1512 = vmatprep.subr.bf16.mxu0 %v847
  %1513 = vmatpush1.bf16.msra.mxu0 %v846
  %1514 = vmatprep.subr.bf16.mxu0 %v849
  %1515 = vmatpush1.bf16.msra.mxu0 %v848
  %1516 = vmatprep.subr.bf16.mxu0 %v851
  %1517 = vmatpush1.bf16.msra.mxu0 %v850
  %1518 = vmatprep.subr.bf16.mxu0 0
  %1519 = vmatpush1.bf16.msra.mxu0 0
  %1520 = vmatprep.subr.bf16.mxu0 0
  %1521 = vmatpush1.bf16.msra.mxu0 0
  %1522 = vmatprep.subr.bf16.mxu0 0
  %1523 = vmatpush1.bf16.msra.mxu0 0
  %1524 = vmatprep.subr.bf16.mxu0 0
  %1525 = vmatpush1.bf16.msra.mxu0 0
  %1526 = vmatprep.subr.bf16.mxu0 0
  %1527 = vmatpush1.bf16.msra.mxu0 0
  %1528 = vmatprep.subr.bf16.mxu0 0
  %1529 = vmatpush1.bf16.msra.mxu0 0
  %1530 = vmatprep.subr.bf16.mxu0 0
  %1531 = vmatpush1.bf16.msra.mxu0 0
  %1532 = vmatprep.subr.bf16.mxu0 0
  %1533 = vmatpush1.bf16.msra.mxu0 0
  %1534 = vmatprep.subr.bf16.mxu0 0
  %1535 = vmatpush1.bf16.msra.mxu0 0
  %1536 = vmatprep.subr.bf16.mxu0 0
  %1537 = vmatpush1.bf16.msra.mxu0 0
  %1538 = vmatprep.subr.bf16.mxu0 0
  %1539 = vmatpush1.bf16.msra.mxu0 0
  %1540 = vmatprep.subr.bf16.mxu0 0
  %1541 = vmatpush1.bf16.msra.mxu0 0
  %1542 = vmatprep.mubr.bf16.mxu0 0
  %1543 = vmatmul.mubr.bf16.gmra.mrb[0].mxu0 %v1508
  %v1544 = vpop.f32.mrb[0].mxu0
  %v1545 = vadd.f32 %v1503, %v1544
  %v1546 = vpop.f32.mrb[0].mxu0
  %v1547 = vadd.f32 %v1504, %v1546
  %v1548 = vpop.f32.mrb[0].mxu0
  %v1549 = vpop.f32.mrb[0].mxu0
  %1550 = vdwg.mxu0
  %v1551 = vxor.u32 %v1545, 2147483648
  %v1552 = vxor.u32 %v1547, 2147483648
  %v1553 = vmul.f32 %v1551, 1.442695
  %v1554 = vpow.pop %v1553
  %v1555 = vmul.f32 %v1552, 1.442695
  %v1556 = vpow.pop %v1555
  %v1557 = vadd.f32 %v1554, 1.0
  %v1558 = vadd.f32 %v1556, 1.0
  %v1559 = vrcp.pop %v1557
  %v1560 = vmul.f32 1.0, %v1559
  %v1561 = vrcp.pop %v1558
  %v1562 = vmul.f32 1.0, %v1561
  %v1563 = vtanh.pop %v1545
  %v1564 = vtanh.pop %v1547
  %v1565 = vmul.f32 %v1560, %v1468
  %1567 = vrot.lane.b32.xlu0 %v1563, 64
  %v1568 = vpop.permute.xlu0 %1567
  %v1570 = vmul.f32 %v1560, %v1568
  %1572 = vrot.lane.b32.xlu0 %v1570, 32
  %v1573 = vpop.permute.xlu0 %1572
  %v1575 = vadd.f32 %v1565, %v1573
  %v1576 = vmul.f32 %v1562, %v1479
  %1578 = vrot.lane.b32.xlu0 %v1564, 64
  %v1579 = vpop.permute.xlu0 %1578
  %v1581 = vmul.f32 %v1562, %v1579
  %1583 = vrot.lane.b32.xlu0 %v1581, 32
  %v1584 = vpop.permute.xlu0 %1583
  %v1586 = vadd.f32 %v1576, %v1584
  %1588 = vrot.lane.b32.xlu0 %v1560, 32
  %v1589 = vpop.permute.xlu0 %1588
  %1592 = vrot.lane.b32.xlu0 %v1562, 64
  %v1593 = vpop.permute.xlu0 %1592
  %v1595 = vsel %vm670, %v1589, %v1593
  %1597 = vrot.lane.b32.xlu0 %v1575, 96
  %v1598 = vpop.permute.xlu0 %1597
  %v1600 = vsel %vm670, %v1598, %v1586
  %v1601 = vtanh.pop %v1600
  %v1602 = vmul.f32 %v1595, %v1601
  %1603 = vst.msk [vmem:[#allocation2 + $0xc] sm:$0x3] %vm957, %v1602
  %1605 = vrot.lane.b32.xlu0 %v1602, 96
  %v1606 = vpop.permute.xlu0 %1605
  %1608 = vst.msk [vmem:[#allocation3 + $0x2] sm:$0x3] %vm957, %v1606
  %v1609 = vpack.c.bf16 %v1602, %v1602
  %v1610 = vrot.slane %v805, 6
  %v1611 = vrot.slane %v1393, 6
  %v1615 = vsel %vm860, %v1609, 0
  %1617 = vmatprep.subr.bf16.mxu0 %v845
  %1618 = vmatpush1.bf16.msra.mxu0 %v844
  %1619 = vmatprep.subr.bf16.mxu0 %v847
  %1620 = vmatpush1.bf16.msra.mxu0 %v846
  %1621 = vmatprep.subr.bf16.mxu0 %v849
  %1622 = vmatpush1.bf16.msra.mxu0 %v848
  %1623 = vmatprep.subr.bf16.mxu0 %v851
  %1624 = vmatpush1.bf16.msra.mxu0 %v850
  %1625 = vmatprep.subr.bf16.mxu0 0
  %1626 = vmatpush1.bf16.msra.mxu0 0
  %1627 = vmatprep.subr.bf16.mxu0 0
  %1628 = vmatpush1.bf16.msra.mxu0 0
  %1629 = vmatprep.subr.bf16.mxu0 0
  %1630 = vmatpush1.bf16.msra.mxu0 0
  %1631 = vmatprep.subr.bf16.mxu0 0
  %1632 = vmatpush1.bf16.msra.mxu0 0
  %1633 = vmatprep.subr.bf16.mxu0 0
  %1634 = vmatpush1.bf16.msra.mxu0 0
  %1635 = vmatprep.subr.bf16.mxu0 0
  %1636 = vmatpush1.bf16.msra.mxu0 0
  %1637 = vmatprep.subr.bf16.mxu0 0
  %1638 = vmatpush1.bf16.msra.mxu0 0
  %1639 = vmatprep.subr.bf16.mxu0 0
  %1640 = vmatpush1.bf16.msra.mxu0 0
  %1641 = vmatprep.subr.bf16.mxu0 0
  %1642 = vmatpush1.bf16.msra.mxu0 0
  %1643 = vmatprep.subr.bf16.mxu0 0
  %1644 = vmatpush1.bf16.msra.mxu0 0
  %1645 = vmatprep.subr.bf16.mxu0 0
  %1646 = vmatpush1.bf16.msra.mxu0 0
  %1647 = vmatprep.subr.bf16.mxu0 0
  %1648 = vmatpush1.bf16.msra.mxu0 0
  %1649 = vmatprep.mubr.bf16.mxu0 0
  %1650 = vmatmul.mubr.bf16.gmra.mrb[0].mxu0 %v1615
  %v1651 = vpop.f32.mrb[0].mxu0
  %v1652 = vadd.f32 %v1610, %v1651
  %v1653 = vpop.f32.mrb[0].mxu0
  %v1654 = vadd.f32 %v1611, %v1653
  %v1655 = vpop.f32.mrb[0].mxu0
  %v1656 = vpop.f32.mrb[0].mxu0
  %1657 = vdwg.mxu0
  %v1658 = vxor.u32 %v1652, 2147483648
  %v1659 = vxor.u32 %v1654, 2147483648
  %v1660 = vmul.f32 %v1658, 1.442695
  %v1661 = vpow.pop %v1660
  %v1662 = vmul.f32 %v1659, 1.442695
  %v1663 = vpow.pop %v1662
  %v1664 = vadd.f32 %v1661, 1.0
  %v1665 = vadd.f32 %v1663, 1.0
  %v1666 = vrcp.pop %v1664
  %v1667 = vmul.f32 1.0, %v1666
  %v1668 = vrcp.pop %v1665
  %v1669 = vmul.f32 1.0, %v1668
  %v1670 = vtanh.pop %v1652
  %v1671 = vtanh.pop %v1654
  %v1672 = vmul.f32 %v1667, %v1575
  %1674 = vrot.lane.b32.xlu0 %v1670, 64
  %v1675 = vpop.permute.xlu0 %1674
  %v1677 = vmul.f32 %v1667, %v1675
  %1679 = vrot.lane.b32.xlu0 %v1677, 32
  %v1680 = vpop.permute.xlu0 %1679
  %v1682 = vadd.f32 %v1672, %v1680
  %v1683 = vmul.f32 %v1669, %v1586
  %1685 = vrot.lane.b32.xlu0 %v1671, 64
  %v1686 = vpop.permute.xlu0 %1685
  %v1688 = vmul.f32 %v1669, %v1686
  %1690 = vrot.lane.b32.xlu0 %v1688, 32
  %v1691 = vpop.permute.xlu0 %1690
  %v1693 = vadd.f32 %v1683, %v1691
  %1695 = vrot.lane.b32.xlu0 %v1667, 32
  %v1696 = vpop.permute.xlu0 %1695
  %1699 = vrot.lane.b32.xlu0 %v1669, 64
  %v1700 = vpop.permute.xlu0 %1699
  %v1702 = vsel %vm670, %v1696, %v1700
  %1704 = vrot.lane.b32.xlu0 %v1682, 96
  %v1705 = vpop.permute.xlu0 %1704
  %v1707 = vsel %vm670, %v1705, %v1693
  %v1708 = vtanh.pop %v1707
  %v1709 = vmul.f32 %v1702, %v1708
  %1710 = vst.msk [vmem:[#allocation2 + $0xe] sm:$0x3] %vm957, %v1709
  %1712 = vrot.lane.b32.xlu0 %v1709, 96
  %v1713 = vpop.permute.xlu0 %1712
  %1715 = vst.msk [vmem:[#allocation3] sm:$0x3] %vm957, %v1713
  %v1716 = vld [vmem:[#allocation2] sm:$0xff]
  %v1717 = vld [vmem:[#allocation2 + $0x8] sm:$0xff]
  %v1718 = vld [vmem:[#allocation3] sm:$0xff]
  %v1719 = vld [vmem:[#allocation3 + $0x8] sm:$0xff]
  %1722 = vrot.lane.b32.xlu0 %v1718, 32
  %v1723 = vpop.permute.xlu0 %1722
  %1724 = vrot.lane.b32.xlu0 %v1719, 32
  %v1725 = vpop.permute.xlu0 %1724
  %v1728 = vsel %vm670, %v1716, %v1723
  %v1729 = vsel %vm670, %v1717, %v1725
  %v1730 = vpack.c.bf16 %v1729, %v1728
  %v1731 = vld [vmem:[%s8] sm:$0xff]
  %v1732 = vld [vmem:[%s8 + $0x8] sm:$0xff]
  %v1733 = vld [vmem:[%s8 + $0x10] sm:$0xff]
  %v1734 = vld [vmem:[%s8 + $0x18] sm:$0xff]
  %v1735 = vld [vmem:[%s8 + $0x20] sm:$0xff]
  %v1736 = vld [vmem:[%s8 + $0x28] sm:$0xff]
  %v1737 = vld [vmem:[%s8 + $0x30] sm:$0xff]
  %v1738 = vld [vmem:[%s8 + $0x38] sm:$0xff]
  %v1739 = vld [vmem:[%s9] sm:$0x3]
  %v1741 = vlaneseq
  %v1742 = vshrl.u32 %v1741, 7
  %v1743 = vsub.s32 0, %v1742
  %v1744 = vrot.slane %v1739, %v1743
  %v1745 = vlaneseq
  %v1746 = vshrl.u32 %v1745, 7
  %v1747 = vsub.s32 1, %v1746
  %v1748 = vrot.slane %v1739, %v1747
  %v1759 = vunpack.c.l.b16 %v1731
  %v1760 = vunpack.c.h.b16 %v1731
  %v1761 = vunpack.c.l.b16 %v1732
  %v1762 = vunpack.c.h.b16 %v1732
  %v1763 = vunpack.c.l.b16 %v1733
  %v1764 = vunpack.c.h.b16 %v1733
  %v1765 = vunpack.c.l.b16 %v1734
  %v1766 = vunpack.c.h.b16 %v1734
  %v1767 = vunpack.c.l.b16 %v1735
  %v1768 = vunpack.c.h.b16 %v1735
  %v1769 = vunpack.c.l.b16 %v1736
  %v1770 = vunpack.c.h.b16 %v1736
  %v1771 = vunpack.c.l.b16 %v1737
  %v1772 = vunpack.c.h.b16 %v1737
  %v1773 = vunpack.c.l.b16 %v1738
  %v1774 = vunpack.c.h.b16 %v1738
  %v1775 = vpack.c.b16 %v1761, %v1759
  %v1776 = vpack.c.b16 %v1762, %v1760
  %v1777 = vpack.c.b16 %v1765, %v1763
  %v1778 = vpack.c.b16 %v1766, %v1764
  %v1779 = vpack.c.b16 %v1769, %v1767
  %v1780 = vpack.c.b16 %v1770, %v1768
  %v1781 = vpack.c.b16 %v1773, %v1771
  %v1782 = vpack.c.b16 %v1774, %v1772
  %v1792 = vsel %vm860, %v1730, 0
  %1794 = vmatprep.subr.bf16.mxu0 %v1776
  %1795 = vmatpush1.bf16.msra.mxu0 %v1775
  %1796 = vmatprep.subr.bf16.mxu0 %v1778
  %1797 = vmatpush1.bf16.msra.mxu0 %v1777
  %1798 = vmatprep.subr.bf16.mxu0 %v1780
  %1799 = vmatpush1.bf16.msra.mxu0 %v1779
  %1800 = vmatprep.subr.bf16.mxu0 %v1782
  %1801 = vmatpush1.bf16.msra.mxu0 %v1781
  %1802 = vmatprep.subr.bf16.mxu0 0
  %1803 = vmatpush1.bf16.msra.mxu0 0
  %1804 = vmatprep.subr.bf16.mxu0 0
  %1805 = vmatpush1.bf16.msra.mxu0 0
  %1806 = vmatprep.subr.bf16.mxu0 0
  %1807 = vmatpush1.bf16.msra.mxu0 0
  %1808 = vmatprep.subr.bf16.mxu0 0
  %1809 = vmatpush1.bf16.msra.mxu0 0
  %1810 = vmatprep.subr.bf16.mxu0 0
  %1811 = vmatpush1.bf16.msra.mxu0 0
  %1812 = vmatprep.subr.bf16.mxu0 0
  %1813 = vmatpush1.bf16.msra.mxu0 0
  %1814 = vmatprep.subr.bf16.mxu0 0
  %1815 = vmatpush1.bf16.msra.mxu0 0
  %1816 = vmatprep.subr.bf16.mxu0 0
  %1817 = vmatpush1.bf16.msra.mxu0 0
  %1818 = vmatprep.subr.bf16.mxu0 0
  %1819 = vmatpush1.bf16.msra.mxu0 0
  %1820 = vmatprep.subr.bf16.mxu0 0
  %1821 = vmatpush1.bf16.msra.mxu0 0
  %1822 = vmatprep.subr.bf16.mxu0 0
  %1823 = vmatpush1.bf16.msra.mxu0 0
  %1824 = vmatprep.subr.bf16.mxu0 0
  %1825 = vmatpush1.bf16.msra.mxu0 0
  %1826 = vmatprep.mubr.bf16.mxu0 0
  %1827 = vmatmul.mubr.bf16.gmra.mrb[0].mxu0 %v1792
  %v1828 = vpop.f32.mrb[0].mxu0
  %v1829 = vadd.f32 %v1744, %v1828
  %v1830 = vpop.f32.mrb[0].mxu0
  %v1831 = vadd.f32 %v1748, %v1830
  %v1832 = vpop.f32.mrb[0].mxu0
  %v1833 = vadd.f32 %v1744, %v1832
  %v1834 = vpop.f32.mrb[0].mxu0
  %v1835 = vadd.f32 %v1748, %v1834
  %1836 = vdwg.mxu0
  %v1837 = vld [vmem:[%s10] sm:$0xff]
  %v1838 = vld [vmem:[%s10 + $0x8] sm:$0xff]
  %v1839 = vld [vmem:[%s10 + $0x10] sm:$0xff]
  %v1840 = vld [vmem:[%s10 + $0x18] sm:$0xff]
  %v1841 = vld [vmem:[%s10 + $0x20] sm:$0xff]
  %v1842 = vld [vmem:[%s10 + $0x28] sm:$0xff]
  %v1843 = vld [vmem:[%s10 + $0x30] sm:$0xff]
  %v1844 = vld [vmem:[%s10 + $0x38] sm:$0xff]
  %v1846 = vrot.slane %v1835, 6
  %v1856 = vunpack.c.l.b16 %v1837
  %v1857 = vunpack.c.h.b16 %v1837
  %v1858 = vunpack.c.l.b16 %v1838
  %v1859 = vunpack.c.h.b16 %v1838
  %v1860 = vunpack.c.l.b16 %v1839
  %v1861 = vunpack.c.h.b16 %v1839
  %v1862 = vunpack.c.l.b16 %v1840
  %v1863 = vunpack.c.h.b16 %v1840
  %v1864 = vunpack.c.l.b16 %v1841
  %v1865 = vunpack.c.h.b16 %v1841
  %v1866 = vunpack.c.l.b16 %v1842
  %v1867 = vunpack.c.h.b16 %v1842
  %v1868 = vunpack.c.l.b16 %v1843
  %v1869 = vunpack.c.h.b16 %v1843
  %v1870 = vunpack.c.l.b16 %v1844
  %v1871 = vunpack.c.h.b16 %v1844
  %v1872 = vpack.c.b16 %v1858, %v1856
  %v1873 = vpack.c.b16 %v1859, %v1857
  %v1874 = vpack.c.b16 %v1862, %v1860
  %v1875 = vpack.c.b16 %v1863, %v1861
  %v1876 = vpack.c.b16 %v1866, %v1864
  %v1877 = vpack.c.b16 %v1867, %v1865
  %v1878 = vpack.c.b16 %v1870, %v1868
  %v1879 = vpack.c.b16 %v1871, %v1869
  %1888 = vmatprep.subr.bf16.mxu0 %v1873
  %1889 = vmatpush1.bf16.msra.mxu0 %v1872
  %1890 = vmatprep.subr.bf16.mxu0 %v1875
  %1891 = vmatpush1.bf16.msra.mxu0 %v1874
  %1892 = vmatprep.subr.bf16.mxu0 %v1877
  %1893 = vmatpush1.bf16.msra.mxu0 %v1876
  %1894 = vmatprep.subr.bf16.mxu0 %v1879
  %1895 = vmatpush1.bf16.msra.mxu0 %v1878
  %1896 = vmatprep.subr.bf16.mxu0 0
  %1897 = vmatpush1.bf16.msra.mxu0 0
  %1898 = vmatprep.subr.bf16.mxu0 0
  %1899 = vmatpush1.bf16.msra.mxu0 0
  %1900 = vmatprep.subr.bf16.mxu0 0
  %1901 = vmatpush1.bf16.msra.mxu0 0
  %1902 = vmatprep.subr.bf16.mxu0 0
  %1903 = vmatpush1.bf16.msra.mxu0 0
  %1904 = vmatprep.subr.bf16.mxu0 0
  %1905 = vmatpush1.bf16.msra.mxu0 0
  %1906 = vmatprep.subr.bf16.mxu0 0
  %1907 = vmatpush1.bf16.msra.mxu0 0
  %1908 = vmatprep.subr.bf16.mxu0 0
  %1909 = vmatpush1.bf16.msra.mxu0 0
  %1910 = vmatprep.subr.bf16.mxu0 0
  %1911 = vmatpush1.bf16.msra.mxu0 0
  %1912 = vmatprep.subr.bf16.mxu0 0
  %1913 = vmatpush1.bf16.msra.mxu0 0
  %1914 = vmatprep.subr.bf16.mxu0 0
  %1915 = vmatpush1.bf16.msra.mxu0 0
  %1916 = vmatprep.subr.bf16.mxu0 0
  %1917 = vmatpush1.bf16.msra.mxu0 0
  %1918 = vmatprep.subr.bf16.mxu0 0
  %1919 = vmatpush1.bf16.msra.mxu0 0
  %1920 = vmatprep.mubr.bf16.mxu0 0
  %1921 = vmatmul.mubr.bf16.gmra.mrb[0].mxu0 %v862
  %v1922 = vpop.f32.mrb[0].mxu0
  %v1923 = vadd.f32 %v1829, %v1922
  %v1924 = vpop.f32.mrb[0].mxu0
  %v1925 = vadd.f32 %v1846, %v1924
  %v1926 = vpop.f32.mrb[0].mxu0
  %v1927 = vpop.f32.mrb[0].mxu0
  %1928 = vdwg.mxu0
  %v1929 = vxor.u32 %v1923, 2147483648
  %v1930 = vxor.u32 %v1925, 2147483648
  %v1931 = vmul.f32 %v1929, 1.442695
  %v1932 = vpow.pop %v1931
  %v1933 = vmul.f32 %v1930, 1.442695
  %v1934 = vpow.pop %v1933
  %v1935 = vadd.f32 %v1932, 1.0
  %v1936 = vadd.f32 %v1934, 1.0
  %v1937 = vrcp.pop %v1935
  %v1938 = vmul.f32 1.0, %v1937
  %v1939 = vrcp.pop %v1936
  %v1940 = vmul.f32 1.0, %v1939
  %v1941 = vtanh.pop %v1923
  %v1942 = vtanh.pop %v1925
  %v1943 = vmul.f32 %v1938, 0.0
  %1945 = vrot.lane.b32.xlu0 %v1941, 64
  %v1946 = vpop.permute.xlu0 %1945
  %v1948 = vmul.f32 %v1938, %v1946
  %1950 = vrot.lane.b32.xlu0 %v1948, 32
  %v1951 = vpop.permute.xlu0 %1950
  %v1953 = vadd.f32 %v1943, %v1951
  %v1954 = vmul.f32 %v1940, 0.0
  %1956 = vrot.lane.b32.xlu0 %v1942, 64
  %v1957 = vpop.permute.xlu0 %1956
  %v1959 = vmul.f32 %v1940, %v1957
  %1961 = vrot.lane.b32.xlu0 %v1959, 32
  %v1962 = vpop.permute.xlu0 %1961
  %v1964 = vadd.f32 %v1954, %v1962
  %1966 = vrot.lane.b32.xlu0 %v1938, 32
  %v1967 = vpop.permute.xlu0 %1966
  %1970 = vrot.lane.b32.xlu0 %v1940, 64
  %v1971 = vpop.permute.xlu0 %1970
  %v1973 = vsel %vm670, %v1967, %v1971
  %1975 = vrot.lane.b32.xlu0 %v1953, 96
  %v1976 = vpop.permute.xlu0 %1975
  %v1978 = vsel %vm670, %v1976, %v1964
  %v1979 = vtanh.pop %v1978
  %v1980 = vmul.f32 %v1973, %v1979
  %1981 = vst.msk [vmem:[#allocation2] sm:$0x3] %vm957, %v1980
  %1983 = vrot.lane.b32.xlu0 %v1980, 96
  %v1984 = vpop.permute.xlu0 %1983
  %1986 = vst.msk [vmem:[#allocation3 + $0xe] sm:$0x3] %vm957, %v1984
  %v1987 = vrot.slane %v1835, 2
  %v1988 = vpack.c.bf16 %v1980, %v1980
  %v1990 = vrot.slane %v1829, 2
  %v1991 = vrot.slane %v1987, 2
  %v1995 = vsel %vm860, %v1988, 0
  %1997 = vmatprep.subr.bf16.mxu0 %v1873
  %1998 = vmatpush1.bf16.msra.mxu0 %v1872
  %1999 = vmatprep.subr.bf16.mxu0 %v1875
  %2000 = vmatpush1.bf16.msra.mxu0 %v1874
  %2001 = vmatprep.subr.bf16.mxu0 %v1877
  %2002 = vmatpush1.bf16.msra.mxu0 %v1876
  %2003 = vmatprep.subr.bf16.mxu0 %v1879
  %2004 = vmatpush1.bf16.msra.mxu0 %v1878
  %2005 = vmatprep.subr.bf16.mxu0 0
  %2006 = vmatpush1.bf16.msra.mxu0 0
  %2007 = vmatprep.subr.bf16.mxu0 0
  %2008 = vmatpush1.bf16.msra.mxu0 0
  %2009 = vmatprep.subr.bf16.mxu0 0
  %2010 = vmatpush1.bf16.msra.mxu0 0
  %2011 = vmatprep.subr.bf16.mxu0 0
  %2012 = vmatpush1.bf16.msra.mxu0 0
  %2013 = vmatprep.subr.bf16.mxu0 0
  %2014 = vmatpush1.bf16.msra.mxu0 0
  %2015 = vmatprep.subr.bf16.mxu0 0
  %2016 = vmatpush1.bf16.msra.mxu0 0
  %2017 = vmatprep.subr.bf16.mxu0 0
  %2018 = vmatpush1.bf16.msra.mxu0 0
  %2019 = vmatprep.subr.bf16.mxu0 0
  %2020 = vmatpush1.bf16.msra.mxu0 0
  %2021 = vmatprep.subr.bf16.mxu0 0
  %2022 = vmatpush1.bf16.msra.mxu0 0
  %2023 = vmatprep.subr.bf16.mxu0 0
  %2024 = vmatpush1.bf16.msra.mxu0 0
  %2025 = vmatprep.subr.bf16.mxu0 0
  %2026 = vmatpush1.bf16.msra.mxu0 0
  %2027 = vmatprep.subr.bf16.mxu0 0
  %2028 = vmatpush1.bf16.msra.mxu0 0
  %2029 = vmatprep.mubr.bf16.mxu0 0
  %2030 = vmatmul.mubr.bf16.gmra.mrb[0].mxu0 %v1995
  %v2031 = vpop.f32.mrb[0].mxu0
  %v2032 = vadd.f32 %v1990, %v2031
  %v2033 = vpop.f32.mrb[0].mxu0
  %v2034 = vadd.f32 %v1991, %v2033
  %v2035 = vpop.f32.mrb[0].mxu0
  %v2036 = vpop.f32.mrb[0].mxu0
  %2037 = vdwg.mxu0
  %v2038 = vxor.u32 %v2032, 2147483648
  %v2039 = vxor.u32 %v2034, 2147483648
  %v2040 = vmul.f32 %v2038, 1.442695
  %v2041 = vpow.pop %v2040
  %v2042 = vmul.f32 %v2039, 1.442695
  %v2043 = vpow.pop %v2042
  %v2044 = vadd.f32 %v2041, 1.0
  %v2045 = vadd.f32 %v2043, 1.0
  %v2046 = vrcp.pop %v2044
  %v2047 = vmul.f32 1.0, %v2046
  %v2048 = vrcp.pop %v2045
  %v2049 = vmul.f32 1.0, %v2048
  %v2050 = vtanh.pop %v2032
  %v2051 = vtanh.pop %v2034
  %v2052 = vmul.f32 %v2047, %v1953
  %2054 = vrot.lane.b32.xlu0 %v2050, 64
  %v2055 = vpop.permute.xlu0 %2054
  %v2057 = vmul.f32 %v2047, %v2055
  %2059 = vrot.lane.b32.xlu0 %v2057, 32
  %v2060 = vpop.permute.xlu0 %2059
  %v2062 = vadd.f32 %v2052, %v2060
  %v2063 = vmul.f32 %v2049, %v1964
  %2065 = vrot.lane.b32.xlu0 %v2051, 64
  %v2066 = vpop.permute.xlu0 %2065
  %v2068 = vmul.f32 %v2049, %v2066
  %2070 = vrot.lane.b32.xlu0 %v2068, 32
  %v2071 = vpop.permute.xlu0 %2070
  %v2073 = vadd.f32 %v2063, %v2071
  %2075 = vrot.lane.b32.xlu0 %v2047, 32
  %v2076 = vpop.permute.xlu0 %2075
  %2079 = vrot.lane.b32.xlu0 %v2049, 64
  %v2080 = vpop.permute.xlu0 %2079
  %v2082 = vsel %vm670, %v2076, %v2080
  %2084 = vrot.lane.b32.xlu0 %v2062, 96
  %v2085 = vpop.permute.xlu0 %2084
  %v2087 = vsel %vm670, %v2085, %v2073
  %v2088 = vtanh.pop %v2087
  %v2089 = vmul.f32 %v2082, %v2088
  %2090 = vst.msk [vmem:[#allocation2 + $0x2] sm:$0x3] %vm957, %v2089
  %2092 = vrot.lane.b32.xlu0 %v2089, 96
  %v2093 = vpop.permute.xlu0 %2092
  %2095 = vst.msk [vmem:[#allocation3 + $0xc] sm:$0x3] %vm957, %v2093
  %v2096 = vpack.c.bf16 %v2089, %v2089
  %v2097 = vrot.slane %v1829, 4
  %v2098 = vrot.slane %v1846, 4
  %v2102 = vsel %vm860, %v2096, 0
  %2104 = vmatprep.subr.bf16.mxu0 %v1873
  %2105 = vmatpush1.bf16.msra.mxu0 %v1872
  %2106 = vmatprep.subr.bf16.mxu0 %v1875
  %2107 = vmatpush1.bf16.msra.mxu0 %v1874
  %2108 = vmatprep.subr.bf16.mxu0 %v1877
  %2109 = vmatpush1.bf16.msra.mxu0 %v1876
  %2110 = vmatprep.subr.bf16.mxu0 %v1879
  %2111 = vmatpush1.bf16.msra.mxu0 %v1878
  %2112 = vmatprep.subr.bf16.mxu0 0
  %2113 = vmatpush1.bf16.msra.mxu0 0
  %2114 = vmatprep.subr.bf16.mxu0 0
  %2115 = vmatpush1.bf16.msra.mxu0 0
  %2116 = vmatprep.subr.bf16.mxu0 0
  %2117 = vmatpush1.bf16.msra.mxu0 0
  %2118 = vmatprep.subr.bf16.mxu0 0
  %2119 = vmatpush1.bf16.msra.mxu0 0
  %2120 = vmatprep.subr.bf16.mxu0 0
  %2121 = vmatpush1.bf16.msra.mxu0 0
  %2122 = vmatprep.subr.bf16.mxu0 0
  %2123 = vmatpush1.bf16.msra.mxu0 0
  %2124 = vmatprep.subr.bf16.mxu0 0
  %2125 = vmatpush1.bf16.msra.mxu0 0
  %2126 = vmatprep.subr.bf16.mxu0 0
  %2127 = vmatpush1.bf16.msra.mxu0 0
  %2128 = vmatprep.subr.bf16.mxu0 0
  %2129 = vmatpush1.bf16.msra.mxu0 0
  %2130 = vmatprep.subr.bf16.mxu0 0
  %2131 = vmatpush1.bf16.msra.mxu0 0
  %2132 = vmatprep.subr.bf16.mxu0 0
  %2133 = vmatpush1.bf16.msra.mxu0 0
  %2134 = vmatprep.subr.bf16.mxu0 0
  %2135 = vmatpush1.bf16.msra.mxu0 0
  %2136 = vmatprep.mubr.bf16.mxu0 0
  %2137 = vmatmul.mubr.bf16.gmra.mrb[0].mxu0 %v2102
  %v2138 = vpop.f32.mrb[0].mxu0
  %v2139 = vadd.f32 %v2097, %v2138
  %v2140 = vpop.f32.mrb[0].mxu0
  %v2141 = vadd.f32 %v2098, %v2140
  %v2142 = vpop.f32.mrb[0].mxu0
  %v2143 = vpop.f32.mrb[0].mxu0
  %2144 = vdwg.mxu0
  %v2145 = vxor.u32 %v2139, 2147483648
  %v2146 = vxor.u32 %v2141, 2147483648
  %v2147 = vmul.f32 %v2145, 1.442695
  %v2148 = vpow.pop %v2147
  %v2149 = vmul.f32 %v2146, 1.442695
  %v2150 = vpow.pop %v2149
  %v2151 = vadd.f32 %v2148, 1.0
  %v2152 = vadd.f32 %v2150, 1.0
  %v2153 = vrcp.pop %v2151
  %v2154 = vmul.f32 1.0, %v2153
  %v2155 = vrcp.pop %v2152
  %v2156 = vmul.f32 1.0, %v2155
  %v2157 = vtanh.pop %v2139
  %v2158 = vtanh.pop %v2141
  %v2159 = vmul.f32 %v2154, %v2062
  %2161 = vrot.lane.b32.xlu0 %v2157, 64
  %v2162 = vpop.permute.xlu0 %2161
  %v2164 = vmul.f32 %v2154, %v2162
  %2166 = vrot.lane.b32.xlu0 %v2164, 32
  %v2167 = vpop.permute.xlu0 %2166
  %v2169 = vadd.f32 %v2159, %v2167
  %v2170 = vmul.f32 %v2156, %v2073
  %2172 = vrot.lane.b32.xlu0 %v2158, 64
  %v2173 = vpop.permute.xlu0 %2172
  %v2175 = vmul.f32 %v2156, %v2173
  %2177 = vrot.lane.b32.xlu0 %v2175, 32
  %v2178 = vpop.permute.xlu0 %2177
  %v2180 = vadd.f32 %v2170, %v2178
  %2182 = vrot.lane.b32.xlu0 %v2154, 32
  %v2183 = vpop.permute.xlu0 %2182
  %2186 = vrot.lane.b32.xlu0 %v2156, 64
  %v2187 = vpop.permute.xlu0 %2186
  %v2189 = vsel %vm670, %v2183, %v2187
  %2191 = vrot.lane.b32.xlu0 %v2169, 96
  %v2192 = vpop.permute.xlu0 %2191
  %v2194 = vsel %vm670, %v2192, %v2180
  %v2195 = vtanh.pop %v2194
  %v2196 = vmul.f32 %v2189, %v2195
  %2197 = vst.msk [vmem:[#allocation2 + $0x4] sm:$0x3] %vm957, %v2196
  %2199 = vrot.lane.b32.xlu0 %v2196, 96
  %v2200 = vpop.permute.xlu0 %2199
  %2202 = vst.msk [vmem:[#allocation3 + $0xa] sm:$0x3] %vm957, %v2200
  %v2203 = vpack.c.bf16 %v2196, %v2196
  %v2204 = vrot.slane %v1829, 6
  %v2205 = vrot.slane %v1987, 6
  %v2209 = vsel %vm860, %v2203, 0
  %2211 = vmatprep.subr.bf16.mxu0 %v1873
  %2212 = vmatpush1.bf16.msra.mxu0 %v1872
  %2213 = vmatprep.subr.bf16.mxu0 %v1875
  %2214 = vmatpush1.bf16.msra.mxu0 %v1874
  %2215 = vmatprep.subr.bf16.mxu0 %v1877
  %2216 = vmatpush1.bf16.msra.mxu0 %v1876
  %2217 = vmatprep.subr.bf16.mxu0 %v1879
  %2218 = vmatpush1.bf16.msra.mxu0 %v1878
  %2219 = vmatprep.subr.bf16.mxu0 0
  %2220 = vmatpush1.bf16.msra.mxu0 0
  %2221 = vmatprep.subr.bf16.mxu0 0
  %2222 = vmatpush1.bf16.msra.mxu0 0
  %2223 = vmatprep.subr.bf16.mxu0 0
  %2224 = vmatpush1.bf16.msra.mxu0 0
  %2225 = vmatprep.subr.bf16.mxu0 0
  %2226 = vmatpush1.bf16.msra.mxu0 0
  %2227 = vmatprep.subr.bf16.mxu0 0
  %2228 = vmatpush1.bf16.msra.mxu0 0
  %2229 = vmatprep.subr.bf16.mxu0 0
  %2230 = vmatpush1.bf16.msra.mxu0 0
  %2231 = vmatprep.subr.bf16.mxu0 0
  %2232 = vmatpush1.bf16.msra.mxu0 0
  %2233 = vmatprep.subr.bf16.mxu0 0
  %2234 = vmatpush1.bf16.msra.mxu0 0
  %2235 = vmatprep.subr.bf16.mxu0 0
  %2236 = vmatpush1.bf16.msra.mxu0 0
  %2237 = vmatprep.subr.bf16.mxu0 0
  %2238 = vmatpush1.bf16.msra.mxu0 0
  %2239 = vmatprep.subr.bf16.mxu0 0
  %2240 = vmatpush1.bf16.msra.mxu0 0
  %2241 = vmatprep.subr.bf16.mxu0 0
  %2242 = vmatpush1.bf16.msra.mxu0 0
  %2243 = vmatprep.mubr.bf16.mxu0 0
  %2244 = vmatmul.mubr.bf16.gmra.mrb[0].mxu0 %v2209
  %v2245 = vpop.f32.mrb[0].mxu0
  %v2246 = vadd.f32 %v2204, %v2245
  %v2247 = vpop.f32.mrb[0].mxu0
  %v2248 = vadd.f32 %v2205, %v2247
  %v2249 = vpop.f32.mrb[0].mxu0
  %v2250 = vpop.f32.mrb[0].mxu0
  %2251 = vdwg.mxu0
  %v2252 = vxor.u32 %v2246, 2147483648
  %v2253 = vxor.u32 %v2248, 2147483648
  %v2254 = vmul.f32 %v2252, 1.442695
  %v2255 = vpow.pop %v2254
  %v2256 = vmul.f32 %v2253, 1.442695
  %v2257 = vpow.pop %v2256
  %v2258 = vadd.f32 %v2255, 1.0
  %v2259 = vadd.f32 %v2257, 1.0
  %v2260 = vrcp.pop %v2258
  %v2261 = vmul.f32 1.0, %v2260
  %v2262 = vrcp.pop %v2259
  %v2263 = vmul.f32 1.0, %v2262
  %v2264 = vtanh.pop %v2246
  %v2265 = vtanh.pop %v2248
  %v2266 = vmul.f32 %v2261, %v2169
  %2268 = vrot.lane.b32.xlu0 %v2264, 64
  %v2269 = vpop.permute.xlu0 %2268
  %v2271 = vmul.f32 %v2261, %v2269
  %2273 = vrot.lane.b32.xlu0 %v2271, 32
  %v2274 = vpop.permute.xlu0 %2273
  %v2276 = vadd.f32 %v2266, %v2274
  %v2277 = vmul.f32 %v2263, %v2180
  %2279 = vrot.lane.b32.xlu0 %v2265, 64
  %v2280 = vpop.permute.xlu0 %2279
  %v2282 = vmul.f32 %v2263, %v2280
  %2284 = vrot.lane.b32.xlu0 %v2282, 32
  %v2285 = vpop.permute.xlu0 %2284
  %v2287 = vadd.f32 %v2277, %v2285
  %2289 = vrot.lane.b32.xlu0 %v2261, 32
  %v2290 = vpop.permute.xlu0 %2289
  %2293 = vrot.lane.b32.xlu0 %v2263, 64
  %v2294 = vpop.permute.xlu0 %2293
  %v2296 = vsel %vm670, %v2290, %v2294
  %2298 = vrot.lane.b32.xlu0 %v2276, 96
  %v2299 = vpop.permute.xlu0 %2298
  %v2301 = vsel %vm670, %v2299, %v2287
  %v2302 = vtanh.pop %v2301
  %v2303 = vmul.f32 %v2296, %v2302
  %2304 = vst.msk [vmem:[#allocation2 + $0x6] sm:$0x3] %vm957, %v2303
  %2306 = vrot.lane.b32.xlu0 %v2303, 96
  %v2307 = vpop.permute.xlu0 %2306
  %2309 = vst.msk [vmem:[#allocation3 + $0x8] sm:$0x3] %vm957, %v2307
  %v2311 = vrot.slane %v1831, 6
  %v2313 = vpack.c.bf16 %v2303, %v2303
  %v2315 = vsel %vm860, %v2313, 0
  %2317 = vmatprep.subr.bf16.mxu0 %v1873
  %2318 = vmatpush1.bf16.msra.mxu0 %v1872
  %2319 = vmatprep.subr.bf16.mxu0 %v1875
  %2320 = vmatpush1.bf16.msra.mxu0 %v1874
  %2321 = vmatprep.subr.bf16.mxu0 %v1877
  %2322 = vmatpush1.bf16.msra.mxu0 %v1876
  %2323 = vmatprep.subr.bf16.mxu0 %v1879
  %2324 = vmatpush1.bf16.msra.mxu0 %v1878
  %2325 = vmatprep.subr.bf16.mxu0 0
  %2326 = vmatpush1.bf16.msra.mxu0 0
  %2327 = vmatprep.subr.bf16.mxu0 0
  %2328 = vmatpush1.bf16.msra.mxu0 0
  %2329 = vmatprep.subr.bf16.mxu0 0
  %2330 = vmatpush1.bf16.msra.mxu0 0
  %2331 = vmatprep.subr.bf16.mxu0 0
  %2332 = vmatpush1.bf16.msra.mxu0 0
  %2333 = vmatprep.subr.bf16.mxu0 0
  %2334 = vmatpush1.bf16.msra.mxu0 0
  %2335 = vmatprep.subr.bf16.mxu0 0
  %2336 = vmatpush1.bf16.msra.mxu0 0
  %2337 = vmatprep.subr.bf16.mxu0 0
  %2338 = vmatpush1.bf16.msra.mxu0 0
  %2339 = vmatprep.subr.bf16.mxu0 0
  %2340 = vmatpush1.bf16.msra.mxu0 0
  %2341 = vmatprep.subr.bf16.mxu0 0
  %2342 = vmatpush1.bf16.msra.mxu0 0
  %2343 = vmatprep.subr.bf16.mxu0 0
  %2344 = vmatpush1.bf16.msra.mxu0 0
  %2345 = vmatprep.subr.bf16.mxu0 0
  %2346 = vmatpush1.bf16.msra.mxu0 0
  %2347 = vmatprep.subr.bf16.mxu0 0
  %2348 = vmatpush1.bf16.msra.mxu0 0
  %2349 = vmatprep.mubr.bf16.mxu0 0
  %2350 = vmatmul.mubr.bf16.gmra.mrb[0].mxu0 %v2315
  %v2351 = vpop.f32.mrb[0].mxu0
  %v2352 = vadd.f32 %v1833, %v2351
  %v2353 = vpop.f32.mrb[0].mxu0
  %v2354 = vadd.f32 %v2311, %v2353
  %v2355 = vpop.f32.mrb[0].mxu0
  %v2356 = vpop.f32.mrb[0].mxu0
  %2357 = vdwg.mxu0
  %v2358 = vxor.u32 %v2352, 2147483648
  %v2359 = vxor.u32 %v2354, 2147483648
  %v2360 = vmul.f32 %v2358, 1.442695
  %v2361 = vpow.pop %v2360
  %v2362 = vmul.f32 %v2359, 1.442695
  %v2363 = vpow.pop %v2362
  %v2364 = vadd.f32 %v2361, 1.0
  %v2365 = vadd.f32 %v2363, 1.0
  %v2366 = vrcp.pop %v2364
  %v2367 = vmul.f32 1.0, %v2366
  %v2368 = vrcp.pop %v2365
  %v2369 = vmul.f32 1.0, %v2368
  %v2370 = vtanh.pop %v2352
  %v2371 = vtanh.pop %v2354
  %v2372 = vmul.f32 %v2367, %v2276
  %2374 = vrot.lane.b32.xlu0 %v2370, 64
  %v2375 = vpop.permute.xlu0 %2374
  %v2377 = vmul.f32 %v2367, %v2375
  %2379 = vrot.lane.b32.xlu0 %v2377, 32
  %v2380 = vpop.permute.xlu0 %2379
  %v2382 = vadd.f32 %v2372, %v2380
  %v2383 = vmul.f32 %v2369, %v2287
  %2385 = vrot.lane.b32.xlu0 %v2371, 64
  %v2386 = vpop.permute.xlu0 %2385
  %v2388 = vmul.f32 %v2369, %v2386
  %2390 = vrot.lane.b32.xlu0 %v2388, 32
  %v2391 = vpop.permute.xlu0 %2390
  %v2393 = vadd.f32 %v2383, %v2391
  %2395 = vrot.lane.b32.xlu0 %v2367, 32
  %v2396 = vpop.permute.xlu0 %2395
  %2399 = vrot.lane.b32.xlu0 %v2369, 64
  %v2400 = vpop.permute.xlu0 %2399
  %v2402 = vsel %vm670, %v2396, %v2400
  %2404 = vrot.lane.b32.xlu0 %v2382, 96
  %v2405 = vpop.permute.xlu0 %2404
  %v2407 = vsel %vm670, %v2405, %v2393
  %v2408 = vtanh.pop %v2407
  %v2409 = vmul.f32 %v2402, %v2408
  %2410 = vst.msk [vmem:[#allocation2 + $0x8] sm:$0x3] %vm957, %v2409
  %2412 = vrot.lane.b32.xlu0 %v2409, 96
  %v2413 = vpop.permute.xlu0 %2412
  %2415 = vst.msk [vmem:[#allocation3 + $0x6] sm:$0x3] %vm957, %v2413
  %v2416 = vrot.slane %v1831, 2
  %v2417 = vpack.c.bf16 %v2409, %v2409
  %v2419 = vrot.slane %v1833, 2
  %v2420 = vrot.slane %v2416, 2
  %v2424 = vsel %vm860, %v2417, 0
  %2426 = vmatprep.subr.bf16.mxu0 %v1873
  %2427 = vmatpush1.bf16.msra.mxu0 %v1872
  %2428 = vmatprep.subr.bf16.mxu0 %v1875
  %2429 = vmatpush1.bf16.msra.mxu0 %v1874
  %2430 = vmatprep.subr.bf16.mxu0 %v1877
  %2431 = vmatpush1.bf16.msra.mxu0 %v1876
  %2432 = vmatprep.subr.bf16.mxu0 %v1879
  %2433 = vmatpush1.bf16.msra.mxu0 %v1878
  %2434 = vmatprep.subr.bf16.mxu0 0
  %2435 = vmatpush1.bf16.msra.mxu0 0
  %2436 = vmatprep.subr.bf16.mxu0 0
  %2437 = vmatpush1.bf16.msra.mxu0 0
  %2438 = vmatprep.subr.bf16.mxu0 0
  %2439 = vmatpush1.bf16.msra.mxu0 0
  %2440 = vmatprep.subr.bf16.mxu0 0
  %2441 = vmatpush1.bf16.msra.mxu0 0
  %2442 = vmatprep.subr.bf16.mxu0 0
  %2443 = vmatpush1.bf16.msra.mxu0 0
  %2444 = vmatprep.subr.bf16.mxu0 0
  %2445 = vmatpush1.bf16.msra.mxu0 0
  %2446 = vmatprep.subr.bf16.mxu0 0
  %2447 = vmatpush1.bf16.msra.mxu0 0
  %2448 = vmatprep.subr.bf16.mxu0 0
  %2449 = vmatpush1.bf16.msra.mxu0 0
  %2450 = vmatprep.subr.bf16.mxu0 0
  %2451 = vmatpush1.bf16.msra.mxu0 0
  %2452 = vmatprep.subr.bf16.mxu0 0
  %2453 = vmatpush1.bf16.msra.mxu0 0
  %2454 = vmatprep.subr.bf16.mxu0 0
  %2455 = vmatpush1.bf16.msra.mxu0 0
  %2456 = vmatprep.subr.bf16.mxu0 0
  %2457 = vmatpush1.bf16.msra.mxu0 0
  %2458 = vmatprep.mubr.bf16.mxu0 0
  %2459 = vmatmul.mubr.bf16.gmra.mrb[0].mxu0 %v2424
  %v2460 = vpop.f32.mrb[0].mxu0
  %v2461 = vadd.f32 %v2419, %v2460
  %v2462 = vpop.f32.mrb[0].mxu0
  %v2463 = vadd.f32 %v2420, %v2462
  %v2464 = vpop.f32.mrb[0].mxu0
  %v2465 = vpop.f32.mrb[0].mxu0
  %2466 = vdwg.mxu0
  %v2467 = vxor.u32 %v2461, 2147483648
  %v2468 = vxor.u32 %v2463, 2147483648
  %v2469 = vmul.f32 %v2467, 1.442695
  %v2470 = vpow.pop %v2469
  %v2471 = vmul.f32 %v2468, 1.442695
  %v2472 = vpow.pop %v2471
  %v2473 = vadd.f32 %v2470, 1.0
  %v2474 = vadd.f32 %v2472, 1.0
  %v2475 = vrcp.pop %v2473
  %v2476 = vmul.f32 1.0, %v2475
  %v2477 = vrcp.pop %v2474
  %v2478 = vmul.f32 1.0, %v2477
  %v2479 = vtanh.pop %v2461
  %v2480 = vtanh.pop %v2463
  %v2481 = vmul.f32 %v2476, %v2382
  %2483 = vrot.lane.b32.xlu0 %v2479, 64
  %v2484 = vpop.permute.xlu0 %2483
  %v2486 = vmul.f32 %v2476, %v2484
  %2488 = vrot.lane.b32.xlu0 %v2486, 32
  %v2489 = vpop.permute.xlu0 %2488
  %v2491 = vadd.f32 %v2481, %v2489
  %v2492 = vmul.f32 %v2478, %v2393
  %2494 = vrot.lane.b32.xlu0 %v2480, 64
  %v2495 = vpop.permute.xlu0 %2494
  %v2497 = vmul.f32 %v2478, %v2495
  %2499 = vrot.lane.b32.xlu0 %v2497, 32
  %v2500 = vpop.permute.xlu0 %2499
  %v2502 = vadd.f32 %v2492, %v2500
  %2504 = vrot.lane.b32.xlu0 %v2476, 32
  %v2505 = vpop.permute.xlu0 %2504
  %2508 = vrot.lane.b32.xlu0 %v2478, 64
  %v2509 = vpop.permute.xlu0 %2508
  %v2511 = vsel %vm670, %v2505, %v2509
  %2513 = vrot.lane.b32.xlu0 %v2491, 96
  %v2514 = vpop.permute.xlu0 %2513
  %v2516 = vsel %vm670, %v2514, %v2502
  %v2517 = vtanh.pop %v2516
  %v2518 = vmul.f32 %v2511, %v2517
  %2519 = vst.msk [vmem:[#allocation2 + $0xa] sm:$0x3] %vm957, %v2518
  %2521 = vrot.lane.b32.xlu0 %v2518, 96
  %v2522 = vpop.permute.xlu0 %2521
  %2524 = vst.msk [vmem:[#allocation3 + $0x4] sm:$0x3] %vm957, %v2522
  %v2525 = vpack.c.bf16 %v2518, %v2518
  %v2526 = vrot.slane %v1833, 4
  %v2527 = vrot.slane %v2311, 4
  %v2531 = vsel %vm860, %v2525, 0
  %2533 = vmatprep.subr.bf16.mxu0 %v1873
  %2534 = vmatpush1.bf16.msra.mxu0 %v1872
  %2535 = vmatprep.subr.bf16.mxu0 %v1875
  %2536 = vmatpush1.bf16.msra.mxu0 %v1874
  %2537 = vmatprep.subr.bf16.mxu0 %v1877
  %2538 = vmatpush1.bf16.msra.mxu0 %v1876
  %2539 = vmatprep.subr.bf16.mxu0 %v1879
  %2540 = vmatpush1.bf16.msra.mxu0 %v1878
  %2541 = vmatprep.subr.bf16.mxu0 0
  %2542 = vmatpush1.bf16.msra.mxu0 0
  %2543 = vmatprep.subr.bf16.mxu0 0
  %2544 = vmatpush1.bf16.msra.mxu0 0
  %2545 = vmatprep.subr.bf16.mxu0 0
  %2546 = vmatpush1.bf16.msra.mxu0 0
  %2547 = vmatprep.subr.bf16.mxu0 0
  %2548 = vmatpush1.bf16.msra.mxu0 0
  %2549 = vmatprep.subr.bf16.mxu0 0
  %2550 = vmatpush1.bf16.msra.mxu0 0
  %2551 = vmatprep.subr.bf16.mxu0 0
  %2552 = vmatpush1.bf16.msra.mxu0 0
  %2553 = vmatprep.subr.bf16.mxu0 0
  %2554 = vmatpush1.bf16.msra.mxu0 0
  %2555 = vmatprep.subr.bf16.mxu0 0
  %2556 = vmatpush1.bf16.msra.mxu0 0
  %2557 = vmatprep.subr.bf16.mxu0 0
  %2558 = vmatpush1.bf16.msra.mxu0 0
  %2559 = vmatprep.subr.bf16.mxu0 0
  %2560 = vmatpush1.bf16.msra.mxu0 0
  %2561 = vmatprep.subr.bf16.mxu0 0
  %2562 = vmatpush1.bf16.msra.mxu0 0
  %2563 = vmatprep.subr.bf16.mxu0 0
  %2564 = vmatpush1.bf16.msra.mxu0 0
  %2565 = vmatprep.mubr.bf16.mxu0 0
  %2566 = vmatmul.mubr.bf16.gmra.mrb[0].mxu0 %v2531
  %v2567 = vpop.f32.mrb[0].mxu0
  %v2568 = vadd.f32 %v2526, %v2567
  %v2569 = vpop.f32.mrb[0].mxu0
  %v2570 = vadd.f32 %v2527, %v2569
  %v2571 = vpop.f32.mrb[0].mxu0
  %v2572 = vpop.f32.mrb[0].mxu0
  %2573 = vdwg.mxu0
  %v2574 = vxor.u32 %v2568, 2147483648
  %v2575 = vxor.u32 %v2570, 2147483648
  %v2576 = vmul.f32 %v2574, 1.442695
  %v2577 = vpow.pop %v2576
  %v2578 = vmul.f32 %v2575, 1.442695
  %v2579 = vpow.pop %v2578
  %v2580 = vadd.f32 %v2577, 1.0
  %v2581 = vadd.f32 %v2579, 1.0
  %v2582 = vrcp.pop %v2580
  %v2583 = vmul.f32 1.0, %v2582
  %v2584 = vrcp.pop %v2581
  %v2585 = vmul.f32 1.0, %v2584
  %v2586 = vtanh.pop %v2568
  %v2587 = vtanh.pop %v2570
  %v2588 = vmul.f32 %v2583, %v2491
  %2590 = vrot.lane.b32.xlu0 %v2586, 64
  %v2591 = vpop.permute.xlu0 %2590
  %v2593 = vmul.f32 %v2583, %v2591
  %2595 = vrot.lane.b32.xlu0 %v2593, 32
  %v2596 = vpop.permute.xlu0 %2595
  %v2598 = vadd.f32 %v2588, %v2596
  %v2599 = vmul.f32 %v2585, %v2502
  %2601 = vrot.lane.b32.xlu0 %v2587, 64
  %v2602 = vpop.permute.xlu0 %2601
  %v2604 = vmul.f32 %v2585, %v2602
  %2606 = vrot.lane.b32.xlu0 %v2604, 32
  %v2607 = vpop.permute.xlu0 %2606
  %v2609 = vadd.f32 %v2599, %v2607
  %2611 = vrot.lane.b32.xlu0 %v2583, 32
  %v2612 = vpop.permute.xlu0 %2611
  %2615 = vrot.lane.b32.xlu0 %v2585, 64
  %v2616 = vpop.permute.xlu0 %2615
  %v2618 = vsel %vm670, %v2612, %v2616
  %2620 = vrot.lane.b32.xlu0 %v2598, 96
  %v2621 = vpop.permute.xlu0 %2620
  %v2623 = vsel %vm670, %v2621, %v2609
  %v2624 = vtanh.pop %v2623
  %v2625 = vmul.f32 %v2618, %v2624
  %2626 = vst.msk [vmem:[#allocation2 + $0xc] sm:$0x3] %vm957, %v2625
  %2628 = vrot.lane.b32.xlu0 %v2625, 96
  %v2629 = vpop.permute.xlu0 %2628
  %2631 = vst.msk [vmem:[#allocation3 + $0x2] sm:$0x3] %vm957, %v2629
  %v2632 = vpack.c.bf16 %v2625, %v2625
  %v2633 = vrot.slane %v1833, 6
  %v2634 = vrot.slane %v2416, 6
  %v2638 = vsel %vm860, %v2632, 0
  %2640 = vmatprep.subr.bf16.mxu0 %v1873
  %2641 = vmatpush1.bf16.msra.mxu0 %v1872
  %2642 = vmatprep.subr.bf16.mxu0 %v1875
  %2643 = vmatpush1.bf16.msra.mxu0 %v1874
  %2644 = vmatprep.subr.bf16.mxu0 %v1877
  %2645 = vmatpush1.bf16.msra.mxu0 %v1876
  %2646 = vmatprep.subr.bf16.mxu0 %v1879
  %2647 = vmatpush1.bf16.msra.mxu0 %v1878
  %2648 = vmatprep.subr.bf16.mxu0 0
  %2649 = vmatpush1.bf16.msra.mxu0 0
  %2650 = vmatprep.subr.bf16.mxu0 0
  %2651 = vmatpush1.bf16.msra.mxu0 0
  %2652 = vmatprep.subr.bf16.mxu0 0
  %2653 = vmatpush1.bf16.msra.mxu0 0
  %2654 = vmatprep.subr.bf16.mxu0 0
  %2655 = vmatpush1.bf16.msra.mxu0 0
  %2656 = vmatprep.subr.bf16.mxu0 0
  %2657 = vmatpush1.bf16.msra.mxu0 0
  %2658 = vmatprep.subr.bf16.mxu0 0
  %2659 = vmatpush1.bf16.msra.mxu0 0
  %2660 = vmatprep.subr.bf16.mxu0 0
  %2661 = vmatpush1.bf16.msra.mxu0 0
  %2662 = vmatprep.subr.bf16.mxu0 0
  %2663 = vmatpush1.bf16.msra.mxu0 0
  %2664 = vmatprep.subr.bf16.mxu0 0
  %2665 = vmatpush1.bf16.msra.mxu0 0
  %2666 = vmatprep.subr.bf16.mxu0 0
  %2667 = vmatpush1.bf16.msra.mxu0 0
  %2668 = vmatprep.subr.bf16.mxu0 0
  %2669 = vmatpush1.bf16.msra.mxu0 0
  %2670 = vmatprep.subr.bf16.mxu0 0
  %2671 = vmatpush1.bf16.msra.mxu0 0
  %2672 = vmatprep.mubr.bf16.mxu0 0
  %2673 = vmatmul.mubr.bf16.gmra.mrb[0].mxu0 %v2638
  %v2674 = vpop.f32.mrb[0].mxu0
  %v2675 = vadd.f32 %v2633, %v2674
  %v2676 = vpop.f32.mrb[0].mxu0
  %v2677 = vadd.f32 %v2634, %v2676
  %v2678 = vpop.f32.mrb[0].mxu0
  %v2679 = vpop.f32.mrb[0].mxu0
  %2680 = vdwg.mxu0
  %v2681 = vxor.u32 %v2675, 2147483648
  %v2682 = vxor.u32 %v2677, 2147483648
  %v2683 = vmul.f32 %v2681, 1.442695
  %v2684 = vpow.pop %v2683
  %v2685 = vmul.f32 %v2682, 1.442695
  %v2686 = vpow.pop %v2685
  %v2687 = vadd.f32 %v2684, 1.0
  %v2688 = vadd.f32 %v2686, 1.0
  %v2689 = vrcp.pop %v2687
  %v2690 = vmul.f32 1.0, %v2689
  %v2691 = vrcp.pop %v2688
  %v2692 = vmul.f32 1.0, %v2691
  %v2693 = vtanh.pop %v2675
  %v2694 = vtanh.pop %v2677
  %v2695 = vmul.f32 %v2690, %v2598
  %2697 = vrot.lane.b32.xlu0 %v2693, 64
  %v2698 = vpop.permute.xlu0 %2697
  %v2700 = vmul.f32 %v2690, %v2698
  %2702 = vrot.lane.b32.xlu0 %v2700, 32
  %v2703 = vpop.permute.xlu0 %2702
  %v2705 = vadd.f32 %v2695, %v2703
  %v2706 = vmul.f32 %v2692, %v2609
  %2708 = vrot.lane.b32.xlu0 %v2694, 64
  %v2709 = vpop.permute.xlu0 %2708
  %v2711 = vmul.f32 %v2692, %v2709
  %2713 = vrot.lane.b32.xlu0 %v2711, 32
  %v2714 = vpop.permute.xlu0 %2713
  %v2716 = vadd.f32 %v2706, %v2714
  %2718 = vrot.lane.b32.xlu0 %v2690, 32
  %v2719 = vpop.permute.xlu0 %2718
  %2722 = vrot.lane.b32.xlu0 %v2692, 64
  %v2723 = vpop.permute.xlu0 %2722
  %v2725 = vsel %vm670, %v2719, %v2723
  %2727 = vrot.lane.b32.xlu0 %v2705, 96
  %v2728 = vpop.permute.xlu0 %2727
  %v2730 = vsel %vm670, %v2728, %v2716
  %v2731 = vtanh.pop %v2730
  %v2732 = vmul.f32 %v2725, %v2731
  %2733 = vst.msk [vmem:[#allocation2 + $0xe] sm:$0x3] %vm957, %v2732
  %2735 = vrot.lane.b32.xlu0 %v2732, 96
  %v2736 = vpop.permute.xlu0 %2735
  %2738 = vst.msk [vmem:[#allocation3] sm:$0x3] %vm957, %v2736
  %v2739 = vld [vmem:[#allocation2] sm:$0xff]
  %v2740 = vld [vmem:[#allocation2 + $0x8] sm:$0xff]
  %v2741 = vld [vmem:[#allocation3] sm:$0xff]
  %v2742 = vld [vmem:[#allocation3 + $0x8] sm:$0xff]
  %2745 = vrot.lane.b32.xlu0 %v2741, 32
  %v2746 = vpop.permute.xlu0 %2745
  %2747 = vrot.lane.b32.xlu0 %v2742, 32
  %v2748 = vpop.permute.xlu0 %2747
  %v2751 = vsel %vm670, %v2739, %v2746
  %v2752 = vsel %vm670, %v2740, %v2748
  %v2753 = vpack.c.bf16 %v2752, %v2751
  %v2754 = vld [vmem:[%s11] sm:$0xf]
  %v2755 = vld [vmem:[%s11 + $0x4] sm:$0xf]
  %v2756 = vld [vmem:[%s11 + $0x8] sm:$0xf]
  %v2757 = vld [vmem:[%s11 + $0xc] sm:$0xf]
  %v2758 = vld [vmem:[%s11 + $0x10] sm:$0xf]
  %v2759 = vld [vmem:[%s11 + $0x14] sm:$0xf]
  %v2760 = vld [vmem:[%s11 + $0x18] sm:$0xf]
  %v2761 = vld [vmem:[%s11 + $0x1c] sm:$0xf]
  %v2762 = vld [vmem:[%s12] sm:$0x1]
  %v2764 = vlaneseq
  %v2765 = vshrl.u32 %v2764, 7
  %v2766 = vsub.s32 0, %v2765
  %v2767 = vrot.slane %v2762, %v2766
  %v2777 = vunpack.c.l.b16 %v2754
  %v2778 = vunpack.c.l.b16 %v2755
  %v2779 = vunpack.c.l.b16 %v2756
  %v2780 = vunpack.c.l.b16 %v2757
  %v2781 = vunpack.c.l.b16 %v2758
  %v2782 = vunpack.c.l.b16 %v2759
  %v2783 = vunpack.c.l.b16 %v2760
  %v2784 = vunpack.c.l.b16 %v2761
  %v2785 = vpack.c.b16 %v2778, %v2777
  %v2786 = vpack.c.b16 %v2780, %v2779
  %v2787 = vpack.c.b16 %v2782, %v2781
  %v2788 = vpack.c.b16 %v2784, %v2783
  %v2794 = vsel %vm860, %v2753, 0
  %2796 = vmatprep.subr.bf16.mxu0 0
  %2797 = vmatpush1.bf16.msra.mxu0 %v2785
  %2798 = vmatprep.subr.bf16.mxu0 0
  %2799 = vmatpush1.bf16.msra.mxu0 %v2786
  %2800 = vmatprep.subr.bf16.mxu0 0
  %2801 = vmatpush1.bf16.msra.mxu0 %v2787
  %2802 = vmatprep.subr.bf16.mxu0 0
  %2803 = vmatpush1.bf16.msra.mxu0 %v2788
  %2804 = vmatprep.subr.bf16.mxu0 0
  %2805 = vmatpush1.bf16.msra.mxu0 0
  %2806 = vmatprep.subr.bf16.mxu0 0
  %2807 = vmatpush1.bf16.msra.mxu0 0
  %2808 = vmatprep.subr.bf16.mxu0 0
  %2809 = vmatpush1.bf16.msra.mxu0 0
  %2810 = vmatprep.subr.bf16.mxu0 0
  %2811 = vmatpush1.bf16.msra.mxu0 0
  %2812 = vmatprep.subr.bf16.mxu0 0
  %2813 = vmatpush1.bf16.msra.mxu0 0
  %2814 = vmatprep.subr.bf16.mxu0 0
  %2815 = vmatpush1.bf16.msra.mxu0 0
  %2816 = vmatprep.subr.bf16.mxu0 0
  %2817 = vmatpush1.bf16.msra.mxu0 0
  %2818 = vmatprep.subr.bf16.mxu0 0
  %2819 = vmatpush1.bf16.msra.mxu0 0
  %2820 = vmatprep.subr.bf16.mxu0 0
  %2821 = vmatpush1.bf16.msra.mxu0 0
  %2822 = vmatprep.subr.bf16.mxu0 0
  %2823 = vmatpush1.bf16.msra.mxu0 0
  %2824 = vmatprep.subr.bf16.mxu0 0
  %2825 = vmatpush1.bf16.msra.mxu0 0
  %2826 = vmatprep.subr.bf16.mxu0 0
  %2827 = vmatpush1.bf16.msra.mxu0 0
  %2828 = vmatprep.mubr.bf16.mxu0 0
  %2829 = vmatmul.mubr.bf16.gmra.mrb[0].mxu0 %v2794
  %v2830 = vpop.f32.mrb[0].mxu0
  %v2831 = vadd.f32 %v2767, %v2830
  %v2832 = vpop.f32.mrb[0].mxu0
  %v2833 = vpop.f32.mrb[0].mxu0
  %v2834 = vadd.f32 %v2767, %v2833
  %v2835 = vpop.f32.mrb[0].mxu0
  %2836 = vdwg.mxu0
  %2837 = vst [vmem:[%s13] sm:$0xff] %v2831
  %2838 = vst [vmem:[%s13 + $0x8] sm:$0xff] %v2834
  // Predicated region
  $region54: #{_lambda_.1} parent=0 // pred_check
    _
  $region55: #{_lambda_.1} parent=0 // pred_check_branch
    %2840 = sbr.rel (0) target = $region57
  $region56: #{_lambda_.1} parent=0 // pred_region
    _
  $region57: #{_lambda_.1} parent=0 // pred_fallthru
    _
  // Predicated region
  $region58: #{_lambda_.1} parent=0 // pred_check
    _
  $region59: #{_lambda_.1} parent=0 // pred_check_branch
    %2842 = sbr.rel (0) target = $region61
  $region60: #{_lambda_.1} parent=0 // pred_region
    _
  $region61: #{_lambda_.1} parent=0 // pred_fallthru
    _

</llo_original>
